<compile_context>
chip_gen: v5e
topology: v5e:2x2
jax: 0.10.0
libtpu: 0.0.40
codegen_flags: <defaults>
</compile_context>

<pallas_src>
import functools

import jax
import jax.numpy as jnp
import numpy as np
from jax.experimental import pallas as pl
from jax.experimental.pallas import tpu as pltpu


# --------------------------------------------------------------------------- #
# Kernel
# --------------------------------------------------------------------------- #
def _lstm_kernel(num_layers, time_block, batch_blk, hidden_pad,
                 lens_ref, xproj_ref, *rest):
    """One grid step = TT timesteps for one batch block, all layers
    (layer-outer, time-inner).  Grid = (batch_blocks[parallel], T/TT[arbitrary])."""
    L, TT, Bb, Hp = num_layers, time_block, batch_blk, hidden_pad

    whh_refs = rest[:L]                               # (Hp, 4Hp) per layer
    wih_refs = rest[L:2 * L - 1]                      # (Hp, 4Hp) for layers 1..L-1
    b_refs = rest[2 * L - 1:3 * L - 2]                # (1, 4Hp)  for layers 1..L-1
    (out_ref, hn_ref, cn_ref,
     proj_sc, hbuf, h_state, c_state) = rest[3 * L - 2:]

    tblk = pl.program_id(1)
    t0 = tblk * TT

    @pl.when(tblk == 0)
    def _():
        h_state[...] = jnp.zeros_like(h_state)
        c_state[...] = jnp.zeros_like(c_state)

    lens = lens_ref[...]                              # (Bb, 1) int32
    # Hoisted packed-sequence masks: computed ONCE per block, reused by every layer.
    masks = [(t0 + tt) < lens for tt in range(TT)]

    for l in range(L):                                # L is static -> unrolled
        whh = whh_refs[l][...]                        # (Hp, 4Hp), compute dtype

        if l == 0:
            # Layer-0 input projection (incl. bias) was hoisted to the wrapper.
            proj_ref = xproj_ref
        else:
            # Blocked input projection for this layer: one GEMM over TT timesteps.
            inp = hbuf[...].astype(whh.dtype).reshape(TT * Bb, Hp)
            proj = jnp.dot(inp, wih_refs[l - 1][...],
                           preferred_element_type=jnp.float32)
            proj_sc[...] = proj.reshape(TT, Bb, 4 * Hp) + b_refs[l - 1][...]
            proj_ref = proj_sc

        # Local (vreg-resident) state carry across the TT steps of this block;
        # the only per-step VMEM traffic on the serial path is proj_ref[tt] and
        # the out/hbuf store.
        h_cur = h_state[l]                            # (Bb, Hp) f32
        c_cur = c_state[l]
        for tt in range(TT):                          # static unroll
            gates = proj_ref[tt] + jnp.dot(h_cur.astype(whh.dtype), whh,
                                           preferred_element_type=jnp.float32)
            # Gate math stays f32 (v5e has no bf16 VPU/EUP); slices 128-lane aligned.
            i_g = jax.nn.sigmoid(gates[:, 0:Hp])
            f_g = jax.nn.sigmoid(gates[:, Hp:2 * Hp])
            g_g = jnp.tanh(gates[:, 2 * Hp:3 * Hp])
            o_g = jax.nn.sigmoid(gates[:, 3 * Hp:4 * Hp])
            c_new = f_g * c_cur + i_g * g_g
            h_new = o_g * jnp.tanh(c_new)

            # packed-sequence semantics: state freezes once t >= length
            mask = masks[tt]                          # (Bb, 1) bool
            c_cur = jnp.where(mask, c_new, c_cur)
            h_cur = jnp.where(mask, h_new, h_cur)

            if l < L - 1:
                hbuf[tt] = h_new                      # input to next layer
            else:
                out_ref[tt] = jnp.where(mask, h_new, 0.0).astype(out_ref.dtype)

        # One VMEM write per layer per grid block.
        h_state[l] = h_cur
        c_state[l] = c_cur

    @pl.when(tblk == pl.num_programs(1) - 1)
    def _():
        hn_ref[...] = h_state[...]
        cn_ref[...] = c_state[...]


# --------------------------------------------------------------------------- #
# Weight packing helpers (wrapper-side, one-time)
# --------------------------------------------------------------------------- #
def _pack_w(w, H, Hp, rows_pad, dtype):
    """(4H, in) PyTorch layout -> (rows_pad, 4*Hp), transposed, per-gate lane-padded."""
    in_dim = w.shape[1]
    wp = jnp.zeros((rows_pad, 4 * Hp), dtype)
    for k in range(4):
        wp = wp.at[:in_dim, k * Hp:k * Hp + H].set(
            w[k * H:(k + 1) * H, :].T.astype(dtype))
    return wp


def _pack_b(b_ih, b_hh, H, Hp):
    """Pre-summed bias, per-gate lane-padded to (1, 4*Hp), f32."""
    b = (b_ih + b_hh).reshape(1, 4 * H).astype(jnp.float32)
    bp = jnp.zeros((1, 4 * Hp), jnp.float32)
    for k in range(4):
        bp = bp.at[:, k * Hp:k * Hp + H].set(b[:, k * H:(k + 1) * H])
    return bp


# --------------------------------------------------------------------------- #
# Wrapper
# --------------------------------------------------------------------------- #
def encoder1_forward(prem_batch, sequence_length, embeddings, params,
                     hidden_size, num_layers, *,
                     compute_dtype=jnp.bfloat16, time_block=8, batch_blocks=1,
                     vmem_limit_bytes=56 * 1024 * 1024):
    B, T_in = prem_batch.shape
    E = embeddings.shape[1]
    H, L = hidden_size, num_layers
    Hp = ((H + 127) // 128) * 128                     # lane-pad hidden to 128
    align = 8 * batch_blocks                          # each batch block 8-sublane aligned
    Bp = max(align, ((B + align - 1) // align) * align)
    Bb = Bp // batch_blocks

    # pad_packed_sequence pads to the max valid length in the batch.
    # (Host sync; bakes max length into the compiled shape — same as torch .cpu().)
    T_out = int(np.asarray(sequence_length).max())
    TT = time_block
    T_pad = ((T_out + TT - 1) // TT) * TT
    n_tblk = T_pad // TT

    # ---- embedding lookup (dropout = identity in eval) + padding -----------
    x = jnp.take(embeddings, prem_batch, axis=0).astype(jnp.float32)   # [B, T_in, E]
    x = x[:, :T_out, :]
    x = jnp.pad(x, ((0, Bp - B), (0, T_pad - T_out), (0, 0)))
    x_tm = jnp.transpose(x, (1, 0, 2))                                 # [T_pad, Bp, E]

    # ---- weight packing: transpose, lane-pad gates, pre-sum biases ---------
    w0 = _pack_w(params[0][0], H, Hp, E, compute_dtype)                # (E, 4Hp)
    b0 = _pack_b(params[0][2], params[0][3], H, Hp)                    # (1, 4Hp)
    whh_packed = [_pack_w(params[l][1], H, Hp, Hp, compute_dtype) for l in range(L)]
    wih_packed = [_pack_w(params[l][0], H, Hp, Hp, compute_dtype) for l in range(1, L)]
    b_packed = [_pack_b(params[l][2], params[l][3], H, Hp) for l in range(1, L)]

    # ---- hoisted layer-0 input projection: one (T*B, E) x (E, 4Hp) GEMM ----
    xp = jnp.dot(x_tm.reshape(T_pad * Bp, E).astype(compute_dtype), w0,
                 preferred_element_type=jnp.float32) + b0
    x_proj = xp.reshape(T_pad, Bp, 4 * Hp)                             # f32

    # lens: padded batch rows get length 0 (stay frozen at zero state)
    lens = jnp.zeros((Bp, 1), jnp.int32).at[:B, 0].set(
        jnp.asarray(sequence_length, jnp.int32))

    const_w = lambda b, t: (0, 0)
    in_specs = [
        pl.BlockSpec((Bb, 1), lambda b, t: (b, 0)),                    # lens
        pl.BlockSpec((TT, Bb, 4 * Hp), lambda b, t: (t, b, 0)),        # x_proj block
    ]
    # Constant-index weights/biases: single-buffered (no wasted 2x VMEM).
    in_specs += [pl.BlockSpec((Hp, 4 * Hp), const_w, pipeline_mode=pl.Buffered(1))
                 for _ in whh_packed]
    in_specs += [pl.BlockSpec((Hp, 4 * Hp), const_w, pipeline_mode=pl.Buffered(1))
                 for _ in wih_packed]
    in_specs += [pl.BlockSpec((1, 4 * Hp), const_w, pipeline_mode=pl.Buffered(1))
                 for _ in b_packed]

    out_specs = [
        pl.BlockSpec((TT, Bb, Hp), lambda b, t: (t, b, 0)),            # out (per block)
        pl.BlockSpec((L, Bb, Hp), lambda b, t: (0, b, 0)),             # hn (written at last t)
        pl.BlockSpec((L, Bb, Hp), lambda b, t: (0, b, 0)),             # cn (written at last t)
    ]
    out_shape = (
        jax.ShapeDtypeStruct((T_pad, Bp, Hp), jnp.float32),
        jax.ShapeDtypeStruct((L, Bp, Hp), jnp.float32),
        jax.ShapeDtypeStruct((L, Bp, Hp), jnp.float32),
    )
    scratch_shapes = [
        pltpu.VMEM((TT, Bb, 4 * Hp), jnp.float32),                     # per-block gate proj
        pltpu.VMEM((TT, Bb, Hp), jnp.float32),                         # inter-layer hiddens
        pltpu.VMEM((L, Bb, Hp), jnp.float32),                          # running h state
        pltpu.VMEM((L, Bb, Hp), jnp.float32),                          # running c state
    ]

    # Advisory cost estimate so XLA schedules the hoisted GEMM around the
    # long-running sequential kernel sensibly.
    wbytes = sum(int(np.prod(w.shape)) * w.dtype.itemsize
                 for w in whh_packed + wih_packed)
    bbytes = sum(int(np.prod(b.shape)) * 4 for b in b_packed)
    cost = pl.CostEstimate(
        flops=int(2 * T_pad * Bp * Hp * (4 * Hp) * (2 * L - 1)),
        transcendentals=int(5 * T_pad * Bp * Hp * L),
        bytes_accessed=int(T_pad * Bp * 4 * Hp * 4 + T_pad * Bp * Hp * 4
                           + 2 * L * Bp * Hp * 4 + wbytes + bbytes + Bp * 4),
    )

    kernel = functools.partial(_lstm_kernel, L, TT, Bb, Hp)
    out_tm, hn, cn = pl.pallas_call(
        kernel,
        out_shape=out_shape,
        grid_spec=pltpu.PrefetchScalarGridSpec(
            num_scalar_prefetch=0,
            grid=(batch_blocks, n_tblk),               # batch parallel, time sequential
            in_specs=in_specs,
            out_specs=out_specs,
            scratch_shapes=scratch_shapes,
        ),
        compiler_params=pltpu.CompilerParams(
            dimension_semantics=("parallel", "arbitrary"),
            vmem_limit_bytes=vmem_limit_bytes),
        cost_estimate=cost,
    )(lens, x_proj, *whh_packed, *wih_packed, *b_packed)

    prem_out = jnp.transpose(out_tm, (1, 0, 2))[:B, :T_out, :H]        # batch_first
    return prem_out, hn[:, :B, :H], cn[:, :B, :H]


# --------------------------------------------------------------------------- #
# Pure-JAX reference (same forward semantics)
# --------------------------------------------------------------------------- #
def encoder1_reference(prem_batch, sequence_length, embeddings, params,
                       hidden_size, num_layers):
    H, L = hidden_size, num_layers
    x = jnp.take(embeddings, prem_batch, axis=0)
    B = x.shape[0]
    T_out = int(np.asarray(sequence_length).max())
    lens = jnp.asarray(sequence_length, jnp.int32)
    h = jnp.zeros((L, B, H), jnp.float32)
    c = jnp.zeros((L, B, H), jnp.float32)
    outs = []
    for t in range(T_out):
        mask = (t < lens)[:, None]
        x_in = x[:, t, :]
        h_list, c_list = [], []
        for l in range(L):
            w_ih, w_hh, b_ih, b_hh = params[l]
            gates = x_in @ w_ih.T + h[l] @ w_hh.T + b_ih + b_hh
            i_g = jax.nn.sigmoid(gates[:, :H])
            f_g = jax.nn.sigmoid(gates[:, H:2 * H])
            g_g = jnp.tanh(gates[:, 2 * H:3 * H])
            o_g = jax.nn.sigmoid(gates[:, 3 * H:4 * H])
            c_new = f_g * c[l] + i_g * g_g
            h_new = o_g * jnp.tanh(c_new)
            c_list.append(jnp.where(mask, c_new, c[l]))
            h_list.append(jnp.where(mask, h_new, h[l]))
            x_in = h_new
        h = jnp.stack(h_list)
        c = jnp.stack(c_list)
        outs.append(jnp.where(mask, x_in, 0.0))
    return jnp.stack(outs, axis=1), h, c


# --------------------------------------------------------------------------- #
# Demo / correctness check
# --------------------------------------------------------------------------- #
if __name__ == "__main__":
    VOCAB, EMB, HIDDEN, LAYERS = 20, 16, 32, 2
    B, T_IN = 2, 8

    key = jax.random.PRNGKey(0)
    k_emb, k_tok, k_tok2, *k_w = jax.random.split(key, 3 + LAYERS)

    embeddings = jax.random.normal(k_emb, (VOCAB, EMB), jnp.float32)
    prem_batch = jax.random.randint(k_tok, (B, T_IN), 0, VOCAB, jnp.int32)
    sequence_length = jnp.array([T_IN, 5], jnp.int32)

    # deterministic PyTorch-style LSTM init: U(-1/sqrt(H), 1/sqrt(H))
    bound = 1.0 / np.sqrt(HIDDEN)
    params = []
    for l in range(LAYERS):
        in_size = EMB if l == 0 else HIDDEN
        ks = jax.random.split(k_w[l], 4)
        w_ih = jax.random.uniform(ks[0], (4 * HIDDEN, in_size), jnp.float32, -bound, bound)
        w_hh = jax.random.uniform(ks[1], (4 * HIDDEN, HIDDEN), jnp.float32, -bound, bound)
        b_ih = jax.random.uniform(ks[2], (1, 4 * HIDDEN), jnp.float32, -bound, bound)
        b_hh = jax.random.uniform(ks[3], (1, 4 * HIDDEN), jnp.float32, -bound, bound)
        params.append((w_ih, w_hh, b_ih, b_hh))

    ref_out, ref_hn, ref_cn = encoder1_reference(
        prem_batch, sequence_length, embeddings, params, HIDDEN, LAYERS)

    # 1) f32 compute path: strict check
    prem_out, prem_hn, prem_cn = encoder1_forward(
        prem_batch, sequence_length, embeddings, params, HIDDEN, LAYERS,
        compute_dtype=jnp.float32, time_block=8, batch_blocks=1)
    jax.block_until_ready((prem_out, prem_hn, prem_cn))
    np.testing.assert_allclose(np.asarray(prem_out), np.asarray(ref_out), rtol=1e-4, atol=1e-4)
    np.testing.assert_allclose(np.asarray(prem_hn), np.asarray(ref_hn), rtol=1e-4, atol=1e-4)
    np.testing.assert_allclose(np.asarray(prem_cn), np.asarray(ref_cn), rtol=1e-4, atol=1e-4)

    # 2) bf16 matmul-operand path (v6e/v7x MXU): loose check, f32 gate math & state
    bf_out, bf_hn, bf_cn = encoder1_forward(
        prem_batch, sequence_length, embeddings, params, HIDDEN, LAYERS,
        compute_dtype=jnp.bfloat16, time_block=8, batch_blocks=1)
    jax.block_until_ready((bf_out, bf_hn, bf_cn))
    np.testing.assert_allclose(np.asarray(bf_out), np.asarray(ref_out), rtol=0, atol=5e-2)
    np.testing.assert_allclose(np.asarray(bf_hn), np.asarray(ref_hn), rtol=0, atol=5e-2)
    np.testing.assert_allclose(np.asarray(bf_cn), np.asarray(ref_cn), rtol=0, atol=5e-2)

    # 3) parallel batch-split grid axis (v7x 2-TC path), f32 strict, larger batch
    B2 = 16
    prem_batch2 = jax.random.randint(k_tok2, (B2, T_IN), 0, VOCAB, jnp.int32)
    seq_len2 = jnp.array([8, 5, 3, 8, 1, 7, 2, 6, 8, 4, 5, 3, 7, 2, 8, 1], jnp.int32)
    ref2_out, ref2_hn, ref2_cn = encoder1_reference(
        prem_batch2, seq_len2, embeddings, params, HIDDEN, LAYERS)
    p2_out, p2_hn, p2_cn = encoder1_forward(
        prem_batch2, seq_len2, embeddings, params, HIDDEN, LAYERS,
        compute_dtype=jnp.float32, time_block=8, batch_blocks=2)
    jax.block_until_ready((p2_out, p2_hn, p2_cn))
    np.testing.assert_allclose(np.asarray(p2_out), np.asarray(ref2_out), rtol=1e-4, atol=1e-4)
    np.testing.assert_allclose(np.asarray(p2_hn), np.asarray(ref2_hn), rtol=1e-4, atol=1e-4)
    np.testing.assert_allclose(np.asarray(p2_cn), np.asarray(ref2_cn), rtol=1e-4, atol=1e-4)

    print("KERNEL_OK")
</pallas_src>

<mosaic_0001>
module attributes {stable_mosaic.version = 11 : i64} {
  func.func @_lstm_kernel(%arg0: i32, %arg1: i32, %arg2: memref<8x1xi32, #tpu.memory_space<vmem>>, %arg3: memref<8x8x512xf32, #tpu.memory_space<vmem>>, %arg4: memref<128x512xf32, #tpu.memory_space<vmem>>, %arg5: memref<128x512xf32, #tpu.memory_space<vmem>>, %arg6: memref<128x512xf32, #tpu.memory_space<vmem>>, %arg7: memref<1x512xf32, #tpu.memory_space<vmem>>, %arg8: memref<8x8x128xf32, #tpu.memory_space<vmem>>, %arg9: memref<2x8x128xf32, #tpu.memory_space<vmem>>, %arg10: memref<2x8x128xf32, #tpu.memory_space<vmem>>, %arg11: memref<8x8x512xf32, #tpu.memory_space<vmem>>, %arg12: memref<8x8x128xf32, #tpu.memory_space<vmem>>, %arg13: memref<2x8x128xf32, #tpu.memory_space<vmem>>, %arg14: memref<2x8x128xf32, #tpu.memory_space<vmem>>) attributes {dimension_semantics = [#tpu.dimension_semantics<parallel>, #tpu.dimension_semantics<arbitrary>], iteration_bounds = array<i64: 1, 1>, scalar_prefetch = 0 : i64, scratch_operands = 4 : i64, tpu.core_type = #tpu.core_type<tc>, window_params = [{transform_indices = @transform_0, window_bounds = array<i64: 8, 1>}, {transform_indices = @transform_1, window_bounds = array<i64: 8, 8, 512>}, {pipeline_mode = #tpu.pipeline_mode<synchronous>, transform_indices = @transform_2, window_bounds = array<i64: 128, 512>}, {pipeline_mode = #tpu.pipeline_mode<synchronous>, transform_indices = @transform_3, window_bounds = array<i64: 128, 512>}, {pipeline_mode = #tpu.pipeline_mode<synchronous>, transform_indices = @transform_4, window_bounds = array<i64: 128, 512>}, {pipeline_mode = #tpu.pipeline_mode<synchronous>, transform_indices = @transform_5, window_bounds = array<i64: 1, 512>}, {transform_indices = @transform_6, window_bounds = array<i64: 8, 8, 128>}, {transform_indices = @transform_7, window_bounds = array<i64: 2, 8, 128>}, {transform_indices = @transform_8, window_bounds = array<i64: 2, 8, 128>}]} {
    %c8_i32 = arith.constant 8 : i32
    %0 = arith.muli %arg1, %c8_i32 : i32
    %c0_i32 = arith.constant 0 : i32
    %1 = arith.cmpi eq, %arg1, %c0_i32 : i32
    %2 = arith.extui %1 : i1 to i32
    %c0_i32_0 = arith.constant 0 : i32
    %3 = arith.cmpi ne, %2, %c0_i32_0 : i32
    scf.if %3 {
      %cst_204 = arith.constant 0.000000e+00 : f32
      %704 = vector.broadcast %cst_204 : f32 to vector<2x8x128xf32>
      %c0_205 = arith.constant 0 : index
      %c0_206 = arith.constant 0 : index
      %c0_207 = arith.constant 0 : index
      %705 = vector.load %arg13[%c0_205, %c0_206, %c0_207] : memref<2x8x128xf32, #tpu.memory_space<vmem>>, vector<2x8x128xf32>
      tpu.vector_store %arg13[%c0_205, %c0_206, %c0_207], %704 {strides = array<i32>} : memref<2x8x128xf32, #tpu.memory_space<vmem>>, vector<2x8x128xf32>,
      %cst_208 = arith.constant 0.000000e+00 : f32
      %706 = vector.broadcast %cst_208 : f32 to vector<2x8x128xf32>
      %c0_209 = arith.constant 0 : index
      %c0_210 = arith.constant 0 : index
      %c0_211 = arith.constant 0 : index
      %707 = vector.load %arg14[%c0_209, %c0_210, %c0_211] : memref<2x8x128xf32, #tpu.memory_space<vmem>>, vector<2x8x128xf32>
      tpu.vector_store %arg14[%c0_209, %c0_210, %c0_211], %706 {strides = array<i32>} : memref<2x8x128xf32, #tpu.memory_space<vmem>>, vector<2x8x128xf32>,
    } else {
    }
    %c0 = arith.constant 0 : index
    %c0_1 = arith.constant 0 : index
    %4 = vector.load %arg2[%c0, %c0_1] : memref<8x1xi32, #tpu.memory_space<vmem>>, vector<8x1xi32>
    %c0_i32_2 = arith.constant 0 : i32
    %5 = arith.addi %0, %c0_i32_2 : i32
    %6 = vector.broadcast %5 : i32 to vector<8x1xi32>
    %7 = arith.cmpi slt, %6, %4 : vector<8x1xi32>
    %c1_i32 = arith.constant 1 : i32
    %8 = arith.addi %0, %c1_i32 : i32
    %9 = vector.broadcast %8 : i32 to vector<8x1xi32>
    %10 = arith.cmpi slt, %9, %4 : vector<8x1xi32>
    %c2_i32 = arith.constant 2 : i32
    %11 = arith.addi %0, %c2_i32 : i32
    %12 = vector.broadcast %11 : i32 to vector<8x1xi32>
    %13 = arith.cmpi slt, %12, %4 : vector<8x1xi32>
    %c3_i32 = arith.constant 3 : i32
    %14 = arith.addi %0, %c3_i32 : i32
    %15 = vector.broadcast %14 : i32 to vector<8x1xi32>
    %16 = arith.cmpi slt, %15, %4 : vector<8x1xi32>
    %c4_i32 = arith.constant 4 : i32
    %17 = arith.addi %0, %c4_i32 : i32
    %18 = vector.broadcast %17 : i32 to vector<8x1xi32>
    %19 = arith.cmpi slt, %18, %4 : vector<8x1xi32>
    %c5_i32 = arith.constant 5 : i32
    %20 = arith.addi %0, %c5_i32 : i32
    %21 = vector.broadcast %20 : i32 to vector<8x1xi32>
    %22 = arith.cmpi slt, %21, %4 : vector<8x1xi32>
    %c6_i32 = arith.constant 6 : i32
    %23 = arith.addi %0, %c6_i32 : i32
    %24 = vector.broadcast %23 : i32 to vector<8x1xi32>
    %25 = arith.cmpi slt, %24, %4 : vector<8x1xi32>
    %c7_i32 = arith.constant 7 : i32
    %26 = arith.addi %0, %c7_i32 : i32
    %27 = vector.broadcast %26 : i32 to vector<8x1xi32>
    %28 = arith.cmpi slt, %27, %4 : vector<8x1xi32>
    %c0_3 = arith.constant 0 : index
    %c0_4 = arith.constant 0 : index
    %29 = vector.load %arg4[%c0_3, %c0_4] : memref<128x512xf32, #tpu.memory_space<vmem>>, vector<128x512xf32>
    %c0_5 = arith.constant 0 : index
    %c0_6 = arith.constant 0 : index
    %c0_7 = arith.constant 0 : index
    %30 = vector.load %arg13[%c0_5, %c0_6, %c0_7] : memref<2x8x128xf32, #tpu.memory_space<vmem>>, vector<1x8x128xf32>
    %31 = vector.shape_cast %30 : vector<1x8x128xf32> to vector<8x128xf32>
    %c0_8 = arith.constant 0 : index
    %c0_9 = arith.constant 0 : index
    %c0_10 = arith.constant 0 : index
    %32 = vector.load %arg14[%c0_8, %c0_9, %c0_10] : memref<2x8x128xf32, #tpu.memory_space<vmem>>, vector<1x8x128xf32>
    %33 = vector.shape_cast %32 : vector<1x8x128xf32> to vector<8x128xf32>
    %c0_11 = arith.constant 0 : index
    %c0_12 = arith.constant 0 : index
    %c0_13 = arith.constant 0 : index
    %34 = vector.load %arg3[%c0_11, %c0_12, %c0_13] : memref<8x8x512xf32, #tpu.memory_space<vmem>>, vector<1x8x512xf32>
    %35 = vector.shape_cast %34 : vector<1x8x512xf32> to vector<8x512xf32>
    %cst = arith.constant dense<0.000000e+00> : vector<8x512xf32>
    %36 = tpu.matmul %31, %29, %cst {dimension_numbers = #tpu.dot_dimension_numbers<[1], [0], [0], [1], [0, 0, 1, 1], [], []>} : vector<8x128xf32>, vector<128x512xf32>, vector<8x512xf32> -> vector<8x512xf32>
    %37 = arith.addf %35, %36 : vector<8x512xf32>
    %38 = vector.extract_strided_slice %37 {offsets = [0, 0], sizes = [8, 128], strides = [1, 1]} : vector<8x512xf32> to vector<8x128xf32>
    %39 = arith.negf %38 : vector<8x128xf32>
    %40 = math.exp %39 : vector<8x128xf32>
    %cst_14 = arith.constant 1.000000e+00 : f32
    %41 = vector.broadcast %cst_14 : f32 to vector<8x128xf32>
    %42 = arith.addf %41, %40 : vector<8x128xf32>
    %43 = arith.divf %41, %42 : vector<8x128xf32>
    %44 = vector.extract_strided_slice %37 {offsets = [0, 128], sizes = [8, 128], strides = [1, 1]} : vector<8x512xf32> to vector<8x128xf32>
    %45 = arith.negf %44 : vector<8x128xf32>
    %46 = math.exp %45 : vector<8x128xf32>
    %cst_15 = arith.constant 1.000000e+00 : f32
    %47 = vector.broadcast %cst_15 : f32 to vector<8x128xf32>
    %48 = arith.addf %47, %46 : vector<8x128xf32>
    %49 = arith.divf %47, %48 : vector<8x128xf32>
    %50 = vector.extract_strided_slice %37 {offsets = [0, 256], sizes = [8, 128], strides = [1, 1]} : vector<8x512xf32> to vector<8x128xf32>
    %51 = math.tanh %50 : vector<8x128xf32>
    %52 = vector.extract_strided_slice %37 {offsets = [0, 384], sizes = [8, 128], strides = [1, 1]} : vector<8x512xf32> to vector<8x128xf32>
    %53 = arith.negf %52 : vector<8x128xf32>
    %54 = math.exp %53 : vector<8x128xf32>
    %cst_16 = arith.constant 1.000000e+00 : f32
    %55 = vector.broadcast %cst_16 : f32 to vector<8x128xf32>
    %56 = arith.addf %55, %54 : vector<8x128xf32>
    %57 = arith.divf %55, %56 : vector<8x128xf32>
    %58 = arith.mulf %49, %33 : vector<8x128xf32>
    %59 = arith.mulf %43, %51 : vector<8x128xf32>
    %60 = arith.addf %58, %59 : vector<8x128xf32>
    %61 = math.tanh %60 : vector<8x128xf32>
    %62 = arith.mulf %57, %61 : vector<8x128xf32>
    %63 = vector.shape_cast %7 : vector<8x1xi1> to vector<8x1xi1>
    %64 = vector.broadcast %63 : vector<8x1xi1> to vector<8x128xi1>
    %65 = arith.select %64, %60, %33 : vector<8x128xi1>, vector<8x128xf32>
    %66 = vector.shape_cast %7 : vector<8x1xi1> to vector<8x1xi1>
    %67 = vector.broadcast %66 : vector<8x1xi1> to vector<8x128xi1>
    %68 = arith.select %67, %62, %31 : vector<8x128xi1>, vector<8x128xf32>
    %c0_17 = arith.constant 0 : index
    %c0_18 = arith.constant 0 : index
    %c0_19 = arith.constant 0 : index
    %69 = vector.load %arg12[%c0_17, %c0_18, %c0_19] : memref<8x8x128xf32, #tpu.memory_space<vmem>>, vector<1x8x128xf32>
    %70 = vector.shape_cast %69 : vector<1x8x128xf32> to vector<8x128xf32>
    %71 = vector.shape_cast %62 : vector<8x128xf32> to vector<1x8x128xf32>
    tpu.vector_store %arg12[%c0_17, %c0_18, %c0_19], %71 {strides = array<i32>} : memref<8x8x128xf32, #tpu.memory_space<vmem>>, vector<1x8x128xf32>,
    %c1 = arith.constant 1 : index
    %c0_20 = arith.constant 0 : index
    %c0_21 = arith.constant 0 : index
    %72 = vector.load %arg3[%c1, %c0_20, %c0_21] : memref<8x8x512xf32, #tpu.memory_space<vmem>>, vector<1x8x512xf32>
    %73 = vector.shape_cast %72 : vector<1x8x512xf32> to vector<8x512xf32>
    %cst_22 = arith.constant dense<0.000000e+00> : vector<8x512xf32>
    %74 = tpu.matmul %68, %29, %cst_22 {dimension_numbers = #tpu.dot_dimension_numbers<[1], [0], [0], [1], [0, 0, 1, 1], [], []>} : vector<8x128xf32>, vector<128x512xf32>, vector<8x512xf32> -> vector<8x512xf32>
    %75 = arith.addf %73, %74 : vector<8x512xf32>
    %76 = vector.extract_strided_slice %75 {offsets = [0, 0], sizes = [8, 128], strides = [1, 1]} : vector<8x512xf32> to vector<8x128xf32>
    %77 = arith.negf %76 : vector<8x128xf32>
    %78 = math.exp %77 : vector<8x128xf32>
    %cst_23 = arith.constant 1.000000e+00 : f32
    %79 = vector.broadcast %cst_23 : f32 to vector<8x128xf32>
    %80 = arith.addf %79, %78 : vector<8x128xf32>
    %81 = arith.divf %79, %80 : vector<8x128xf32>
    %82 = vector.extract_strided_slice %75 {offsets = [0, 128], sizes = [8, 128], strides = [1, 1]} : vector<8x512xf32> to vector<8x128xf32>
    %83 = arith.negf %82 : vector<8x128xf32>
    %84 = math.exp %83 : vector<8x128xf32>
    %cst_24 = arith.constant 1.000000e+00 : f32
    %85 = vector.broadcast %cst_24 : f32 to vector<8x128xf32>
    %86 = arith.addf %85, %84 : vector<8x128xf32>
    %87 = arith.divf %85, %86 : vector<8x128xf32>
    %88 = vector.extract_strided_slice %75 {offsets = [0, 256], sizes = [8, 128], strides = [1, 1]} : vector<8x512xf32> to vector<8x128xf32>
    %89 = math.tanh %88 : vector<8x128xf32>
    %90 = vector.extract_strided_slice %75 {offsets = [0, 384], sizes = [8, 128], strides = [1, 1]} : vector<8x512xf32> to vector<8x128xf32>
    %91 = arith.negf %90 : vector<8x128xf32>
    %92 = math.exp %91 : vector<8x128xf32>
    %cst_25 = arith.constant 1.000000e+00 : f32
    %93 = vector.broadcast %cst_25 : f32 to vector<8x128xf32>
    %94 = arith.addf %93, %92 : vector<8x128xf32>
    %95 = arith.divf %93, %94 : vector<8x128xf32>
    %96 = arith.mulf %87, %65 : vector<8x128xf32>
    %97 = arith.mulf %81, %89 : vector<8x128xf32>
    %98 = arith.addf %96, %97 : vector<8x128xf32>
    %99 = math.tanh %98 : vector<8x128xf32>
    %100 = arith.mulf %95, %99 : vector<8x128xf32>
    %101 = vector.shape_cast %10 : vector<8x1xi1> to vector<8x1xi1>
    %102 = vector.broadcast %101 : vector<8x1xi1> to vector<8x128xi1>
    %103 = arith.select %102, %98, %65 : vector<8x128xi1>, vector<8x128xf32>
    %104 = vector.shape_cast %10 : vector<8x1xi1> to vector<8x1xi1>
    %105 = vector.broadcast %104 : vector<8x1xi1> to vector<8x128xi1>
    %106 = arith.select %105, %100, %68 : vector<8x128xi1>, vector<8x128xf32>
    %c1_26 = arith.constant 1 : index
    %c0_27 = arith.constant 0 : index
    %c0_28 = arith.constant 0 : index
    %107 = vector.load %arg12[%c1_26, %c0_27, %c0_28] : memref<8x8x128xf32, #tpu.memory_space<vmem>>, vector<1x8x128xf32>
    %108 = vector.shape_cast %107 : vector<1x8x128xf32> to vector<8x128xf32>
    %109 = vector.shape_cast %100 : vector<8x128xf32> to vector<1x8x128xf32>
    tpu.vector_store %arg12[%c1_26, %c0_27, %c0_28], %109 {strides = array<i32>} : memref<8x8x128xf32, #tpu.memory_space<vmem>>, vector<1x8x128xf32>,
    %c2 = arith.constant 2 : index
    %c0_29 = arith.constant 0 : index
    %c0_30 = arith.constant 0 : index
    %110 = vector.load %arg3[%c2, %c0_29, %c0_30] : memref<8x8x512xf32, #tpu.memory_space<vmem>>, vector<1x8x512xf32>
    %111 = vector.shape_cast %110 : vector<1x8x512xf32> to vector<8x512xf32>
    %cst_31 = arith.constant dense<0.000000e+00> : vector<8x512xf32>
    %112 = tpu.matmul %106, %29, %cst_31 {dimension_numbers = #tpu.dot_dimension_numbers<[1], [0], [0], [1], [0, 0, 1, 1], [], []>} : vector<8x128xf32>, vector<128x512xf32>, vector<8x512xf32> -> vector<8x512xf32>
    %113 = arith.addf %111, %112 : vector<8x512xf32>
    %114 = vector.extract_strided_slice %113 {offsets = [0, 0], sizes = [8, 128], strides = [1, 1]} : vector<8x512xf32> to vector<8x128xf32>
    %115 = arith.negf %114 : vector<8x128xf32>
    %116 = math.exp %115 : vector<8x128xf32>
    %cst_32 = arith.constant 1.000000e+00 : f32
    %117 = vector.broadcast %cst_32 : f32 to vector<8x128xf32>
    %118 = arith.addf %117, %116 : vector<8x128xf32>
    %119 = arith.divf %117, %118 : vector<8x128xf32>
    %120 = vector.extract_strided_slice %113 {offsets = [0, 128], sizes = [8, 128], strides = [1, 1]} : vector<8x512xf32> to vector<8x128xf32>
    %121 = arith.negf %120 : vector<8x128xf32>
    %122 = math.exp %121 : vector<8x128xf32>
    %cst_33 = arith.constant 1.000000e+00 : f32
    %123 = vector.broadcast %cst_33 : f32 to vector<8x128xf32>
    %124 = arith.addf %123, %122 : vector<8x128xf32>
    %125 = arith.divf %123, %124 : vector<8x128xf32>
    %126 = vector.extract_strided_slice %113 {offsets = [0, 256], sizes = [8, 128], strides = [1, 1]} : vector<8x512xf32> to vector<8x128xf32>
    %127 = math.tanh %126 : vector<8x128xf32>
    %128 = vector.extract_strided_slice %113 {offsets = [0, 384], sizes = [8, 128], strides = [1, 1]} : vector<8x512xf32> to vector<8x128xf32>
    %129 = arith.negf %128 : vector<8x128xf32>
    %130 = math.exp %129 : vector<8x128xf32>
    %cst_34 = arith.constant 1.000000e+00 : f32
    %131 = vector.broadcast %cst_34 : f32 to vector<8x128xf32>
    %132 = arith.addf %131, %130 : vector<8x128xf32>
    %133 = arith.divf %131, %132 : vector<8x128xf32>
    %134 = arith.mulf %125, %103 : vector<8x128xf32>
    %135 = arith.mulf %119, %127 : vector<8x128xf32>
    %136 = arith.addf %134, %135 : vector<8x128xf32>
    %137 = math.tanh %136 : vector<8x128xf32>
    %138 = arith.mulf %133, %137 : vector<8x128xf32>
    %139 = vector.shape_cast %13 : vector<8x1xi1> to vector<8x1xi1>
    %140 = vector.broadcast %139 : vector<8x1xi1> to vector<8x128xi1>
    %141 = arith.select %140, %136, %103 : vector<8x128xi1>, vector<8x128xf32>
    %142 = vector.shape_cast %13 : vector<8x1xi1> to vector<8x1xi1>
    %143 = vector.broadcast %142 : vector<8x1xi1> to vector<8x128xi1>
    %144 = arith.select %143, %138, %106 : vector<8x128xi1>, vector<8x128xf32>
    %c2_35 = arith.constant 2 : index
    %c0_36 = arith.constant 0 : index
    %c0_37 = arith.constant 0 : index
    %145 = vector.load %arg12[%c2_35, %c0_36, %c0_37] : memref<8x8x128xf32, #tpu.memory_space<vmem>>, vector<1x8x128xf32>
    %146 = vector.shape_cast %145 : vector<1x8x128xf32> to vector<8x128xf32>
    %147 = vector.shape_cast %138 : vector<8x128xf32> to vector<1x8x128xf32>
    tpu.vector_store %arg12[%c2_35, %c0_36, %c0_37], %147 {strides = array<i32>} : memref<8x8x128xf32, #tpu.memory_space<vmem>>, vector<1x8x128xf32>,
    %c3 = arith.constant 3 : index
    %c0_38 = arith.constant 0 : index
    %c0_39 = arith.constant 0 : index
    %148 = vector.load %arg3[%c3, %c0_38, %c0_39] : memref<8x8x512xf32, #tpu.memory_space<vmem>>, vector<1x8x512xf32>
    %149 = vector.shape_cast %148 : vector<1x8x512xf32> to vector<8x512xf32>
    %cst_40 = arith.constant dense<0.000000e+00> : vector<8x512xf32>
    %150 = tpu.matmul %144, %29, %cst_40 {dimension_numbers = #tpu.dot_dimension_numbers<[1], [0], [0], [1], [0, 0, 1, 1], [], []>} : vector<8x128xf32>, vector<128x512xf32>, vector<8x512xf32> -> vector<8x512xf32>
    %151 = arith.addf %149, %150 : vector<8x512xf32>
    %152 = vector.extract_strided_slice %151 {offsets = [0, 0], sizes = [8, 128], strides = [1, 1]} : vector<8x512xf32> to vector<8x128xf32>
    %153 = arith.negf %152 : vector<8x128xf32>
    %154 = math.exp %153 : vector<8x128xf32>
    %cst_41 = arith.constant 1.000000e+00 : f32
    %155 = vector.broadcast %cst_41 : f32 to vector<8x128xf32>
    %156 = arith.addf %155, %154 : vector<8x128xf32>
    %157 = arith.divf %155, %156 : vector<8x128xf32>
    %158 = vector.extract_strided_slice %151 {offsets = [0, 128], sizes = [8, 128], strides = [1, 1]} : vector<8x512xf32> to vector<8x128xf32>
    %159 = arith.negf %158 : vector<8x128xf32>
    %160 = math.exp %159 : vector<8x128xf32>
    %cst_42 = arith.constant 1.000000e+00 : f32
    %161 = vector.broadcast %cst_42 : f32 to vector<8x128xf32>
    %162 = arith.addf %161, %160 : vector<8x128xf32>
    %163 = arith.divf %161, %162 : vector<8x128xf32>
    %164 = vector.extract_strided_slice %151 {offsets = [0, 256], sizes = [8, 128], strides = [1, 1]} : vector<8x512xf32> to vector<8x128xf32>
    %165 = math.tanh %164 : vector<8x128xf32>
    %166 = vector.extract_strided_slice %151 {offsets = [0, 384], sizes = [8, 128], strides = [1, 1]} : vector<8x512xf32> to vector<8x128xf32>
    %167 = arith.negf %166 : vector<8x128xf32>
    %168 = math.exp %167 : vector<8x128xf32>
    %cst_43 = arith.constant 1.000000e+00 : f32
    %169 = vector.broadcast %cst_43 : f32 to vector<8x128xf32>
    %170 = arith.addf %169, %168 : vector<8x128xf32>
    %171 = arith.divf %169, %170 : vector<8x128xf32>
    %172 = arith.mulf %163, %141 : vector<8x128xf32>
    %173 = arith.mulf %157, %165 : vector<8x128xf32>
    %174 = arith.addf %172, %173 : vector<8x128xf32>
    %175 = math.tanh %174 : vector<8x128xf32>
    %176 = arith.mulf %171, %175 : vector<8x128xf32>
    %177 = vector.shape_cast %16 : vector<8x1xi1> to vector<8x1xi1>
    %178 = vector.broadcast %177 : vector<8x1xi1> to vector<8x128xi1>
    %179 = arith.select %178, %174, %141 : vector<8x128xi1>, vector<8x128xf32>
    %180 = vector.shape_cast %16 : vector<8x1xi1> to vector<8x1xi1>
    %181 = vector.broadcast %180 : vector<8x1xi1> to vector<8x128xi1>
    %182 = arith.select %181, %176, %144 : vector<8x128xi1>, vector<8x128xf32>
    %c3_44 = arith.constant 3 : index
    %c0_45 = arith.constant 0 : index
    %c0_46 = arith.constant 0 : index
    %183 = vector.load %arg12[%c3_44, %c0_45, %c0_46] : memref<8x8x128xf32, #tpu.memory_space<vmem>>, vector<1x8x128xf32>
    %184 = vector.shape_cast %183 : vector<1x8x128xf32> to vector<8x128xf32>
    %185 = vector.shape_cast %176 : vector<8x128xf32> to vector<1x8x128xf32>
    tpu.vector_store %arg12[%c3_44, %c0_45, %c0_46], %185 {strides = array<i32>} : memref<8x8x128xf32, #tpu.memory_space<vmem>>, vector<1x8x128xf32>,
    %c4 = arith.constant 4 : index
    %c0_47 = arith.constant 0 : index
    %c0_48 = arith.constant 0 : index
    %186 = vector.load %arg3[%c4, %c0_47, %c0_48] : memref<8x8x512xf32, #tpu.memory_space<vmem>>, vector<1x8x512xf32>
    %187 = vector.shape_cast %186 : vector<1x8x512xf32> to vector<8x512xf32>
    %cst_49 = arith.constant dense<0.000000e+00> : vector<8x512xf32>
    %188 = tpu.matmul %182, %29, %cst_49 {dimension_numbers = #tpu.dot_dimension_numbers<[1], [0], [0], [1], [0, 0, 1, 1], [], []>} : vector<8x128xf32>, vector<128x512xf32>, vector<8x512xf32> -> vector<8x512xf32>
    %189 = arith.addf %187, %188 : vector<8x512xf32>
    %190 = vector.extract_strided_slice %189 {offsets = [0, 0], sizes = [8, 128], strides = [1, 1]} : vector<8x512xf32> to vector<8x128xf32>
    %191 = arith.negf %190 : vector<8x128xf32>
    %192 = math.exp %191 : vector<8x128xf32>
    %cst_50 = arith.constant 1.000000e+00 : f32
    %193 = vector.broadcast %cst_50 : f32 to vector<8x128xf32>
    %194 = arith.addf %193, %192 : vector<8x128xf32>
    %195 = arith.divf %193, %194 : vector<8x128xf32>
    %196 = vector.extract_strided_slice %189 {offsets = [0, 128], sizes = [8, 128], strides = [1, 1]} : vector<8x512xf32> to vector<8x128xf32>
    %197 = arith.negf %196 : vector<8x128xf32>
    %198 = math.exp %197 : vector<8x128xf32>
    %cst_51 = arith.constant 1.000000e+00 : f32
    %199 = vector.broadcast %cst_51 : f32 to vector<8x128xf32>
    %200 = arith.addf %199, %198 : vector<8x128xf32>
    %201 = arith.divf %199, %200 : vector<8x128xf32>
    %202 = vector.extract_strided_slice %189 {offsets = [0, 256], sizes = [8, 128], strides = [1, 1]} : vector<8x512xf32> to vector<8x128xf32>
    %203 = math.tanh %202 : vector<8x128xf32>
    %204 = vector.extract_strided_slice %189 {offsets = [0, 384], sizes = [8, 128], strides = [1, 1]} : vector<8x512xf32> to vector<8x128xf32>
    %205 = arith.negf %204 : vector<8x128xf32>
    %206 = math.exp %205 : vector<8x128xf32>
    %cst_52 = arith.constant 1.000000e+00 : f32
    %207 = vector.broadcast %cst_52 : f32 to vector<8x128xf32>
    %208 = arith.addf %207, %206 : vector<8x128xf32>
    %209 = arith.divf %207, %208 : vector<8x128xf32>
    %210 = arith.mulf %201, %179 : vector<8x128xf32>
    %211 = arith.mulf %195, %203 : vector<8x128xf32>
    %212 = arith.addf %210, %211 : vector<8x128xf32>
    %213 = math.tanh %212 : vector<8x128xf32>
    %214 = arith.mulf %209, %213 : vector<8x128xf32>
    %215 = vector.shape_cast %19 : vector<8x1xi1> to vector<8x1xi1>
    %216 = vector.broadcast %215 : vector<8x1xi1> to vector<8x128xi1>
    %217 = arith.select %216, %212, %179 : vector<8x128xi1>, vector<8x128xf32>
    %218 = vector.shape_cast %19 : vector<8x1xi1> to vector<8x1xi1>
    %219 = vector.broadcast %218 : vector<8x1xi1> to vector<8x128xi1>
    %220 = arith.select %219, %214, %182 : vector<8x128xi1>, vector<8x128xf32>
    %c4_53 = arith.constant 4 : index
    %c0_54 = arith.constant 0 : index
    %c0_55 = arith.constant 0 : index
    %221 = vector.load %arg12[%c4_53, %c0_54, %c0_55] : memref<8x8x128xf32, #tpu.memory_space<vmem>>, vector<1x8x128xf32>
    %222 = vector.shape_cast %221 : vector<1x8x128xf32> to vector<8x128xf32>
    %223 = vector.shape_cast %214 : vector<8x128xf32> to vector<1x8x128xf32>
    tpu.vector_store %arg12[%c4_53, %c0_54, %c0_55], %223 {strides = array<i32>} : memref<8x8x128xf32, #tpu.memory_space<vmem>>, vector<1x8x128xf32>,
    %c5 = arith.constant 5 : index
    %c0_56 = arith.constant 0 : index
    %c0_57 = arith.constant 0 : index
    %224 = vector.load %arg3[%c5, %c0_56, %c0_57] : memref<8x8x512xf32, #tpu.memory_space<vmem>>, vector<1x8x512xf32>
    %225 = vector.shape_cast %224 : vector<1x8x512xf32> to vector<8x512xf32>
    %cst_58 = arith.constant dense<0.000000e+00> : vector<8x512xf32>
    %226 = tpu.matmul %220, %29, %cst_58 {dimension_numbers = #tpu.dot_dimension_numbers<[1], [0], [0], [1], [0, 0, 1, 1], [], []>} : vector<8x128xf32>, vector<128x512xf32>, vector<8x512xf32> -> vector<8x512xf32>
    %227 = arith.addf %225, %226 : vector<8x512xf32>
    %228 = vector.extract_strided_slice %227 {offsets = [0, 0], sizes = [8, 128], strides = [1, 1]} : vector<8x512xf32> to vector<8x128xf32>
    %229 = arith.negf %228 : vector<8x128xf32>
    %230 = math.exp %229 : vector<8x128xf32>
    %cst_59 = arith.constant 1.000000e+00 : f32
    %231 = vector.broadcast %cst_59 : f32 to vector<8x128xf32>
    %232 = arith.addf %231, %230 : vector<8x128xf32>
    %233 = arith.divf %231, %232 : vector<8x128xf32>
    %234 = vector.extract_strided_slice %227 {offsets = [0, 128], sizes = [8, 128], strides = [1, 1]} : vector<8x512xf32> to vector<8x128xf32>
    %235 = arith.negf %234 : vector<8x128xf32>
    %236 = math.exp %235 : vector<8x128xf32>
    %cst_60 = arith.constant 1.000000e+00 : f32
    %237 = vector.broadcast %cst_60 : f32 to vector<8x128xf32>
    %238 = arith.addf %237, %236 : vector<8x128xf32>
    %239 = arith.divf %237, %238 : vector<8x128xf32>
    %240 = vector.extract_strided_slice %227 {offsets = [0, 256], sizes = [8, 128], strides = [1, 1]} : vector<8x512xf32> to vector<8x128xf32>
    %241 = math.tanh %240 : vector<8x128xf32>
    %242 = vector.extract_strided_slice %227 {offsets = [0, 384], sizes = [8, 128], strides = [1, 1]} : vector<8x512xf32> to vector<8x128xf32>
    %243 = arith.negf %242 : vector<8x128xf32>
    %244 = math.exp %243 : vector<8x128xf32>
    %cst_61 = arith.constant 1.000000e+00 : f32
    %245 = vector.broadcast %cst_61 : f32 to vector<8x128xf32>
    %246 = arith.addf %245, %244 : vector<8x128xf32>
    %247 = arith.divf %245, %246 : vector<8x128xf32>
    %248 = arith.mulf %239, %217 : vector<8x128xf32>
    %249 = arith.mulf %233, %241 : vector<8x128xf32>
    %250 = arith.addf %248, %249 : vector<8x128xf32>
    %251 = math.tanh %250 : vector<8x128xf32>
    %252 = arith.mulf %247, %251 : vector<8x128xf32>
    %253 = vector.shape_cast %22 : vector<8x1xi1> to vector<8x1xi1>
    %254 = vector.broadcast %253 : vector<8x1xi1> to vector<8x128xi1>
    %255 = arith.select %254, %250, %217 : vector<8x128xi1>, vector<8x128xf32>
    %256 = vector.shape_cast %22 : vector<8x1xi1> to vector<8x1xi1>
    %257 = vector.broadcast %256 : vector<8x1xi1> to vector<8x128xi1>
    %258 = arith.select %257, %252, %220 : vector<8x128xi1>, vector<8x128xf32>
    %c5_62 = arith.constant 5 : index
    %c0_63 = arith.constant 0 : index
    %c0_64 = arith.constant 0 : index
    %259 = vector.load %arg12[%c5_62, %c0_63, %c0_64] : memref<8x8x128xf32, #tpu.memory_space<vmem>>, vector<1x8x128xf32>
    %260 = vector.shape_cast %259 : vector<1x8x128xf32> to vector<8x128xf32>
    %261 = vector.shape_cast %252 : vector<8x128xf32> to vector<1x8x128xf32>
    tpu.vector_store %arg12[%c5_62, %c0_63, %c0_64], %261 {strides = array<i32>} : memref<8x8x128xf32, #tpu.memory_space<vmem>>, vector<1x8x128xf32>,
    %c6 = arith.constant 6 : index
    %c0_65 = arith.constant 0 : index
    %c0_66 = arith.constant 0 : index
    %262 = vector.load %arg3[%c6, %c0_65, %c0_66] : memref<8x8x512xf32, #tpu.memory_space<vmem>>, vector<1x8x512xf32>
    %263 = vector.shape_cast %262 : vector<1x8x512xf32> to vector<8x512xf32>
    %cst_67 = arith.constant dense<0.000000e+00> : vector<8x512xf32>
    %264 = tpu.matmul %258, %29, %cst_67 {dimension_numbers = #tpu.dot_dimension_numbers<[1], [0], [0], [1], [0, 0, 1, 1], [], []>} : vector<8x128xf32>, vector<128x512xf32>, vector<8x512xf32> -> vector<8x512xf32>
    %265 = arith.addf %263, %264 : vector<8x512xf32>
    %266 = vector.extract_strided_slice %265 {offsets = [0, 0], sizes = [8, 128], strides = [1, 1]} : vector<8x512xf32> to vector<8x128xf32>
    %267 = arith.negf %266 : vector<8x128xf32>
    %268 = math.exp %267 : vector<8x128xf32>
    %cst_68 = arith.constant 1.000000e+00 : f32
    %269 = vector.broadcast %cst_68 : f32 to vector<8x128xf32>
    %270 = arith.addf %269, %268 : vector<8x128xf32>
    %271 = arith.divf %269, %270 : vector<8x128xf32>
    %272 = vector.extract_strided_slice %265 {offsets = [0, 128], sizes = [8, 128], strides = [1, 1]} : vector<8x512xf32> to vector<8x128xf32>
    %273 = arith.negf %272 : vector<8x128xf32>
    %274 = math.exp %273 : vector<8x128xf32>
    %cst_69 = arith.constant 1.000000e+00 : f32
    %275 = vector.broadcast %cst_69 : f32 to vector<8x128xf32>
    %276 = arith.addf %275, %274 : vector<8x128xf32>
    %277 = arith.divf %275, %276 : vector<8x128xf32>
    %278 = vector.extract_strided_slice %265 {offsets = [0, 256], sizes = [8, 128], strides = [1, 1]} : vector<8x512xf32> to vector<8x128xf32>
    %279 = math.tanh %278 : vector<8x128xf32>
    %280 = vector.extract_strided_slice %265 {offsets = [0, 384], sizes = [8, 128], strides = [1, 1]} : vector<8x512xf32> to vector<8x128xf32>
    %281 = arith.negf %280 : vector<8x128xf32>
    %282 = math.exp %281 : vector<8x128xf32>
    %cst_70 = arith.constant 1.000000e+00 : f32
    %283 = vector.broadcast %cst_70 : f32 to vector<8x128xf32>
    %284 = arith.addf %283, %282 : vector<8x128xf32>
    %285 = arith.divf %283, %284 : vector<8x128xf32>
    %286 = arith.mulf %277, %255 : vector<8x128xf32>
    %287 = arith.mulf %271, %279 : vector<8x128xf32>
    %288 = arith.addf %286, %287 : vector<8x128xf32>
    %289 = math.tanh %288 : vector<8x128xf32>
    %290 = arith.mulf %285, %289 : vector<8x128xf32>
    %291 = vector.shape_cast %25 : vector<8x1xi1> to vector<8x1xi1>
    %292 = vector.broadcast %291 : vector<8x1xi1> to vector<8x128xi1>
    %293 = arith.select %292, %288, %255 : vector<8x128xi1>, vector<8x128xf32>
    %294 = vector.shape_cast %25 : vector<8x1xi1> to vector<8x1xi1>
    %295 = vector.broadcast %294 : vector<8x1xi1> to vector<8x128xi1>
    %296 = arith.select %295, %290, %258 : vector<8x128xi1>, vector<8x128xf32>
    %c6_71 = arith.constant 6 : index
    %c0_72 = arith.constant 0 : index
    %c0_73 = arith.constant 0 : index
    %297 = vector.load %arg12[%c6_71, %c0_72, %c0_73] : memref<8x8x128xf32, #tpu.memory_space<vmem>>, vector<1x8x128xf32>
    %298 = vector.shape_cast %297 : vector<1x8x128xf32> to vector<8x128xf32>
    %299 = vector.shape_cast %290 : vector<8x128xf32> to vector<1x8x128xf32>
    tpu.vector_store %arg12[%c6_71, %c0_72, %c0_73], %299 {strides = array<i32>} : memref<8x8x128xf32, #tpu.memory_space<vmem>>, vector<1x8x128xf32>,
    %c7 = arith.constant 7 : index
    %c0_74 = arith.constant 0 : index
    %c0_75 = arith.constant 0 : index
    %300 = vector.load %arg3[%c7, %c0_74, %c0_75] : memref<8x8x512xf32, #tpu.memory_space<vmem>>, vector<1x8x512xf32>
    %301 = vector.shape_cast %300 : vector<1x8x512xf32> to vector<8x512xf32>
    %cst_76 = arith.constant dense<0.000000e+00> : vector<8x512xf32>
    %302 = tpu.matmul %296, %29, %cst_76 {dimension_numbers = #tpu.dot_dimension_numbers<[1], [0], [0], [1], [0, 0, 1, 1], [], []>} : vector<8x128xf32>, vector<128x512xf32>, vector<8x512xf32> -> vector<8x512xf32>
    %303 = arith.addf %301, %302 : vector<8x512xf32>
    %304 = vector.extract_strided_slice %303 {offsets = [0, 0], sizes = [8, 128], strides = [1, 1]} : vector<8x512xf32> to vector<8x128xf32>
    %305 = arith.negf %304 : vector<8x128xf32>
    %306 = math.exp %305 : vector<8x128xf32>
    %cst_77 = arith.constant 1.000000e+00 : f32
    %307 = vector.broadcast %cst_77 : f32 to vector<8x128xf32>
    %308 = arith.addf %307, %306 : vector<8x128xf32>
    %309 = arith.divf %307, %308 : vector<8x128xf32>
    %310 = vector.extract_strided_slice %303 {offsets = [0, 128], sizes = [8, 128], strides = [1, 1]} : vector<8x512xf32> to vector<8x128xf32>
    %311 = arith.negf %310 : vector<8x128xf32>
    %312 = math.exp %311 : vector<8x128xf32>
    %cst_78 = arith.constant 1.000000e+00 : f32
    %313 = vector.broadcast %cst_78 : f32 to vector<8x128xf32>
    %314 = arith.addf %313, %312 : vector<8x128xf32>
    %315 = arith.divf %313, %314 : vector<8x128xf32>
    %316 = vector.extract_strided_slice %303 {offsets = [0, 256], sizes = [8, 128], strides = [1, 1]} : vector<8x512xf32> to vector<8x128xf32>
    %317 = math.tanh %316 : vector<8x128xf32>
    %318 = vector.extract_strided_slice %303 {offsets = [0, 384], sizes = [8, 128], strides = [1, 1]} : vector<8x512xf32> to vector<8x128xf32>
    %319 = arith.negf %318 : vector<8x128xf32>
    %320 = math.exp %319 : vector<8x128xf32>
    %cst_79 = arith.constant 1.000000e+00 : f32
    %321 = vector.broadcast %cst_79 : f32 to vector<8x128xf32>
    %322 = arith.addf %321, %320 : vector<8x128xf32>
    %323 = arith.divf %321, %322 : vector<8x128xf32>
    %324 = arith.mulf %315, %293 : vector<8x128xf32>
    %325 = arith.mulf %309, %317 : vector<8x128xf32>
    %326 = arith.addf %324, %325 : vector<8x128xf32>
    %327 = math.tanh %326 : vector<8x128xf32>
    %328 = arith.mulf %323, %327 : vector<8x128xf32>
    %329 = vector.shape_cast %28 : vector<8x1xi1> to vector<8x1xi1>
    %330 = vector.broadcast %329 : vector<8x1xi1> to vector<8x128xi1>
    %331 = arith.select %330, %326, %293 : vector<8x128xi1>, vector<8x128xf32>
    %332 = vector.shape_cast %28 : vector<8x1xi1> to vector<8x1xi1>
    %333 = vector.broadcast %332 : vector<8x1xi1> to vector<8x128xi1>
    %334 = arith.select %333, %328, %296 : vector<8x128xi1>, vector<8x128xf32>
    %c7_80 = arith.constant 7 : index
    %c0_81 = arith.constant 0 : index
    %c0_82 = arith.constant 0 : index
    %335 = vector.load %arg12[%c7_80, %c0_81, %c0_82] : memref<8x8x128xf32, #tpu.memory_space<vmem>>, vector<1x8x128xf32>
    %336 = vector.shape_cast %335 : vector<1x8x128xf32> to vector<8x128xf32>
    %337 = vector.shape_cast %328 : vector<8x128xf32> to vector<1x8x128xf32>
    tpu.vector_store %arg12[%c7_80, %c0_81, %c0_82], %337 {strides = array<i32>} : memref<8x8x128xf32, #tpu.memory_space<vmem>>, vector<1x8x128xf32>,
    %c0_83 = arith.constant 0 : index
    %c0_84 = arith.constant 0 : index
    %c0_85 = arith.constant 0 : index
    %338 = vector.load %arg13[%c0_83, %c0_84, %c0_85] : memref<2x8x128xf32, #tpu.memory_space<vmem>>, vector<1x8x128xf32>
    %339 = vector.shape_cast %338 : vector<1x8x128xf32> to vector<8x128xf32>
    %340 = vector.shape_cast %334 : vector<8x128xf32> to vector<1x8x128xf32>
    tpu.vector_store %arg13[%c0_83, %c0_84, %c0_85], %340 {strides = array<i32>} : memref<2x8x128xf32, #tpu.memory_space<vmem>>, vector<1x8x128xf32>,
    %c0_86 = arith.constant 0 : index
    %c0_87 = arith.constant 0 : index
    %c0_88 = arith.constant 0 : index
    %341 = vector.load %arg14[%c0_86, %c0_87, %c0_88] : memref<2x8x128xf32, #tpu.memory_space<vmem>>, vector<1x8x128xf32>
    %342 = vector.shape_cast %341 : vector<1x8x128xf32> to vector<8x128xf32>
    %343 = vector.shape_cast %331 : vector<8x128xf32> to vector<1x8x128xf32>
    tpu.vector_store %arg14[%c0_86, %c0_87, %c0_88], %343 {strides = array<i32>} : memref<2x8x128xf32, #tpu.memory_space<vmem>>, vector<1x8x128xf32>,
    %c0_89 = arith.constant 0 : index
    %c0_90 = arith.constant 0 : index
    %344 = vector.load %arg5[%c0_89, %c0_90] : memref<128x512xf32, #tpu.memory_space<vmem>>, vector<128x512xf32>
    %c0_91 = arith.constant 0 : index
    %c0_92 = arith.constant 0 : index
    %c0_93 = arith.constant 0 : index
    %345 = vector.load %arg12[%c0_91, %c0_92, %c0_93] : memref<8x8x128xf32, #tpu.memory_space<vmem>>, vector<8x8x128xf32>
    %346 = vector.shape_cast %345 : vector<8x8x128xf32> to vector<64x128xf32>
    %c0_94 = arith.constant 0 : index
    %c0_95 = arith.constant 0 : index
    %347 = vector.load %arg6[%c0_94, %c0_95] : memref<128x512xf32, #tpu.memory_space<vmem>>, vector<128x512xf32>
    %cst_96 = arith.constant dense<0.000000e+00> : vector<64x512xf32>
    %348 = tpu.matmul %346, %347, %cst_96 {dimension_numbers = #tpu.dot_dimension_numbers<[1], [0], [0], [1], [0, 0, 1, 1], [], []>} : vector<64x128xf32>, vector<128x512xf32>, vector<64x512xf32> -> vector<64x512xf32>
    %349 = vector.shape_cast %348 : vector<64x512xf32> to vector<8x8x512xf32>
    %c0_97 = arith.constant 0 : index
    %c0_98 = arith.constant 0 : index
    %350 = vector.load %arg7[%c0_97, %c0_98] : memref<1x512xf32, #tpu.memory_space<vmem>>, vector<1x512xf32>
    %351 = vector.shape_cast %350 : vector<1x512xf32> to vector<1x1x512xf32>
    %352 = vector.broadcast %351 : vector<1x1x512xf32> to vector<8x8x512xf32>
    %353 = arith.addf %349, %352 : vector<8x8x512xf32>
    %c0_99 = arith.constant 0 : index
    %c0_100 = arith.constant 0 : index
    %c0_101 = arith.constant 0 : index
    %354 = vector.load %arg11[%c0_99, %c0_100, %c0_101] : memref<8x8x512xf32, #tpu.memory_space<vmem>>, vector<8x8x512xf32>
    tpu.vector_store %arg11[%c0_99, %c0_100, %c0_101], %353 {strides = array<i32>} : memref<8x8x512xf32, #tpu.memory_space<vmem>>, vector<8x8x512xf32>,
    %c1_102 = arith.constant 1 : index
    %c0_103 = arith.constant 0 : index
    %c0_104 = arith.constant 0 : index
    %355 = vector.load %arg13[%c1_102, %c0_103, %c0_104] : memref<2x8x128xf32, #tpu.memory_space<vmem>>, vector<1x8x128xf32>
    %356 = vector.shape_cast %355 : vector<1x8x128xf32> to vector<8x128xf32>
    %c1_105 = arith.constant 1 : index
    %c0_106 = arith.constant 0 : index
    %c0_107 = arith.constant 0 : index
    %357 = vector.load %arg14[%c1_105, %c0_106, %c0_107] : memref<2x8x128xf32, #tpu.memory_space<vmem>>, vector<1x8x128xf32>
    %358 = vector.shape_cast %357 : vector<1x8x128xf32> to vector<8x128xf32>
    %c0_108 = arith.constant 0 : index
    %c0_109 = arith.constant 0 : index
    %c0_110 = arith.constant 0 : index
    %359 = vector.load %arg11[%c0_108, %c0_109, %c0_110] : memref<8x8x512xf32, #tpu.memory_space<vmem>>, vector<1x8x512xf32>
    %360 = vector.shape_cast %359 : vector<1x8x512xf32> to vector<8x512xf32>
    %cst_111 = arith.constant dense<0.000000e+00> : vector<8x512xf32>
    %361 = tpu.matmul %356, %344, %cst_111 {dimension_numbers = #tpu.dot_dimension_numbers<[1], [0], [0], [1], [0, 0, 1, 1], [], []>} : vector<8x128xf32>, vector<128x512xf32>, vector<8x512xf32> -> vector<8x512xf32>
    %362 = arith.addf %360, %361 : vector<8x512xf32>
    %363 = vector.extract_strided_slice %362 {offsets = [0, 0], sizes = [8, 128], strides = [1, 1]} : vector<8x512xf32> to vector<8x128xf32>
    %364 = arith.negf %363 : vector<8x128xf32>
    %365 = math.exp %364 : vector<8x128xf32>
    %cst_112 = arith.constant 1.000000e+00 : f32
    %366 = vector.broadcast %cst_112 : f32 to vector<8x128xf32>
    %367 = arith.addf %366, %365 : vector<8x128xf32>
    %368 = arith.divf %366, %367 : vector<8x128xf32>
    %369 = vector.extract_strided_slice %362 {offsets = [0, 128], sizes = [8, 128], strides = [1, 1]} : vector<8x512xf32> to vector<8x128xf32>
    %370 = arith.negf %369 : vector<8x128xf32>
    %371 = math.exp %370 : vector<8x128xf32>
    %cst_113 = arith.constant 1.000000e+00 : f32
    %372 = vector.broadcast %cst_113 : f32 to vector<8x128xf32>
    %373 = arith.addf %372, %371 : vector<8x128xf32>
    %374 = arith.divf %372, %373 : vector<8x128xf32>
    %375 = vector.extract_strided_slice %362 {offsets = [0, 256], sizes = [8, 128], strides = [1, 1]} : vector<8x512xf32> to vector<8x128xf32>
    %376 = math.tanh %375 : vector<8x128xf32>
    %377 = vector.extract_strided_slice %362 {offsets = [0, 384], sizes = [8, 128], strides = [1, 1]} : vector<8x512xf32> to vector<8x128xf32>
    %378 = arith.negf %377 : vector<8x128xf32>
    %379 = math.exp %378 : vector<8x128xf32>
    %cst_114 = arith.constant 1.000000e+00 : f32
    %380 = vector.broadcast %cst_114 : f32 to vector<8x128xf32>
    %381 = arith.addf %380, %379 : vector<8x128xf32>
    %382 = arith.divf %380, %381 : vector<8x128xf32>
    %383 = arith.mulf %374, %358 : vector<8x128xf32>
    %384 = arith.mulf %368, %376 : vector<8x128xf32>
    %385 = arith.addf %383, %384 : vector<8x128xf32>
    %386 = math.tanh %385 : vector<8x128xf32>
    %387 = arith.mulf %382, %386 : vector<8x128xf32>
    %388 = vector.shape_cast %7 : vector<8x1xi1> to vector<8x1xi1>
    %389 = vector.broadcast %388 : vector<8x1xi1> to vector<8x128xi1>
    %390 = arith.select %389, %385, %358 : vector<8x128xi1>, vector<8x128xf32>
    %391 = vector.shape_cast %7 : vector<8x1xi1> to vector<8x1xi1>
    %392 = vector.broadcast %391 : vector<8x1xi1> to vector<8x128xi1>
    %393 = arith.select %392, %387, %356 : vector<8x128xi1>, vector<8x128xf32>
    %cst_115 = arith.constant 0.000000e+00 : f32
    %394 = vector.shape_cast %7 : vector<8x1xi1> to vector<8x1xi1>
    %395 = vector.broadcast %394 : vector<8x1xi1> to vector<8x128xi1>
    %396 = vector.broadcast %cst_115 : f32 to vector<8x128xf32>
    %397 = arith.select %395, %387, %396 : vector<8x128xi1>, vector<8x128xf32>
    %c0_116 = arith.constant 0 : index
    %c0_117 = arith.constant 0 : index
    %c0_118 = arith.constant 0 : index
    %398 = vector.load %arg8[%c0_116, %c0_117, %c0_118] : memref<8x8x128xf32, #tpu.memory_space<vmem>>, vector<1x8x128xf32>
    %399 = vector.shape_cast %398 : vector<1x8x128xf32> to vector<8x128xf32>
    %400 = vector.shape_cast %397 : vector<8x128xf32> to vector<1x8x128xf32>
    tpu.vector_store %arg8[%c0_116, %c0_117, %c0_118], %400 {strides = array<i32>} : memref<8x8x128xf32, #tpu.memory_space<vmem>>, vector<1x8x128xf32>,
    %c1_119 = arith.constant 1 : index
    %c0_120 = arith.constant 0 : index
    %c0_121 = arith.constant 0 : index
    %401 = vector.load %arg11[%c1_119, %c0_120, %c0_121] : memref<8x8x512xf32, #tpu.memory_space<vmem>>, vector<1x8x512xf32>
    %402 = vector.shape_cast %401 : vector<1x8x512xf32> to vector<8x512xf32>
    %cst_122 = arith.constant dense<0.000000e+00> : vector<8x512xf32>
    %403 = tpu.matmul %393, %344, %cst_122 {dimension_numbers = #tpu.dot_dimension_numbers<[1], [0], [0], [1], [0, 0, 1, 1], [], []>} : vector<8x128xf32>, vector<128x512xf32>, vector<8x512xf32> -> vector<8x512xf32>
    %404 = arith.addf %402, %403 : vector<8x512xf32>
    %405 = vector.extract_strided_slice %404 {offsets = [0, 0], sizes = [8, 128], strides = [1, 1]} : vector<8x512xf32> to vector<8x128xf32>
    %406 = arith.negf %405 : vector<8x128xf32>
    %407 = math.exp %406 : vector<8x128xf32>
    %cst_123 = arith.constant 1.000000e+00 : f32
    %408 = vector.broadcast %cst_123 : f32 to vector<8x128xf32>
    %409 = arith.addf %408, %407 : vector<8x128xf32>
    %410 = arith.divf %408, %409 : vector<8x128xf32>
    %411 = vector.extract_strided_slice %404 {offsets = [0, 128], sizes = [8, 128], strides = [1, 1]} : vector<8x512xf32> to vector<8x128xf32>
    %412 = arith.negf %411 : vector<8x128xf32>
    %413 = math.exp %412 : vector<8x128xf32>
    %cst_124 = arith.constant 1.000000e+00 : f32
    %414 = vector.broadcast %cst_124 : f32 to vector<8x128xf32>
    %415 = arith.addf %414, %413 : vector<8x128xf32>
    %416 = arith.divf %414, %415 : vector<8x128xf32>
    %417 = vector.extract_strided_slice %404 {offsets = [0, 256], sizes = [8, 128], strides = [1, 1]} : vector<8x512xf32> to vector<8x128xf32>
    %418 = math.tanh %417 : vector<8x128xf32>
    %419 = vector.extract_strided_slice %404 {offsets = [0, 384], sizes = [8, 128], strides = [1, 1]} : vector<8x512xf32> to vector<8x128xf32>
    %420 = arith.negf %419 : vector<8x128xf32>
    %421 = math.exp %420 : vector<8x128xf32>
    %cst_125 = arith.constant 1.000000e+00 : f32
    %422 = vector.broadcast %cst_125 : f32 to vector<8x128xf32>
    %423 = arith.addf %422, %421 : vector<8x128xf32>
    %424 = arith.divf %422, %423 : vector<8x128xf32>
    %425 = arith.mulf %416, %390 : vector<8x128xf32>
    %426 = arith.mulf %410, %418 : vector<8x128xf32>
    %427 = arith.addf %425, %426 : vector<8x128xf32>
    %428 = math.tanh %427 : vector<8x128xf32>
    %429 = arith.mulf %424, %428 : vector<8x128xf32>
    %430 = vector.shape_cast %10 : vector<8x1xi1> to vector<8x1xi1>
    %431 = vector.broadcast %430 : vector<8x1xi1> to vector<8x128xi1>
    %432 = arith.select %431, %427, %390 : vector<8x128xi1>, vector<8x128xf32>
    %433 = vector.shape_cast %10 : vector<8x1xi1> to vector<8x1xi1>
    %434 = vector.broadcast %433 : vector<8x1xi1> to vector<8x128xi1>
    %435 = arith.select %434, %429, %393 : vector<8x128xi1>, vector<8x128xf32>
    %cst_126 = arith.constant 0.000000e+00 : f32
    %436 = vector.shape_cast %10 : vector<8x1xi1> to vector<8x1xi1>
    %437 = vector.broadcast %436 : vector<8x1xi1> to vector<8x128xi1>
    %438 = vector.broadcast %cst_126 : f32 to vector<8x128xf32>
    %439 = arith.select %437, %429, %438 : vector<8x128xi1>, vector<8x128xf32>
    %c1_127 = arith.constant 1 : index
    %c0_128 = arith.constant 0 : index
    %c0_129 = arith.constant 0 : index
    %440 = vector.load %arg8[%c1_127, %c0_128, %c0_129] : memref<8x8x128xf32, #tpu.memory_space<vmem>>, vector<1x8x128xf32>
    %441 = vector.shape_cast %440 : vector<1x8x128xf32> to vector<8x128xf32>
    %442 = vector.shape_cast %439 : vector<8x128xf32> to vector<1x8x128xf32>
    tpu.vector_store %arg8[%c1_127, %c0_128, %c0_129], %442 {strides = array<i32>} : memref<8x8x128xf32, #tpu.memory_space<vmem>>, vector<1x8x128xf32>,
    %c2_130 = arith.constant 2 : index
    %c0_131 = arith.constant 0 : index
    %c0_132 = arith.constant 0 : index
    %443 = vector.load %arg11[%c2_130, %c0_131, %c0_132] : memref<8x8x512xf32, #tpu.memory_space<vmem>>, vector<1x8x512xf32>
    %444 = vector.shape_cast %443 : vector<1x8x512xf32> to vector<8x512xf32>
    %cst_133 = arith.constant dense<0.000000e+00> : vector<8x512xf32>
    %445 = tpu.matmul %435, %344, %cst_133 {dimension_numbers = #tpu.dot_dimension_numbers<[1], [0], [0], [1], [0, 0, 1, 1], [], []>} : vector<8x128xf32>, vector<128x512xf32>, vector<8x512xf32> -> vector<8x512xf32>
    %446 = arith.addf %444, %445 : vector<8x512xf32>
    %447 = vector.extract_strided_slice %446 {offsets = [0, 0], sizes = [8, 128], strides = [1, 1]} : vector<8x512xf32> to vector<8x128xf32>
    %448 = arith.negf %447 : vector<8x128xf32>
    %449 = math.exp %448 : vector<8x128xf32>
    %cst_134 = arith.constant 1.000000e+00 : f32
    %450 = vector.broadcast %cst_134 : f32 to vector<8x128xf32>
    %451 = arith.addf %450, %449 : vector<8x128xf32>
    %452 = arith.divf %450, %451 : vector<8x128xf32>
    %453 = vector.extract_strided_slice %446 {offsets = [0, 128], sizes = [8, 128], strides = [1, 1]} : vector<8x512xf32> to vector<8x128xf32>
    %454 = arith.negf %453 : vector<8x128xf32>
    %455 = math.exp %454 : vector<8x128xf32>
    %cst_135 = arith.constant 1.000000e+00 : f32
    %456 = vector.broadcast %cst_135 : f32 to vector<8x128xf32>
    %457 = arith.addf %456, %455 : vector<8x128xf32>
    %458 = arith.divf %456, %457 : vector<8x128xf32>
    %459 = vector.extract_strided_slice %446 {offsets = [0, 256], sizes = [8, 128], strides = [1, 1]} : vector<8x512xf32> to vector<8x128xf32>
    %460 = math.tanh %459 : vector<8x128xf32>
    %461 = vector.extract_strided_slice %446 {offsets = [0, 384], sizes = [8, 128], strides = [1, 1]} : vector<8x512xf32> to vector<8x128xf32>
    %462 = arith.negf %461 : vector<8x128xf32>
    %463 = math.exp %462 : vector<8x128xf32>
    %cst_136 = arith.constant 1.000000e+00 : f32
    %464 = vector.broadcast %cst_136 : f32 to vector<8x128xf32>
    %465 = arith.addf %464, %463 : vector<8x128xf32>
    %466 = arith.divf %464, %465 : vector<8x128xf32>
    %467 = arith.mulf %458, %432 : vector<8x128xf32>
    %468 = arith.mulf %452, %460 : vector<8x128xf32>
    %469 = arith.addf %467, %468 : vector<8x128xf32>
    %470 = math.tanh %469 : vector<8x128xf32>
    %471 = arith.mulf %466, %470 : vector<8x128xf32>
    %472 = vector.shape_cast %13 : vector<8x1xi1> to vector<8x1xi1>
    %473 = vector.broadcast %472 : vector<8x1xi1> to vector<8x128xi1>
    %474 = arith.select %473, %469, %432 : vector<8x128xi1>, vector<8x128xf32>
    %475 = vector.shape_cast %13 : vector<8x1xi1> to vector<8x1xi1>
    %476 = vector.broadcast %475 : vector<8x1xi1> to vector<8x128xi1>
    %477 = arith.select %476, %471, %435 : vector<8x128xi1>, vector<8x128xf32>
    %cst_137 = arith.constant 0.000000e+00 : f32
    %478 = vector.shape_cast %13 : vector<8x1xi1> to vector<8x1xi1>
    %479 = vector.broadcast %478 : vector<8x1xi1> to vector<8x128xi1>
    %480 = vector.broadcast %cst_137 : f32 to vector<8x128xf32>
    %481 = arith.select %479, %471, %480 : vector<8x128xi1>, vector<8x128xf32>
    %c2_138 = arith.constant 2 : index
    %c0_139 = arith.constant 0 : index
    %c0_140 = arith.constant 0 : index
    %482 = vector.load %arg8[%c2_138, %c0_139, %c0_140] : memref<8x8x128xf32, #tpu.memory_space<vmem>>, vector<1x8x128xf32>
    %483 = vector.shape_cast %482 : vector<1x8x128xf32> to vector<8x128xf32>
    %484 = vector.shape_cast %481 : vector<8x128xf32> to vector<1x8x128xf32>
    tpu.vector_store %arg8[%c2_138, %c0_139, %c0_140], %484 {strides = array<i32>} : memref<8x8x128xf32, #tpu.memory_space<vmem>>, vector<1x8x128xf32>,
    %c3_141 = arith.constant 3 : index
    %c0_142 = arith.constant 0 : index
    %c0_143 = arith.constant 0 : index
    %485 = vector.load %arg11[%c3_141, %c0_142, %c0_143] : memref<8x8x512xf32, #tpu.memory_space<vmem>>, vector<1x8x512xf32>
    %486 = vector.shape_cast %485 : vector<1x8x512xf32> to vector<8x512xf32>
    %cst_144 = arith.constant dense<0.000000e+00> : vector<8x512xf32>
    %487 = tpu.matmul %477, %344, %cst_144 {dimension_numbers = #tpu.dot_dimension_numbers<[1], [0], [0], [1], [0, 0, 1, 1], [], []>} : vector<8x128xf32>, vector<128x512xf32>, vector<8x512xf32> -> vector<8x512xf32>
    %488 = arith.addf %486, %487 : vector<8x512xf32>
    %489 = vector.extract_strided_slice %488 {offsets = [0, 0], sizes = [8, 128], strides = [1, 1]} : vector<8x512xf32> to vector<8x128xf32>
    %490 = arith.negf %489 : vector<8x128xf32>
    %491 = math.exp %490 : vector<8x128xf32>
    %cst_145 = arith.constant 1.000000e+00 : f32
    %492 = vector.broadcast %cst_145 : f32 to vector<8x128xf32>
    %493 = arith.addf %492, %491 : vector<8x128xf32>
    %494 = arith.divf %492, %493 : vector<8x128xf32>
    %495 = vector.extract_strided_slice %488 {offsets = [0, 128], sizes = [8, 128], strides = [1, 1]} : vector<8x512xf32> to vector<8x128xf32>
    %496 = arith.negf %495 : vector<8x128xf32>
    %497 = math.exp %496 : vector<8x128xf32>
    %cst_146 = arith.constant 1.000000e+00 : f32
    %498 = vector.broadcast %cst_146 : f32 to vector<8x128xf32>
    %499 = arith.addf %498, %497 : vector<8x128xf32>
    %500 = arith.divf %498, %499 : vector<8x128xf32>
    %501 = vector.extract_strided_slice %488 {offsets = [0, 256], sizes = [8, 128], strides = [1, 1]} : vector<8x512xf32> to vector<8x128xf32>
    %502 = math.tanh %501 : vector<8x128xf32>
    %503 = vector.extract_strided_slice %488 {offsets = [0, 384], sizes = [8, 128], strides = [1, 1]} : vector<8x512xf32> to vector<8x128xf32>
    %504 = arith.negf %503 : vector<8x128xf32>
    %505 = math.exp %504 : vector<8x128xf32>
    %cst_147 = arith.constant 1.000000e+00 : f32
    %506 = vector.broadcast %cst_147 : f32 to vector<8x128xf32>
    %507 = arith.addf %506, %505 : vector<8x128xf32>
    %508 = arith.divf %506, %507 : vector<8x128xf32>
    %509 = arith.mulf %500, %474 : vector<8x128xf32>
    %510 = arith.mulf %494, %502 : vector<8x128xf32>
    %511 = arith.addf %509, %510 : vector<8x128xf32>
    %512 = math.tanh %511 : vector<8x128xf32>
    %513 = arith.mulf %508, %512 : vector<8x128xf32>
    %514 = vector.shape_cast %16 : vector<8x1xi1> to vector<8x1xi1>
    %515 = vector.broadcast %514 : vector<8x1xi1> to vector<8x128xi1>
    %516 = arith.select %515, %511, %474 : vector<8x128xi1>, vector<8x128xf32>
    %517 = vector.shape_cast %16 : vector<8x1xi1> to vector<8x1xi1>
    %518 = vector.broadcast %517 : vector<8x1xi1> to vector<8x128xi1>
    %519 = arith.select %518, %513, %477 : vector<8x128xi1>, vector<8x128xf32>
    %cst_148 = arith.constant 0.000000e+00 : f32
    %520 = vector.shape_cast %16 : vector<8x1xi1> to vector<8x1xi1>
    %521 = vector.broadcast %520 : vector<8x1xi1> to vector<8x128xi1>
    %522 = vector.broadcast %cst_148 : f32 to vector<8x128xf32>
    %523 = arith.select %521, %513, %522 : vector<8x128xi1>, vector<8x128xf32>
    %c3_149 = arith.constant 3 : index
    %c0_150 = arith.constant 0 : index
    %c0_151 = arith.constant 0 : index
    %524 = vector.load %arg8[%c3_149, %c0_150, %c0_151] : memref<8x8x128xf32, #tpu.memory_space<vmem>>, vector<1x8x128xf32>
    %525 = vector.shape_cast %524 : vector<1x8x128xf32> to vector<8x128xf32>
    %526 = vector.shape_cast %523 : vector<8x128xf32> to vector<1x8x128xf32>
    tpu.vector_store %arg8[%c3_149, %c0_150, %c0_151], %526 {strides = array<i32>} : memref<8x8x128xf32, #tpu.memory_space<vmem>>, vector<1x8x128xf32>,
    %c4_152 = arith.constant 4 : index
    %c0_153 = arith.constant 0 : index
    %c0_154 = arith.constant 0 : index
    %527 = vector.load %arg11[%c4_152, %c0_153, %c0_154] : memref<8x8x512xf32, #tpu.memory_space<vmem>>, vector<1x8x512xf32>
    %528 = vector.shape_cast %527 : vector<1x8x512xf32> to vector<8x512xf32>
    %cst_155 = arith.constant dense<0.000000e+00> : vector<8x512xf32>
    %529 = tpu.matmul %519, %344, %cst_155 {dimension_numbers = #tpu.dot_dimension_numbers<[1], [0], [0], [1], [0, 0, 1, 1], [], []>} : vector<8x128xf32>, vector<128x512xf32>, vector<8x512xf32> -> vector<8x512xf32>
    %530 = arith.addf %528, %529 : vector<8x512xf32>
    %531 = vector.extract_strided_slice %530 {offsets = [0, 0], sizes = [8, 128], strides = [1, 1]} : vector<8x512xf32> to vector<8x128xf32>
    %532 = arith.negf %531 : vector<8x128xf32>
    %533 = math.exp %532 : vector<8x128xf32>
    %cst_156 = arith.constant 1.000000e+00 : f32
    %534 = vector.broadcast %cst_156 : f32 to vector<8x128xf32>
    %535 = arith.addf %534, %533 : vector<8x128xf32>
    %536 = arith.divf %534, %535 : vector<8x128xf32>
    %537 = vector.extract_strided_slice %530 {offsets = [0, 128], sizes = [8, 128], strides = [1, 1]} : vector<8x512xf32> to vector<8x128xf32>
    %538 = arith.negf %537 : vector<8x128xf32>
    %539 = math.exp %538 : vector<8x128xf32>
    %cst_157 = arith.constant 1.000000e+00 : f32
    %540 = vector.broadcast %cst_157 : f32 to vector<8x128xf32>
    %541 = arith.addf %540, %539 : vector<8x128xf32>
    %542 = arith.divf %540, %541 : vector<8x128xf32>
    %543 = vector.extract_strided_slice %530 {offsets = [0, 256], sizes = [8, 128], strides = [1, 1]} : vector<8x512xf32> to vector<8x128xf32>
    %544 = math.tanh %543 : vector<8x128xf32>
    %545 = vector.extract_strided_slice %530 {offsets = [0, 384], sizes = [8, 128], strides = [1, 1]} : vector<8x512xf32> to vector<8x128xf32>
    %546 = arith.negf %545 : vector<8x128xf32>
    %547 = math.exp %546 : vector<8x128xf32>
    %cst_158 = arith.constant 1.000000e+00 : f32
    %548 = vector.broadcast %cst_158 : f32 to vector<8x128xf32>
    %549 = arith.addf %548, %547 : vector<8x128xf32>
    %550 = arith.divf %548, %549 : vector<8x128xf32>
    %551 = arith.mulf %542, %516 : vector<8x128xf32>
    %552 = arith.mulf %536, %544 : vector<8x128xf32>
    %553 = arith.addf %551, %552 : vector<8x128xf32>
    %554 = math.tanh %553 : vector<8x128xf32>
    %555 = arith.mulf %550, %554 : vector<8x128xf32>
    %556 = vector.shape_cast %19 : vector<8x1xi1> to vector<8x1xi1>
    %557 = vector.broadcast %556 : vector<8x1xi1> to vector<8x128xi1>
    %558 = arith.select %557, %553, %516 : vector<8x128xi1>, vector<8x128xf32>
    %559 = vector.shape_cast %19 : vector<8x1xi1> to vector<8x1xi1>
    %560 = vector.broadcast %559 : vector<8x1xi1> to vector<8x128xi1>
    %561 = arith.select %560, %555, %519 : vector<8x128xi1>, vector<8x128xf32>
    %cst_159 = arith.constant 0.000000e+00 : f32
    %562 = vector.shape_cast %19 : vector<8x1xi1> to vector<8x1xi1>
    %563 = vector.broadcast %562 : vector<8x1xi1> to vector<8x128xi1>
    %564 = vector.broadcast %cst_159 : f32 to vector<8x128xf32>
    %565 = arith.select %563, %555, %564 : vector<8x128xi1>, vector<8x128xf32>
    %c4_160 = arith.constant 4 : index
    %c0_161 = arith.constant 0 : index
    %c0_162 = arith.constant 0 : index
    %566 = vector.load %arg8[%c4_160, %c0_161, %c0_162] : memref<8x8x128xf32, #tpu.memory_space<vmem>>, vector<1x8x128xf32>
    %567 = vector.shape_cast %566 : vector<1x8x128xf32> to vector<8x128xf32>
    %568 = vector.shape_cast %565 : vector<8x128xf32> to vector<1x8x128xf32>
    tpu.vector_store %arg8[%c4_160, %c0_161, %c0_162], %568 {strides = array<i32>} : memref<8x8x128xf32, #tpu.memory_space<vmem>>, vector<1x8x128xf32>,
    %c5_163 = arith.constant 5 : index
    %c0_164 = arith.constant 0 : index
    %c0_165 = arith.constant 0 : index
    %569 = vector.load %arg11[%c5_163, %c0_164, %c0_165] : memref<8x8x512xf32, #tpu.memory_space<vmem>>, vector<1x8x512xf32>
    %570 = vector.shape_cast %569 : vector<1x8x512xf32> to vector<8x512xf32>
    %cst_166 = arith.constant dense<0.000000e+00> : vector<8x512xf32>
    %571 = tpu.matmul %561, %344, %cst_166 {dimension_numbers = #tpu.dot_dimension_numbers<[1], [0], [0], [1], [0, 0, 1, 1], [], []>} : vector<8x128xf32>, vector<128x512xf32>, vector<8x512xf32> -> vector<8x512xf32>
    %572 = arith.addf %570, %571 : vector<8x512xf32>
    %573 = vector.extract_strided_slice %572 {offsets = [0, 0], sizes = [8, 128], strides = [1, 1]} : vector<8x512xf32> to vector<8x128xf32>
    %574 = arith.negf %573 : vector<8x128xf32>
    %575 = math.exp %574 : vector<8x128xf32>
    %cst_167 = arith.constant 1.000000e+00 : f32
    %576 = vector.broadcast %cst_167 : f32 to vector<8x128xf32>
    %577 = arith.addf %576, %575 : vector<8x128xf32>
    %578 = arith.divf %576, %577 : vector<8x128xf32>
    %579 = vector.extract_strided_slice %572 {offsets = [0, 128], sizes = [8, 128], strides = [1, 1]} : vector<8x512xf32> to vector<8x128xf32>
    %580 = arith.negf %579 : vector<8x128xf32>
    %581 = math.exp %580 : vector<8x128xf32>
    %cst_168 = arith.constant 1.000000e+00 : f32
    %582 = vector.broadcast %cst_168 : f32 to vector<8x128xf32>
    %583 = arith.addf %582, %581 : vector<8x128xf32>
    %584 = arith.divf %582, %583 : vector<8x128xf32>
    %585 = vector.extract_strided_slice %572 {offsets = [0, 256], sizes = [8, 128], strides = [1, 1]} : vector<8x512xf32> to vector<8x128xf32>
    %586 = math.tanh %585 : vector<8x128xf32>
    %587 = vector.extract_strided_slice %572 {offsets = [0, 384], sizes = [8, 128], strides = [1, 1]} : vector<8x512xf32> to vector<8x128xf32>
    %588 = arith.negf %587 : vector<8x128xf32>
    %589 = math.exp %588 : vector<8x128xf32>
    %cst_169 = arith.constant 1.000000e+00 : f32
    %590 = vector.broadcast %cst_169 : f32 to vector<8x128xf32>
    %591 = arith.addf %590, %589 : vector<8x128xf32>
    %592 = arith.divf %590, %591 : vector<8x128xf32>
    %593 = arith.mulf %584, %558 : vector<8x128xf32>
    %594 = arith.mulf %578, %586 : vector<8x128xf32>
    %595 = arith.addf %593, %594 : vector<8x128xf32>
    %596 = math.tanh %595 : vector<8x128xf32>
    %597 = arith.mulf %592, %596 : vector<8x128xf32>
    %598 = vector.shape_cast %22 : vector<8x1xi1> to vector<8x1xi1>
    %599 = vector.broadcast %598 : vector<8x1xi1> to vector<8x128xi1>
    %600 = arith.select %599, %595, %558 : vector<8x128xi1>, vector<8x128xf32>
    %601 = vector.shape_cast %22 : vector<8x1xi1> to vector<8x1xi1>
    %602 = vector.broadcast %601 : vector<8x1xi1> to vector<8x128xi1>
    %603 = arith.select %602, %597, %561 : vector<8x128xi1>, vector<8x128xf32>
    %cst_170 = arith.constant 0.000000e+00 : f32
    %604 = vector.shape_cast %22 : vector<8x1xi1> to vector<8x1xi1>
    %605 = vector.broadcast %604 : vector<8x1xi1> to vector<8x128xi1>
    %606 = vector.broadcast %cst_170 : f32 to vector<8x128xf32>
    %607 = arith.select %605, %597, %606 : vector<8x128xi1>, vector<8x128xf32>
    %c5_171 = arith.constant 5 : index
    %c0_172 = arith.constant 0 : index
    %c0_173 = arith.constant 0 : index
    %608 = vector.load %arg8[%c5_171, %c0_172, %c0_173] : memref<8x8x128xf32, #tpu.memory_space<vmem>>, vector<1x8x128xf32>
    %609 = vector.shape_cast %608 : vector<1x8x128xf32> to vector<8x128xf32>
    %610 = vector.shape_cast %607 : vector<8x128xf32> to vector<1x8x128xf32>
    tpu.vector_store %arg8[%c5_171, %c0_172, %c0_173], %610 {strides = array<i32>} : memref<8x8x128xf32, #tpu.memory_space<vmem>>, vector<1x8x128xf32>,
    %c6_174 = arith.constant 6 : index
    %c0_175 = arith.constant 0 : index
    %c0_176 = arith.constant 0 : index
    %611 = vector.load %arg11[%c6_174, %c0_175, %c0_176] : memref<8x8x512xf32, #tpu.memory_space<vmem>>, vector<1x8x512xf32>
    %612 = vector.shape_cast %611 : vector<1x8x512xf32> to vector<8x512xf32>
    %cst_177 = arith.constant dense<0.000000e+00> : vector<8x512xf32>
    %613 = tpu.matmul %603, %344, %cst_177 {dimension_numbers = #tpu.dot_dimension_numbers<[1], [0], [0], [1], [0, 0, 1, 1], [], []>} : vector<8x128xf32>, vector<128x512xf32>, vector<8x512xf32> -> vector<8x512xf32>
    %614 = arith.addf %612, %613 : vector<8x512xf32>
    %615 = vector.extract_strided_slice %614 {offsets = [0, 0], sizes = [8, 128], strides = [1, 1]} : vector<8x512xf32> to vector<8x128xf32>
    %616 = arith.negf %615 : vector<8x128xf32>
    %617 = math.exp %616 : vector<8x128xf32>
    %cst_178 = arith.constant 1.000000e+00 : f32
    %618 = vector.broadcast %cst_178 : f32 to vector<8x128xf32>
    %619 = arith.addf %618, %617 : vector<8x128xf32>
    %620 = arith.divf %618, %619 : vector<8x128xf32>
    %621 = vector.extract_strided_slice %614 {offsets = [0, 128], sizes = [8, 128], strides = [1, 1]} : vector<8x512xf32> to vector<8x128xf32>
    %622 = arith.negf %621 : vector<8x128xf32>
    %623 = math.exp %622 : vector<8x128xf32>
    %cst_179 = arith.constant 1.000000e+00 : f32
    %624 = vector.broadcast %cst_179 : f32 to vector<8x128xf32>
    %625 = arith.addf %624, %623 : vector<8x128xf32>
    %626 = arith.divf %624, %625 : vector<8x128xf32>
    %627 = vector.extract_strided_slice %614 {offsets = [0, 256], sizes = [8, 128], strides = [1, 1]} : vector<8x512xf32> to vector<8x128xf32>
    %628 = math.tanh %627 : vector<8x128xf32>
    %629 = vector.extract_strided_slice %614 {offsets = [0, 384], sizes = [8, 128], strides = [1, 1]} : vector<8x512xf32> to vector<8x128xf32>
    %630 = arith.negf %629 : vector<8x128xf32>
    %631 = math.exp %630 : vector<8x128xf32>
    %cst_180 = arith.constant 1.000000e+00 : f32
    %632 = vector.broadcast %cst_180 : f32 to vector<8x128xf32>
    %633 = arith.addf %632, %631 : vector<8x128xf32>
    %634 = arith.divf %632, %633 : vector<8x128xf32>
    %635 = arith.mulf %626, %600 : vector<8x128xf32>
    %636 = arith.mulf %620, %628 : vector<8x128xf32>
    %637 = arith.addf %635, %636 : vector<8x128xf32>
    %638 = math.tanh %637 : vector<8x128xf32>
    %639 = arith.mulf %634, %638 : vector<8x128xf32>
    %640 = vector.shape_cast %25 : vector<8x1xi1> to vector<8x1xi1>
    %641 = vector.broadcast %640 : vector<8x1xi1> to vector<8x128xi1>
    %642 = arith.select %641, %637, %600 : vector<8x128xi1>, vector<8x128xf32>
    %643 = vector.shape_cast %25 : vector<8x1xi1> to vector<8x1xi1>
    %644 = vector.broadcast %643 : vector<8x1xi1> to vector<8x128xi1>
    %645 = arith.select %644, %639, %603 : vector<8x128xi1>, vector<8x128xf32>
    %cst_181 = arith.constant 0.000000e+00 : f32
    %646 = vector.shape_cast %25 : vector<8x1xi1> to vector<8x1xi1>
    %647 = vector.broadcast %646 : vector<8x1xi1> to vector<8x128xi1>
    %648 = vector.broadcast %cst_181 : f32 to vector<8x128xf32>
    %649 = arith.select %647, %639, %648 : vector<8x128xi1>, vector<8x128xf32>
    %c6_182 = arith.constant 6 : index
    %c0_183 = arith.constant 0 : index
    %c0_184 = arith.constant 0 : index
    %650 = vector.load %arg8[%c6_182, %c0_183, %c0_184] : memref<8x8x128xf32, #tpu.memory_space<vmem>>, vector<1x8x128xf32>
    %651 = vector.shape_cast %650 : vector<1x8x128xf32> to vector<8x128xf32>
    %652 = vector.shape_cast %649 : vector<8x128xf32> to vector<1x8x128xf32>
    tpu.vector_store %arg8[%c6_182, %c0_183, %c0_184], %652 {strides = array<i32>} : memref<8x8x128xf32, #tpu.memory_space<vmem>>, vector<1x8x128xf32>,
    %c7_185 = arith.constant 7 : index
    %c0_186 = arith.constant 0 : index
    %c0_187 = arith.constant 0 : index
    %653 = vector.load %arg11[%c7_185, %c0_186, %c0_187] : memref<8x8x512xf32, #tpu.memory_space<vmem>>, vector<1x8x512xf32>
    %654 = vector.shape_cast %653 : vector<1x8x512xf32> to vector<8x512xf32>
    %cst_188 = arith.constant dense<0.000000e+00> : vector<8x512xf32>
    %655 = tpu.matmul %645, %344, %cst_188 {dimension_numbers = #tpu.dot_dimension_numbers<[1], [0], [0], [1], [0, 0, 1, 1], [], []>} : vector<8x128xf32>, vector<128x512xf32>, vector<8x512xf32> -> vector<8x512xf32>
    %656 = arith.addf %654, %655 : vector<8x512xf32>
    %657 = vector.extract_strided_slice %656 {offsets = [0, 0], sizes = [8, 128], strides = [1, 1]} : vector<8x512xf32> to vector<8x128xf32>
    %658 = arith.negf %657 : vector<8x128xf32>
    %659 = math.exp %658 : vector<8x128xf32>
    %cst_189 = arith.constant 1.000000e+00 : f32
    %660 = vector.broadcast %cst_189 : f32 to vector<8x128xf32>
    %661 = arith.addf %660, %659 : vector<8x128xf32>
    %662 = arith.divf %660, %661 : vector<8x128xf32>
    %663 = vector.extract_strided_slice %656 {offsets = [0, 128], sizes = [8, 128], strides = [1, 1]} : vector<8x512xf32> to vector<8x128xf32>
    %664 = arith.negf %663 : vector<8x128xf32>
    %665 = math.exp %664 : vector<8x128xf32>
    %cst_190 = arith.constant 1.000000e+00 : f32
    %666 = vector.broadcast %cst_190 : f32 to vector<8x128xf32>
    %667 = arith.addf %666, %665 : vector<8x128xf32>
    %668 = arith.divf %666, %667 : vector<8x128xf32>
    %669 = vector.extract_strided_slice %656 {offsets = [0, 256], sizes = [8, 128], strides = [1, 1]} : vector<8x512xf32> to vector<8x128xf32>
    %670 = math.tanh %669 : vector<8x128xf32>
    %671 = vector.extract_strided_slice %656 {offsets = [0, 384], sizes = [8, 128], strides = [1, 1]} : vector<8x512xf32> to vector<8x128xf32>
    %672 = arith.negf %671 : vector<8x128xf32>
    %673 = math.exp %672 : vector<8x128xf32>
    %cst_191 = arith.constant 1.000000e+00 : f32
    %674 = vector.broadcast %cst_191 : f32 to vector<8x128xf32>
    %675 = arith.addf %674, %673 : vector<8x128xf32>
    %676 = arith.divf %674, %675 : vector<8x128xf32>
    %677 = arith.mulf %668, %642 : vector<8x128xf32>
    %678 = arith.mulf %662, %670 : vector<8x128xf32>
    %679 = arith.addf %677, %678 : vector<8x128xf32>
    %680 = math.tanh %679 : vector<8x128xf32>
    %681 = arith.mulf %676, %680 : vector<8x128xf32>
    %682 = vector.shape_cast %28 : vector<8x1xi1> to vector<8x1xi1>
    %683 = vector.broadcast %682 : vector<8x1xi1> to vector<8x128xi1>
    %684 = arith.select %683, %679, %642 : vector<8x128xi1>, vector<8x128xf32>
    %685 = vector.shape_cast %28 : vector<8x1xi1> to vector<8x1xi1>
    %686 = vector.broadcast %685 : vector<8x1xi1> to vector<8x128xi1>
    %687 = arith.select %686, %681, %645 : vector<8x128xi1>, vector<8x128xf32>
    %cst_192 = arith.constant 0.000000e+00 : f32
    %688 = vector.shape_cast %28 : vector<8x1xi1> to vector<8x1xi1>
    %689 = vector.broadcast %688 : vector<8x1xi1> to vector<8x128xi1>
    %690 = vector.broadcast %cst_192 : f32 to vector<8x128xf32>
    %691 = arith.select %689, %681, %690 : vector<8x128xi1>, vector<8x128xf32>
    %c7_193 = arith.constant 7 : index
    %c0_194 = arith.constant 0 : index
    %c0_195 = arith.constant 0 : index
    %692 = vector.load %arg8[%c7_193, %c0_194, %c0_195] : memref<8x8x128xf32, #tpu.memory_space<vmem>>, vector<1x8x128xf32>
    %693 = vector.shape_cast %692 : vector<1x8x128xf32> to vector<8x128xf32>
    %694 = vector.shape_cast %691 : vector<8x128xf32> to vector<1x8x128xf32>
    tpu.vector_store %arg8[%c7_193, %c0_194, %c0_195], %694 {strides = array<i32>} : memref<8x8x128xf32, #tpu.memory_space<vmem>>, vector<1x8x128xf32>,
    %c1_196 = arith.constant 1 : index
    %c0_197 = arith.constant 0 : index
    %c0_198 = arith.constant 0 : index
    %695 = vector.load %arg13[%c1_196, %c0_197, %c0_198] : memref<2x8x128xf32, #tpu.memory_space<vmem>>, vector<1x8x128xf32>
    %696 = vector.shape_cast %695 : vector<1x8x128xf32> to vector<8x128xf32>
    %697 = vector.shape_cast %687 : vector<8x128xf32> to vector<1x8x128xf32>
    tpu.vector_store %arg13[%c1_196, %c0_197, %c0_198], %697 {strides = array<i32>} : memref<2x8x128xf32, #tpu.memory_space<vmem>>, vector<1x8x128xf32>,
    %c1_199 = arith.constant 1 : index
    %c0_200 = arith.constant 0 : index
    %c0_201 = arith.constant 0 : index
    %698 = vector.load %arg14[%c1_199, %c0_200, %c0_201] : memref<2x8x128xf32, #tpu.memory_space<vmem>>, vector<1x8x128xf32>
    %699 = vector.shape_cast %698 : vector<1x8x128xf32> to vector<8x128xf32>
    %700 = vector.shape_cast %684 : vector<8x128xf32> to vector<1x8x128xf32>
    tpu.vector_store %arg14[%c1_199, %c0_200, %c0_201], %700 {strides = array<i32>} : memref<2x8x128xf32, #tpu.memory_space<vmem>>, vector<1x8x128xf32>,
    %c0_i32_202 = arith.constant 0 : i32
    %701 = arith.cmpi eq, %arg1, %c0_i32_202 : i32
    %702 = arith.extui %701 : i1 to i32
    %c0_i32_203 = arith.constant 0 : i32
    %703 = arith.cmpi ne, %702, %c0_i32_203 : i32
    scf.if %703 {
      %c0_204 = arith.constant 0 : index
      %c0_205 = arith.constant 0 : index
      %c0_206 = arith.constant 0 : index
      %704 = vector.load %arg13[%c0_204, %c0_205, %c0_206] : memref<2x8x128xf32, #tpu.memory_space<vmem>>, vector<2x8x128xf32>
      %c0_207 = arith.constant 0 : index
      %c0_208 = arith.constant 0 : index
      %c0_209 = arith.constant 0 : index
      %705 = vector.load %arg9[%c0_207, %c0_208, %c0_209] : memref<2x8x128xf32, #tpu.memory_space<vmem>>, vector<2x8x128xf32>
      tpu.vector_store %arg9[%c0_207, %c0_208, %c0_209], %704 {strides = array<i32>} : memref<2x8x128xf32, #tpu.memory_space<vmem>>, vector<2x8x128xf32>,
      %c0_210 = arith.constant 0 : index
      %c0_211 = arith.constant 0 : index
      %c0_212 = arith.constant 0 : index
      %706 = vector.load %arg14[%c0_210, %c0_211, %c0_212] : memref<2x8x128xf32, #tpu.memory_space<vmem>>, vector<2x8x128xf32>
      %c0_213 = arith.constant 0 : index
      %c0_214 = arith.constant 0 : index
      %c0_215 = arith.constant 0 : index
      %707 = vector.load %arg10[%c0_213, %c0_214, %c0_215] : memref<2x8x128xf32, #tpu.memory_space<vmem>>, vector<2x8x128xf32>
      tpu.vector_store %arg10[%c0_213, %c0_214, %c0_215], %706 {strides = array<i32>} : memref<2x8x128xf32, #tpu.memory_space<vmem>>, vector<2x8x128xf32>,
    } else {
    }
    return
  }
  func.func @transform_0(%arg0: i32, %arg1: i32) -> (i32, i32) {
    %c0_i32 = arith.constant 0 : i32
    %c0_i32_0 = arith.constant 0 : i32
    return %arg0, %c0_i32 : i32, i32
  }
  func.func @transform_1(%arg0: i32, %arg1: i32) -> (i32, i32, i32) {
    %c0_i32 = arith.constant 0 : i32
    %c0_i32_0 = arith.constant 0 : i32
    return %arg1, %arg0, %c0_i32 : i32, i32, i32
  }
  func.func @transform_2(%arg0: i32, %arg1: i32) -> (i32, i32) {
    %c0_i32 = arith.constant 0 : i32
    %c0_i32_0 = arith.constant 0 : i32
    %c0_i32_1 = arith.constant 0 : i32
    return %c0_i32, %c0_i32_0 : i32, i32
  }
  func.func @transform_3(%arg0: i32, %arg1: i32) -> (i32, i32) {
    %c0_i32 = arith.constant 0 : i32
    %c0_i32_0 = arith.constant 0 : i32
    %c0_i32_1 = arith.constant 0 : i32
    return %c0_i32, %c0_i32_0 : i32, i32
  }
  func.func @transform_4(%arg0: i32, %arg1: i32) -> (i32, i32) {
    %c0_i32 = arith.constant 0 : i32
    %c0_i32_0 = arith.constant 0 : i32
    %c0_i32_1 = arith.constant 0 : i32
    return %c0_i32, %c0_i32_0 : i32, i32
  }
  func.func @transform_5(%arg0: i32, %arg1: i32) -> (i32, i32) {
    %c0_i32 = arith.constant 0 : i32
    %c0_i32_0 = arith.constant 0 : i32
    %c0_i32_1 = arith.constant 0 : i32
    return %c0_i32, %c0_i32_0 : i32, i32
  }
  func.func @transform_6(%arg0: i32, %arg1: i32) -> (i32, i32, i32) {
    %c0_i32 = arith.constant 0 : i32
    %c0_i32_0 = arith.constant 0 : i32
    return %arg1, %arg0, %c0_i32 : i32, i32, i32
  }
  func.func @transform_7(%arg0: i32, %arg1: i32) -> (i32, i32, i32) {
    %c0_i32 = arith.constant 0 : i32
    %c0_i32_0 = arith.constant 0 : i32
    %c0_i32_1 = arith.constant 0 : i32
    return %c0_i32, %arg0, %c0_i32_0 : i32, i32, i32
  }
  func.func @transform_8(%arg0: i32, %arg1: i32) -> (i32, i32, i32) {
    %c0_i32 = arith.constant 0 : i32
    %c0_i32_0 = arith.constant 0 : i32
    %c0_i32_1 = arith.constant 0 : i32
    return %c0_i32, %arg0, %c0_i32_0 : i32, i32, i32
  }
}

</mosaic_0001>

<llo_original>
// kernel: tpu_custom_call.1
$region0: #{tpu_custom_call.1}
  #allocation0 [shape = 'u32[]', space=smem, size = 0x4, offset = 0x4, fixed_abs, tag = 'smem constant byte address 0x4 - core index']
  #allocation1 [shape = 'u32[72,128]{1,0:T(1,128)}', space=vmem, size = 0x9000, scoped, tag = 'internal scratch']
  #allocation2 [shape = 'f32[8,8,512]{2,1,0:T(8,128)}', space=vmem, size = 0x20000, scoped, tag = 'scratch operand']
  #allocation3 [shape = 'f32[8,8,128]{2,1,0:T(8,128)}', space=vmem, size = 0x8000, scoped, tag = 'scratch operand']
  #allocation4 [shape = 'f32[2,8,128]{2,1,0:T(8,128)}', space=vmem, size = 0x2000, scoped, tag = 'scratch operand']
  #allocation5 [shape = 'f32[2,8,128]{2,1,0:T(8,128)}', space=vmem, size = 0x2000, scoped, tag = 'scratch operand']
  %s0 = inlined_call_operand.vmem [shape: s32[8,1], index: 0, kind: input, shape index: {}]
  %s1 = inlined_call_operand.hbm [shape: f32[8,8,512], index: 1, kind: input, shape index: {}]
  %s2 = inlined_call_operand.hbm [shape: f32[128,512], index: 2, kind: input, shape index: {}]
  %s3 = inlined_call_operand.hbm [shape: f32[128,512], index: 3, kind: input, shape index: {}]
  %s4 = inlined_call_operand.hbm [shape: f32[128,512], index: 4, kind: input, shape index: {}]
  %s5 = inlined_call_operand.vmem [shape: f32[1,512], index: 5, kind: input, shape index: {}]
  %s6 = inlined_call_operand.hbm [shape: f32[8,8,128], index: 6, kind: output, shape index: {0}]
  %s7 = inlined_call_operand.hbm [shape: f32[2,8,128], index: 7, kind: output, shape index: {1}]
  %s8 = inlined_call_operand.hbm [shape: f32[2,8,128], index: 8, kind: output, shape index: {2}]
  %9 = xla_tuple %s6, %s7, %s8
  %s10 = sld [smem:[#allocation0]]
  $region74: #{tpu_custom_call.1} parent=0
    _
  %s12 = ssub.s32 1, %s10
  %s13 = scalar_select 0, %s12, %s10
  $region1: #{tpu_custom_call.1} parent=0
    #allocation6 [shape = 'u8[131072]{0}', space=vmem, size = 0x20000, scoped, tag = 'input window, operand 1, single buffered']
    #allocation7 [shape = 's32[1]{0}', space=sflag, size = 0x4, scoped, tag = 'scoped memory for tpu_custom_call.1']
    #allocation8 [shape = 's32[1]{0}', space=sflag, size = 0x4, scoped, tag = 'scoped memory for tpu_custom_call.1']
    #allocation9 [shape = 'u8[262144]{0}', space=vmem, size = 0x40000, scoped, tag = 'input window, operand 2, single buffered']
    #allocation10 [shape = 's32[1]{0}', space=sflag, size = 0x4, scoped, tag = 'scoped memory for tpu_custom_call.1']
    #allocation11 [shape = 'u8[262144]{0}', space=vmem, size = 0x40000, scoped, tag = 'input window, operand 3, single buffered']
    #allocation12 [shape = 'u8[262144]{0}', space=vmem, size = 0x40000, scoped, tag = 'input window, operand 4, single buffered']
    #allocation13 [shape = 's32[1]{0}', space=sflag, size = 0x4, scoped, tag = 'scoped memory for tpu_custom_call.1']
    #allocation14 [shape = 'u8[32768]{0}', space=vmem, size = 0x8000, scoped, tag = 'output window, operand 0, single buffered']
    #allocation15 [shape = 'u8[8192]{0}', space=vmem, size = 0x2000, scoped, tag = 'output window, operand 1, single buffered']
    #allocation16 [shape = 's32[1]{0}', space=sflag, size = 0x4, scoped, tag = 'scoped memory for tpu_custom_call.1']
    #allocation17 [shape = 'u8[8192]{0}', space=vmem, size = 0x2000, scoped, tag = 'output window, operand 2, single buffered']
    %14 = vsyncpa [#allocation7], 0
    %15 = vsyncpa [#allocation10], 0
    %16 = vsyncpa [#allocation13], 0
    %17 = vsyncpa [#allocation8], 0
    %18 = vsyncpa [#allocation16], 0
    // Predicated region
    $region2: #{tpu_custom_call.1} parent=1 // pred_check
      _
    $region3: #{tpu_custom_call.1} parent=1 // pred_check_branch
      %20 = sbr.rel (0) target = $region5
    $region4: #{tpu_custom_call.1} parent=1 // pred_region
      _
    $region5: #{tpu_custom_call.1} parent=1 // pred_fallthru
      _
    // Predicated region
    $region6: #{tpu_custom_call.1} parent=1 // pred_check
      _
    $region7: #{tpu_custom_call.1} parent=1 // pred_check_branch
      %22 = sbr.rel (0) target = $region9
    $region8: #{tpu_custom_call.1} parent=1 // pred_region
      %24 = vsyncadd [#allocation7], 0
      %s25 = sshll.u32 %s1, 4
      %s26 = int_to_ptr.hbm [resolvable:$true] %s25
      %s27 = sshll.u32 [#allocation6], 4
      %s28 = int_to_ptr.vmem [resolvable:$true] %s27
      %33 = dma.hbm_to_vmem [thread:$0]  %s26, 4096, %s28, [#allocation7], 512, 512, 32
    $region9: #{tpu_custom_call.1} parent=1 // pred_fallthru
      _
    // Predicated region
    $region10: #{tpu_custom_call.1} parent=1 // pred_check
      _
    $region11: #{tpu_custom_call.1} parent=1 // pred_check_branch
      %35 = sbr.rel (0) target = $region13
    $region12: #{tpu_custom_call.1} parent=1 // pred_region
      %37 = vsyncadd [#allocation10], 0
      %s38 = sshll.u32 %s2, 4
      %s39 = int_to_ptr.hbm [resolvable:$true] %s38
      %s40 = sshll.u32 [#allocation9], 4
      %s41 = int_to_ptr.vmem [resolvable:$true] %s40
      %46 = dma.hbm_to_vmem [thread:$0]  %s39, 8192, %s41, [#allocation10], 512, 512, 32
    $region13: #{tpu_custom_call.1} parent=1 // pred_fallthru
      _
    // Predicated region
    $region14: #{tpu_custom_call.1} parent=1 // pred_check
      _
    $region15: #{tpu_custom_call.1} parent=1 // pred_check_branch
      %48 = sbr.rel (0) target = $region17
    $region16: #{tpu_custom_call.1} parent=1 // pred_region
      %50 = vsyncadd [#allocation10], 0
      %s51 = sshll.u32 %s3, 4
      %s52 = int_to_ptr.hbm [resolvable:$true] %s51
      %s53 = sshll.u32 [#allocation11], 4
      %s54 = int_to_ptr.vmem [resolvable:$true] %s53
      %59 = dma.hbm_to_vmem [thread:$0]  %s52, 8192, %s54, [#allocation10], 512, 512, 32
    $region17: #{tpu_custom_call.1} parent=1 // pred_fallthru
      _
    // Predicated region
    $region18: #{tpu_custom_call.1} parent=1 // pred_check
      _
    $region19: #{tpu_custom_call.1} parent=1 // pred_check_branch
      %61 = sbr.rel (0) target = $region21
    $region20: #{tpu_custom_call.1} parent=1 // pred_region
      %63 = vsyncadd [#allocation13], 0
      %s64 = sshll.u32 %s4, 4
      %s65 = int_to_ptr.hbm [resolvable:$true] %s64
      %s66 = sshll.u32 [#allocation12], 4
      %s67 = int_to_ptr.vmem [resolvable:$true] %s66
      %72 = dma.hbm_to_vmem [thread:$0]  %s65, 8192, %s67, [#allocation13], 512, 512, 32
    $region21: #{tpu_custom_call.1} parent=1 // pred_fallthru
      _
    // Predicated region
    $region22: #{tpu_custom_call.1} parent=1 // pred_check
      _
    $region23: #{tpu_custom_call.1} parent=1 // pred_check_branch
      %74 = sbr.rel (0) target = $region25
    $region24: #{tpu_custom_call.1} parent=1 // pred_region
      _
    $region25: #{tpu_custom_call.1} parent=1 // pred_fallthru
      _
    // Predicated region
    $region26: #{tpu_custom_call.1} parent=1 // pred_check
      _
    $region27: #{tpu_custom_call.1} parent=1 // pred_check_branch
      %76 = sbr.rel (0) target = $region29
    $region28: #{tpu_custom_call.1} parent=1 // pred_region
      %78 = dma.done [#allocation7], 4096
    $region29: #{tpu_custom_call.1} parent=1 // pred_fallthru
      _
    // Predicated region
    $region30: #{tpu_custom_call.1} parent=1 // pred_check
      _
    $region31: #{tpu_custom_call.1} parent=1 // pred_check_branch
      %80 = sbr.rel (0) target = $region33
    $region32: #{tpu_custom_call.1} parent=1 // pred_region
      %82 = dma.done [#allocation10], 8192
    $region33: #{tpu_custom_call.1} parent=1 // pred_fallthru
      _
    // Predicated region
    $region34: #{tpu_custom_call.1} parent=1 // pred_check
      _
    $region35: #{tpu_custom_call.1} parent=1 // pred_check_branch
      %84 = sbr.rel (0) target = $region37
    $region36: #{tpu_custom_call.1} parent=1 // pred_region
      %86 = dma.done [#allocation10], 8192
    $region37: #{tpu_custom_call.1} parent=1 // pred_fallthru
      _
    // Predicated region
    $region38: #{tpu_custom_call.1} parent=1 // pred_check
      _
    $region39: #{tpu_custom_call.1} parent=1 // pred_check_branch
      %88 = sbr.rel (0) target = $region41
    $region40: #{tpu_custom_call.1} parent=1 // pred_region
      %90 = dma.done [#allocation13], 8192
    $region41: #{tpu_custom_call.1} parent=1 // pred_fallthru
      _
    %s91 = smul.u32 0, 8
    %p92 = scmp.eq.s32.totalorder 0, 0
    // Predicated region
    $region42: #{tpu_custom_call.1} parent=1 // pred_check
      %p93 = pneg %p92
    $region43: #{tpu_custom_call.1} parent=1 // pred_check_branch
      %95 = sbr.rel (%p93) target = $region45
    $region44: #{tpu_custom_call.1} parent=1 // pred_region
      %96 = vst [vmem:[#allocation4] sm:$0xff] 0.0
      %97 = vst [vmem:[#allocation4 + $0x8] sm:$0xff] 0.0
      %98 = vst [vmem:[#allocation5] sm:$0xff] 0.0
      %99 = vst [vmem:[#allocation5 + $0x8] sm:$0xff] 0.0
    $region45: #{tpu_custom_call.1} parent=1 // pred_fallthru
      _
    %v100 = vld [vmem:[%s0] sm:$0xff]
    %v101 = vstv %s91
    %vm102 = vcmp.lt.s32.totalorder %v101, %v100
    %s103 = sadd.s32 %s91, 1
    %v104 = vstv %s103
    %vm105 = vcmp.lt.s32.totalorder %v104, %v100
    %s106 = sadd.s32 %s91, 2
    %v107 = vstv %s106
    %vm108 = vcmp.lt.s32.totalorder %v107, %v100
    %s109 = sadd.s32 %s91, 3
    %v110 = vstv %s109
    %vm111 = vcmp.lt.s32.totalorder %v110, %v100
    %s112 = sadd.s32 %s91, 4
    %v113 = vstv %s112
    %vm114 = vcmp.lt.s32.totalorder %v113, %v100
    %s115 = sadd.s32 %s91, 5
    %v116 = vstv %s115
    %vm117 = vcmp.lt.s32.totalorder %v116, %v100
    %s118 = sadd.s32 %s91, 6
    %v119 = vstv %s118
    %vm120 = vcmp.lt.s32.totalorder %v119, %v100
    %s121 = sadd.s32 %s91, 7
    %v122 = vstv %s121
    %vm123 = vcmp.lt.s32.totalorder %v122, %v100
    %v124 = vld [vmem:[#allocation9] sm:$0xff]
    %v125 = vld [vmem:[#allocation9 + $0x8] sm:$0xff]
    %v126 = vld [vmem:[#allocation9 + $0x10] sm:$0xff]
    %v127 = vld [vmem:[#allocation9 + $0x18] sm:$0xff]
    %v128 = vld [vmem:[#allocation9 + $0x20] sm:$0xff]
    %v129 = vld [vmem:[#allocation9 + $0x28] sm:$0xff]
    %v130 = vld [vmem:[#allocation9 + $0x30] sm:$0xff]
    %v131 = vld [vmem:[#allocation9 + $0x38] sm:$0xff]
    %v132 = vld [vmem:[#allocation9 + $0x40] sm:$0xff]
    %v133 = vld [vmem:[#allocation9 + $0x48] sm:$0xff]
    %v134 = vld [vmem:[#allocation9 + $0x50] sm:$0xff]
    %v135 = vld [vmem:[#allocation9 + $0x58] sm:$0xff]
    %v136 = vld [vmem:[#allocation9 + $0x60] sm:$0xff]
    %v137 = vld [vmem:[#allocation9 + $0x68] sm:$0xff]
    %v138 = vld [vmem:[#allocation9 + $0x70] sm:$0xff]
    %v139 = vld [vmem:[#allocation9 + $0x78] sm:$0xff]
    %v140 = vld [vmem:[#allocation9 + $0x80] sm:$0xff]
    %v141 = vld [vmem:[#allocation9 + $0x88] sm:$0xff]
    %v142 = vld [vmem:[#allocation9 + $0x90] sm:$0xff]
    %v143 = vld [vmem:[#allocation9 + $0x98] sm:$0xff]
    %v144 = vld [vmem:[#allocation9 + $0xa0] sm:$0xff]
    %v145 = vld [vmem:[#allocation9 + $0xa8] sm:$0xff]
    %v146 = vld [vmem:[#allocation9 + $0xb0] sm:$0xff]
    %v147 = vld [vmem:[#allocation9 + $0xb8] sm:$0xff]
    %v148 = vld [vmem:[#allocation9 + $0xc0] sm:$0xff]
    %v149 = vld [vmem:[#allocation9 + $0xc8] sm:$0xff]
    %v150 = vld [vmem:[#allocation9 + $0xd0] sm:$0xff]
    %v151 = vld [vmem:[#allocation9 + $0xd8] sm:$0xff]
    %v152 = vld [vmem:[#allocation9 + $0xe0] sm:$0xff]
    %v153 = vld [vmem:[#allocation9 + $0xe8] sm:$0xff]
    %v154 = vld [vmem:[#allocation9 + $0xf0] sm:$0xff]
    %v155 = vld [vmem:[#allocation9 + $0xf8] sm:$0xff]
    %v156 = vld [vmem:[#allocation9 + $0x100] sm:$0xff]
    %v157 = vld [vmem:[#allocation9 + $0x108] sm:$0xff]
    %v158 = vld [vmem:[#allocation9 + $0x110] sm:$0xff]
    %v159 = vld [vmem:[#allocation9 + $0x118] sm:$0xff]
    %v160 = vld [vmem:[#allocation9 + $0x120] sm:$0xff]
    %v161 = vld [vmem:[#allocation9 + $0x128] sm:$0xff]
    %v162 = vld [vmem:[#allocation9 + $0x130] sm:$0xff]
    %v163 = vld [vmem:[#allocation9 + $0x138] sm:$0xff]
    %v164 = vld [vmem:[#allocation9 + $0x140] sm:$0xff]
    %v165 = vld [vmem:[#allocation9 + $0x148] sm:$0xff]
    %v166 = vld [vmem:[#allocation9 + $0x150] sm:$0xff]
    %v167 = vld [vmem:[#allocation9 + $0x158] sm:$0xff]
    %v168 = vld [vmem:[#allocation9 + $0x160] sm:$0xff]
    %v169 = vld [vmem:[#allocation9 + $0x168] sm:$0xff]
    %v170 = vld [vmem:[#allocation9 + $0x170] sm:$0xff]
    %v171 = vld [vmem:[#allocation9 + $0x178] sm:$0xff]
    %v172 = vld [vmem:[#allocation9 + $0x180] sm:$0xff]
    %v173 = vld [vmem:[#allocation9 + $0x188] sm:$0xff]
    %v174 = vld [vmem:[#allocation9 + $0x190] sm:$0xff]
    %v175 = vld [vmem:[#allocation9 + $0x198] sm:$0xff]
    %v176 = vld [vmem:[#allocation9 + $0x1a0] sm:$0xff]
    %v177 = vld [vmem:[#allocation9 + $0x1a8] sm:$0xff]
    %v178 = vld [vmem:[#allocation9 + $0x1b0] sm:$0xff]
    %v179 = vld [vmem:[#allocation9 + $0x1b8] sm:$0xff]
    %v180 = vld [vmem:[#allocation9 + $0x1c0] sm:$0xff]
    %v181 = vld [vmem:[#allocation9 + $0x1c8] sm:$0xff]
    %v182 = vld [vmem:[#allocation9 + $0x1d0] sm:$0xff]
    %v183 = vld [vmem:[#allocation9 + $0x1d8] sm:$0xff]
    %v184 = vld [vmem:[#allocation9 + $0x1e0] sm:$0xff]
    %v185 = vld [vmem:[#allocation9 + $0x1e8] sm:$0xff]
    %v186 = vld [vmem:[#allocation9 + $0x1f0] sm:$0xff]
    %v187 = vld [vmem:[#allocation9 + $0x1f8] sm:$0xff]
    %v188 = vld [vmem:[#allocation4] sm:$0xff]
    %v189 = vld [vmem:[#allocation5] sm:$0xff]
    %v190 = vld [vmem:[#allocation6] sm:$0xff]
    %v191 = vld [vmem:[#allocation6 + $0x8] sm:$0xff]
    %v192 = vld [vmem:[#allocation6 + $0x10] sm:$0xff]
    %v193 = vld [vmem:[#allocation6 + $0x18] sm:$0xff]
    %194 = vmatpush.msra.mxu0 %v184
    %195 = vmatpush.msra.mxu0 %v180
    %196 = vmatpush.msra.mxu0 %v176
    %197 = vmatpush.msra.mxu0 %v172
    %198 = vmatpush.msra.mxu0 %v168
    %199 = vmatpush.msra.mxu0 %v164
    %200 = vmatpush.msra.mxu0 %v160
    %201 = vmatpush.msra.mxu0 %v156
    %202 = vmatpush.msra.mxu0 %v152
    %203 = vmatpush.msra.mxu0 %v148
    %204 = vmatpush.msra.mxu0 %v144
    %205 = vmatpush.msra.mxu0 %v140
    %206 = vmatpush.msra.mxu0 %v136
    %207 = vmatpush.msra.mxu0 %v132
    %208 = vmatpush.msra.mxu0 %v128
    %209 = vmatpush.msra.mxu0 %v124
    %210 = vmatmul.f32.gmra.mxu0 %v188
    %v211 = vpop.f32.mrf.mxu0
    %v212 = vadd.f32 0.0, %v211
    %213 = vdwg.mxu0
    %214 = vmatpush.msra.mxu0 %v185
    %215 = vmatpush.msra.mxu0 %v181
    %216 = vmatpush.msra.mxu0 %v177
    %217 = vmatpush.msra.mxu0 %v173
    %218 = vmatpush.msra.mxu0 %v169
    %219 = vmatpush.msra.mxu0 %v165
    %220 = vmatpush.msra.mxu0 %v161
    %221 = vmatpush.msra.mxu0 %v157
    %222 = vmatpush.msra.mxu0 %v153
    %223 = vmatpush.msra.mxu0 %v149
    %224 = vmatpush.msra.mxu0 %v145
    %225 = vmatpush.msra.mxu0 %v141
    %226 = vmatpush.msra.mxu0 %v137
    %227 = vmatpush.msra.mxu0 %v133
    %228 = vmatpush.msra.mxu0 %v129
    %229 = vmatpush.msra.mxu0 %v125
    %230 = vmatmul.f32.gmra.mxu0 %v188
    %v231 = vpop.f32.mrf.mxu0
    %v232 = vadd.f32 0.0, %v231
    %233 = vdwg.mxu0
    %234 = vmatpush.msra.mxu0 %v186
    %235 = vmatpush.msra.mxu0 %v182
    %236 = vmatpush.msra.mxu0 %v178
    %237 = vmatpush.msra.mxu0 %v174
    %238 = vmatpush.msra.mxu0 %v170
    %239 = vmatpush.msra.mxu0 %v166
    %240 = vmatpush.msra.mxu0 %v162
    %241 = vmatpush.msra.mxu0 %v158
    %242 = vmatpush.msra.mxu0 %v154
    %243 = vmatpush.msra.mxu0 %v150
    %244 = vmatpush.msra.mxu0 %v146
    %245 = vmatpush.msra.mxu0 %v142
    %246 = vmatpush.msra.mxu0 %v138
    %247 = vmatpush.msra.mxu0 %v134
    %248 = vmatpush.msra.mxu0 %v130
    %249 = vmatpush.msra.mxu0 %v126
    %250 = vmatmul.f32.gmra.mxu0 %v188
    %v251 = vpop.f32.mrf.mxu0
    %v252 = vadd.f32 0.0, %v251
    %253 = vdwg.mxu0
    %254 = vmatpush.msra.mxu0 %v187
    %255 = vmatpush.msra.mxu0 %v183
    %256 = vmatpush.msra.mxu0 %v179
    %257 = vmatpush.msra.mxu0 %v175
    %258 = vmatpush.msra.mxu0 %v171
    %259 = vmatpush.msra.mxu0 %v167
    %260 = vmatpush.msra.mxu0 %v163
    %261 = vmatpush.msra.mxu0 %v159
    %262 = vmatpush.msra.mxu0 %v155
    %263 = vmatpush.msra.mxu0 %v151
    %264 = vmatpush.msra.mxu0 %v147
    %265 = vmatpush.msra.mxu0 %v143
    %266 = vmatpush.msra.mxu0 %v139
    %267 = vmatpush.msra.mxu0 %v135
    %268 = vmatpush.msra.mxu0 %v131
    %269 = vmatpush.msra.mxu0 %v127
    %270 = vmatmul.f32.gmra.mxu0 %v188
    %v271 = vpop.f32.mrf.mxu0
    %v272 = vadd.f32 0.0, %v271
    %273 = vdwg.mxu0
    %v274 = vadd.f32 %v190, %v212
    %v275 = vadd.f32 %v191, %v232
    %v276 = vadd.f32 %v192, %v252
    %v277 = vadd.f32 %v193, %v272
    %v278 = vxor.u32 %v274, 2147483648
    %v279 = vmul.f32 %v278, 1.442695
    %v280 = vpow.pop %v279
    %v281 = vadd.f32 %v280, 1.0
    %v282 = vrcp.pop %v281
    %v283 = vmul.f32 %v281, %v282
    %v284 = vsub.f32 1.0, %v283
    %v285 = vmul.f32 %v282, %v284
    %v286 = vadd.f32 %v282, %v285
    %vm287 = vweird.f32 %v281
    %vm288 = vweird.f32 %v282
    %vm289 = vmor %vm287, %vm288
    %v290 = vsel %vm289, %v282, %v286
    %v291 = vand.u32 2147483647, %v281
    %vm292 = vcmp.eq.f32.partialorder %v291, 8.507059e+37
    %v293 = vand.u32 %v281, 2147483648
    %v294 = vor.u32 1.1754944e-38, %v293
    %v295 = vsel %vm292, %v294, %v290
    %v296 = vmul.f32 1.0, %v295
    %v297 = vxor.u32 %v275, 2147483648
    %v298 = vmul.f32 %v297, 1.442695
    %v299 = vpow.pop %v298
    %v300 = vadd.f32 %v299, 1.0
    %v301 = vrcp.pop %v300
    %v302 = vmul.f32 %v300, %v301
    %v303 = vsub.f32 1.0, %v302
    %v304 = vmul.f32 %v301, %v303
    %v305 = vadd.f32 %v301, %v304
    %vm306 = vweird.f32 %v300
    %vm307 = vweird.f32 %v301
    %vm308 = vmor %vm306, %vm307
    %v309 = vsel %vm308, %v301, %v305
    %v310 = vand.u32 2147483647, %v300
    %vm311 = vcmp.eq.f32.partialorder %v310, 8.507059e+37
    %v312 = vand.u32 %v300, 2147483648
    %v313 = vor.u32 1.1754944e-38, %v312
    %v314 = vsel %vm311, %v313, %v309
    %v315 = vmul.f32 1.0, %v314
    %v316 = vtanh.pop %v276
    %v317 = vxor.u32 %v277, 2147483648
    %v318 = vmul.f32 %v317, 1.442695
    %v319 = vpow.pop %v318
    %v320 = vadd.f32 %v319, 1.0
    %v321 = vrcp.pop %v320
    %v322 = vmul.f32 %v320, %v321
    %v323 = vsub.f32 1.0, %v322
    %v324 = vmul.f32 %v321, %v323
    %v325 = vadd.f32 %v321, %v324
    %vm326 = vweird.f32 %v320
    %vm327 = vweird.f32 %v321
    %vm328 = vmor %vm326, %vm327
    %v329 = vsel %vm328, %v321, %v325
    %v330 = vand.u32 2147483647, %v320
    %vm331 = vcmp.eq.f32.partialorder %v330, 8.507059e+37
    %v332 = vand.u32 %v320, 2147483648
    %v333 = vor.u32 1.1754944e-38, %v332
    %v334 = vsel %vm331, %v333, %v329
    %v335 = vmul.f32 1.0, %v334
    %v336 = vmul.f32 %v315, %v189
    %v337 = vmul.f32 %v296, %v316
    %v338 = vadd.f32 %v336, %v337
    %v339 = vtanh.pop %v338
    %v340 = vmul.f32 %v335, %v339
    %v341 = vsel %vm102, 1, 0
    %342 = vset.pattern.permute.xlu0 0
    %343 = vperm.xlu0 %342, %v341
    %v344 = vpop.permute.xlu0 %343
    %vm345 = vcmp.eq.s32.totalorder %v344, 1
    %v346 = vsel %vm345, %v338, %v189
    %v347 = vsel %vm345, %v340, %v188
    %348 = vst [vmem:[#allocation3] sm:$0xff] %v340
    %s349 = scalar_lea.vmem [#allocation6], 32
    %v350 = vld [vmem:[%s349] sm:$0xff]
    %v351 = vld [vmem:[%s349 + $0x8] sm:$0xff]
    %v352 = vld [vmem:[%s349 + $0x10] sm:$0xff]
    %v353 = vld [vmem:[%s349 + $0x18] sm:$0xff]
    %354 = vmatpush.msra.mxu0 %v184
    %355 = vmatpush.msra.mxu0 %v180
    %356 = vmatpush.msra.mxu0 %v176
    %357 = vmatpush.msra.mxu0 %v172
    %358 = vmatpush.msra.mxu0 %v168
    %359 = vmatpush.msra.mxu0 %v164
    %360 = vmatpush.msra.mxu0 %v160
    %361 = vmatpush.msra.mxu0 %v156
    %362 = vmatpush.msra.mxu0 %v152
    %363 = vmatpush.msra.mxu0 %v148
    %364 = vmatpush.msra.mxu0 %v144
    %365 = vmatpush.msra.mxu0 %v140
    %366 = vmatpush.msra.mxu0 %v136
    %367 = vmatpush.msra.mxu0 %v132
    %368 = vmatpush.msra.mxu0 %v128
    %369 = vmatpush.msra.mxu0 %v124
    %370 = vmatmul.f32.gmra.mxu0 %v347
    %v371 = vpop.f32.mrf.mxu0
    %v372 = vadd.f32 0.0, %v371
    %373 = vdwg.mxu0
    %374 = vmatpush.msra.mxu0 %v185
    %375 = vmatpush.msra.mxu0 %v181
    %376 = vmatpush.msra.mxu0 %v177
    %377 = vmatpush.msra.mxu0 %v173
    %378 = vmatpush.msra.mxu0 %v169
    %379 = vmatpush.msra.mxu0 %v165
    %380 = vmatpush.msra.mxu0 %v161
    %381 = vmatpush.msra.mxu0 %v157
    %382 = vmatpush.msra.mxu0 %v153
    %383 = vmatpush.msra.mxu0 %v149
    %384 = vmatpush.msra.mxu0 %v145
    %385 = vmatpush.msra.mxu0 %v141
    %386 = vmatpush.msra.mxu0 %v137
    %387 = vmatpush.msra.mxu0 %v133
    %388 = vmatpush.msra.mxu0 %v129
    %389 = vmatpush.msra.mxu0 %v125
    %390 = vmatmul.f32.gmra.mxu0 %v347
    %v391 = vpop.f32.mrf.mxu0
    %v392 = vadd.f32 0.0, %v391
    %393 = vdwg.mxu0
    %394 = vmatpush.msra.mxu0 %v186
    %395 = vmatpush.msra.mxu0 %v182
    %396 = vmatpush.msra.mxu0 %v178
    %397 = vmatpush.msra.mxu0 %v174
    %398 = vmatpush.msra.mxu0 %v170
    %399 = vmatpush.msra.mxu0 %v166
    %400 = vmatpush.msra.mxu0 %v162
    %401 = vmatpush.msra.mxu0 %v158
    %402 = vmatpush.msra.mxu0 %v154
    %403 = vmatpush.msra.mxu0 %v150
    %404 = vmatpush.msra.mxu0 %v146
    %405 = vmatpush.msra.mxu0 %v142
    %406 = vmatpush.msra.mxu0 %v138
    %407 = vmatpush.msra.mxu0 %v134
    %408 = vmatpush.msra.mxu0 %v130
    %409 = vmatpush.msra.mxu0 %v126
    %410 = vmatmul.f32.gmra.mxu0 %v347
    %v411 = vpop.f32.mrf.mxu0
    %v412 = vadd.f32 0.0, %v411
    %413 = vdwg.mxu0
    %414 = vmatpush.msra.mxu0 %v187
    %415 = vmatpush.msra.mxu0 %v183
    %416 = vmatpush.msra.mxu0 %v179
    %417 = vmatpush.msra.mxu0 %v175
    %418 = vmatpush.msra.mxu0 %v171
    %419 = vmatpush.msra.mxu0 %v167
    %420 = vmatpush.msra.mxu0 %v163
    %421 = vmatpush.msra.mxu0 %v159
    %422 = vmatpush.msra.mxu0 %v155
    %423 = vmatpush.msra.mxu0 %v151
    %424 = vmatpush.msra.mxu0 %v147
    %425 = vmatpush.msra.mxu0 %v143
    %426 = vmatpush.msra.mxu0 %v139
    %427 = vmatpush.msra.mxu0 %v135
    %428 = vmatpush.msra.mxu0 %v131
    %429 = vmatpush.msra.mxu0 %v127
    %430 = vmatmul.f32.gmra.mxu0 %v347
    %v431 = vpop.f32.mrf.mxu0
    %v432 = vadd.f32 0.0, %v431
    %433 = vdwg.mxu0
    %v434 = vadd.f32 %v350, %v372
    %v435 = vadd.f32 %v351, %v392
    %v436 = vadd.f32 %v352, %v412
    %v437 = vadd.f32 %v353, %v432
    %v438 = vxor.u32 %v434, 2147483648
    %v439 = vmul.f32 %v438, 1.442695
    %v440 = vpow.pop %v439
    %v441 = vadd.f32 %v440, 1.0
    %v442 = vrcp.pop %v441
    %v443 = vmul.f32 %v441, %v442
    %v444 = vsub.f32 1.0, %v443
    %v445 = vmul.f32 %v442, %v444
    %v446 = vadd.f32 %v442, %v445
    %vm447 = vweird.f32 %v441
    %vm448 = vweird.f32 %v442
    %vm449 = vmor %vm447, %vm448
    %v450 = vsel %vm449, %v442, %v446
    %v451 = vand.u32 2147483647, %v441
    %vm452 = vcmp.eq.f32.partialorder %v451, 8.507059e+37
    %v453 = vand.u32 %v441, 2147483648
    %v454 = vor.u32 1.1754944e-38, %v453
    %v455 = vsel %vm452, %v454, %v450
    %v456 = vmul.f32 1.0, %v455
    %v457 = vxor.u32 %v435, 2147483648
    %v458 = vmul.f32 %v457, 1.442695
    %v459 = vpow.pop %v458
    %v460 = vadd.f32 %v459, 1.0
    %v461 = vrcp.pop %v460
    %v462 = vmul.f32 %v460, %v461
    %v463 = vsub.f32 1.0, %v462
    %v464 = vmul.f32 %v461, %v463
    %v465 = vadd.f32 %v461, %v464
    %vm466 = vweird.f32 %v460
    %vm467 = vweird.f32 %v461
    %vm468 = vmor %vm466, %vm467
    %v469 = vsel %vm468, %v461, %v465
    %v470 = vand.u32 2147483647, %v460
    %vm471 = vcmp.eq.f32.partialorder %v470, 8.507059e+37
    %v472 = vand.u32 %v460, 2147483648
    %v473 = vor.u32 1.1754944e-38, %v472
    %v474 = vsel %vm471, %v473, %v469
    %v475 = vmul.f32 1.0, %v474
    %v476 = vtanh.pop %v436
    %v477 = vxor.u32 %v437, 2147483648
    %v478 = vmul.f32 %v477, 1.442695
    %v479 = vpow.pop %v478
    %v480 = vadd.f32 %v479, 1.0
    %v481 = vrcp.pop %v480
    %v482 = vmul.f32 %v480, %v481
    %v483 = vsub.f32 1.0, %v482
    %v484 = vmul.f32 %v481, %v483
    %v485 = vadd.f32 %v481, %v484
    %vm486 = vweird.f32 %v480
    %vm487 = vweird.f32 %v481
    %vm488 = vmor %vm486, %vm487
    %v489 = vsel %vm488, %v481, %v485
    %v490 = vand.u32 2147483647, %v480
    %vm491 = vcmp.eq.f32.partialorder %v490, 8.507059e+37
    %v492 = vand.u32 %v480, 2147483648
    %v493 = vor.u32 1.1754944e-38, %v492
    %v494 = vsel %vm491, %v493, %v489
    %v495 = vmul.f32 1.0, %v494
    %v496 = vmul.f32 %v475, %v346
    %v497 = vmul.f32 %v456, %v476
    %v498 = vadd.f32 %v496, %v497
    %v499 = vtanh.pop %v498
    %v500 = vmul.f32 %v495, %v499
    %v501 = vsel %vm105, 1, 0
    %502 = vset.pattern.permute.xlu0 0
    %503 = vperm.xlu0 %502, %v501
    %v504 = vpop.permute.xlu0 %503
    %vm505 = vcmp.eq.s32.totalorder %v504, 1
    %v506 = vsel %vm505, %v498, %v346
    %v507 = vsel %vm505, %v500, %v347
    %s508 = scalar_lea.vmem [#allocation3], 8
    %509 = vst [vmem:[%s508] sm:$0xff] %v500
    %s510 = scalar_lea.vmem [#allocation6], 64
    %v511 = vld [vmem:[%s510] sm:$0xff]
    %v512 = vld [vmem:[%s510 + $0x8] sm:$0xff]
    %v513 = vld [vmem:[%s510 + $0x10] sm:$0xff]
    %v514 = vld [vmem:[%s510 + $0x18] sm:$0xff]
    %515 = vmatpush.msra.mxu0 %v184
    %516 = vmatpush.msra.mxu0 %v180
    %517 = vmatpush.msra.mxu0 %v176
    %518 = vmatpush.msra.mxu0 %v172
    %519 = vmatpush.msra.mxu0 %v168
    %520 = vmatpush.msra.mxu0 %v164
    %521 = vmatpush.msra.mxu0 %v160
    %522 = vmatpush.msra.mxu0 %v156
    %523 = vmatpush.msra.mxu0 %v152
    %524 = vmatpush.msra.mxu0 %v148
    %525 = vmatpush.msra.mxu0 %v144
    %526 = vmatpush.msra.mxu0 %v140
    %527 = vmatpush.msra.mxu0 %v136
    %528 = vmatpush.msra.mxu0 %v132
    %529 = vmatpush.msra.mxu0 %v128
    %530 = vmatpush.msra.mxu0 %v124
    %531 = vmatmul.f32.gmra.mxu0 %v507
    %v532 = vpop.f32.mrf.mxu0
    %v533 = vadd.f32 0.0, %v532
    %534 = vdwg.mxu0
    %535 = vmatpush.msra.mxu0 %v185
    %536 = vmatpush.msra.mxu0 %v181
    %537 = vmatpush.msra.mxu0 %v177
    %538 = vmatpush.msra.mxu0 %v173
    %539 = vmatpush.msra.mxu0 %v169
    %540 = vmatpush.msra.mxu0 %v165
    %541 = vmatpush.msra.mxu0 %v161
    %542 = vmatpush.msra.mxu0 %v157
    %543 = vmatpush.msra.mxu0 %v153
    %544 = vmatpush.msra.mxu0 %v149
    %545 = vmatpush.msra.mxu0 %v145
    %546 = vmatpush.msra.mxu0 %v141
    %547 = vmatpush.msra.mxu0 %v137
    %548 = vmatpush.msra.mxu0 %v133
    %549 = vmatpush.msra.mxu0 %v129
    %550 = vmatpush.msra.mxu0 %v125
    %551 = vmatmul.f32.gmra.mxu0 %v507
    %v552 = vpop.f32.mrf.mxu0
    %v553 = vadd.f32 0.0, %v552
    %554 = vdwg.mxu0
    %555 = vmatpush.msra.mxu0 %v186
    %556 = vmatpush.msra.mxu0 %v182
    %557 = vmatpush.msra.mxu0 %v178
    %558 = vmatpush.msra.mxu0 %v174
    %559 = vmatpush.msra.mxu0 %v170
    %560 = vmatpush.msra.mxu0 %v166
    %561 = vmatpush.msra.mxu0 %v162
    %562 = vmatpush.msra.mxu0 %v158
    %563 = vmatpush.msra.mxu0 %v154
    %564 = vmatpush.msra.mxu0 %v150
    %565 = vmatpush.msra.mxu0 %v146
    %566 = vmatpush.msra.mxu0 %v142
    %567 = vmatpush.msra.mxu0 %v138
    %568 = vmatpush.msra.mxu0 %v134
    %569 = vmatpush.msra.mxu0 %v130
    %570 = vmatpush.msra.mxu0 %v126
    %571 = vmatmul.f32.gmra.mxu0 %v507
    %v572 = vpop.f32.mrf.mxu0
    %v573 = vadd.f32 0.0, %v572
    %574 = vdwg.mxu0
    %575 = vmatpush.msra.mxu0 %v187
    %576 = vmatpush.msra.mxu0 %v183
    %577 = vmatpush.msra.mxu0 %v179
    %578 = vmatpush.msra.mxu0 %v175
    %579 = vmatpush.msra.mxu0 %v171
    %580 = vmatpush.msra.mxu0 %v167
    %581 = vmatpush.msra.mxu0 %v163
    %582 = vmatpush.msra.mxu0 %v159
    %583 = vmatpush.msra.mxu0 %v155
    %584 = vmatpush.msra.mxu0 %v151
    %585 = vmatpush.msra.mxu0 %v147
    %586 = vmatpush.msra.mxu0 %v143
    %587 = vmatpush.msra.mxu0 %v139
    %588 = vmatpush.msra.mxu0 %v135
    %589 = vmatpush.msra.mxu0 %v131
    %590 = vmatpush.msra.mxu0 %v127
    %591 = vmatmul.f32.gmra.mxu0 %v507
    %v592 = vpop.f32.mrf.mxu0
    %v593 = vadd.f32 0.0, %v592
    %594 = vdwg.mxu0
    %v595 = vadd.f32 %v511, %v533
    %v596 = vadd.f32 %v512, %v553
    %v597 = vadd.f32 %v513, %v573
    %v598 = vadd.f32 %v514, %v593
    %v599 = vxor.u32 %v595, 2147483648
    %v600 = vmul.f32 %v599, 1.442695
    %v601 = vpow.pop %v600
    %v602 = vadd.f32 %v601, 1.0
    %v603 = vrcp.pop %v602
    %v604 = vmul.f32 %v602, %v603
    %v605 = vsub.f32 1.0, %v604
    %v606 = vmul.f32 %v603, %v605
    %v607 = vadd.f32 %v603, %v606
    %vm608 = vweird.f32 %v602
    %vm609 = vweird.f32 %v603
    %vm610 = vmor %vm608, %vm609
    %v611 = vsel %vm610, %v603, %v607
    %v612 = vand.u32 2147483647, %v602
    %vm613 = vcmp.eq.f32.partialorder %v612, 8.507059e+37
    %v614 = vand.u32 %v602, 2147483648
    %v615 = vor.u32 1.1754944e-38, %v614
    %v616 = vsel %vm613, %v615, %v611
    %v617 = vmul.f32 1.0, %v616
    %v618 = vxor.u32 %v596, 2147483648
    %v619 = vmul.f32 %v618, 1.442695
    %v620 = vpow.pop %v619
    %v621 = vadd.f32 %v620, 1.0
    %v622 = vrcp.pop %v621
    %v623 = vmul.f32 %v621, %v622
    %v624 = vsub.f32 1.0, %v623
    %v625 = vmul.f32 %v622, %v624
    %v626 = vadd.f32 %v622, %v625
    %vm627 = vweird.f32 %v621
    %vm628 = vweird.f32 %v622
    %vm629 = vmor %vm627, %vm628
    %v630 = vsel %vm629, %v622, %v626
    %v631 = vand.u32 2147483647, %v621
    %vm632 = vcmp.eq.f32.partialorder %v631, 8.507059e+37
    %v633 = vand.u32 %v621, 2147483648
    %v634 = vor.u32 1.1754944e-38, %v633
    %v635 = vsel %vm632, %v634, %v630
    %v636 = vmul.f32 1.0, %v635
    %v637 = vtanh.pop %v597
    %v638 = vxor.u32 %v598, 2147483648
    %v639 = vmul.f32 %v638, 1.442695
    %v640 = vpow.pop %v639
    %v641 = vadd.f32 %v640, 1.0
    %v642 = vrcp.pop %v641
    %v643 = vmul.f32 %v641, %v642
    %v644 = vsub.f32 1.0, %v643
    %v645 = vmul.f32 %v642, %v644
    %v646 = vadd.f32 %v642, %v645
    %vm647 = vweird.f32 %v641
    %vm648 = vweird.f32 %v642
    %vm649 = vmor %vm647, %vm648
    %v650 = vsel %vm649, %v642, %v646
    %v651 = vand.u32 2147483647, %v641
    %vm652 = vcmp.eq.f32.partialorder %v651, 8.507059e+37
    %v653 = vand.u32 %v641, 2147483648
    %v654 = vor.u32 1.1754944e-38, %v653
    %v655 = vsel %vm652, %v654, %v650
    %v656 = vmul.f32 1.0, %v655
    %v657 = vmul.f32 %v636, %v506
    %v658 = vmul.f32 %v617, %v637
    %v659 = vadd.f32 %v657, %v658
    %v660 = vtanh.pop %v659
    %v661 = vmul.f32 %v656, %v660
    %v662 = vsel %vm108, 1, 0
    %663 = vset.pattern.permute.xlu0 0
    %664 = vperm.xlu0 %663, %v662
    %v665 = vpop.permute.xlu0 %664
    %vm666 = vcmp.eq.s32.totalorder %v665, 1
    %v667 = vsel %vm666, %v659, %v506
    %v668 = vsel %vm666, %v661, %v507
    %s669 = scalar_lea.vmem [#allocation3], 16
    %670 = vst [vmem:[%s669] sm:$0xff] %v661
    %s671 = scalar_lea.vmem [#allocation6], 96
    %v672 = vld [vmem:[%s671] sm:$0xff]
    %v673 = vld [vmem:[%s671 + $0x8] sm:$0xff]
    %v674 = vld [vmem:[%s671 + $0x10] sm:$0xff]
    %v675 = vld [vmem:[%s671 + $0x18] sm:$0xff]
    %676 = vmatpush.msra.mxu0 %v184
    %677 = vmatpush.msra.mxu0 %v180
    %678 = vmatpush.msra.mxu0 %v176
    %679 = vmatpush.msra.mxu0 %v172
    %680 = vmatpush.msra.mxu0 %v168
    %681 = vmatpush.msra.mxu0 %v164
    %682 = vmatpush.msra.mxu0 %v160
    %683 = vmatpush.msra.mxu0 %v156
    %684 = vmatpush.msra.mxu0 %v152
    %685 = vmatpush.msra.mxu0 %v148
    %686 = vmatpush.msra.mxu0 %v144
    %687 = vmatpush.msra.mxu0 %v140
    %688 = vmatpush.msra.mxu0 %v136
    %689 = vmatpush.msra.mxu0 %v132
    %690 = vmatpush.msra.mxu0 %v128
    %691 = vmatpush.msra.mxu0 %v124
    %692 = vmatmul.f32.gmra.mxu0 %v668
    %v693 = vpop.f32.mrf.mxu0
    %v694 = vadd.f32 0.0, %v693
    %695 = vdwg.mxu0
    %696 = vmatpush.msra.mxu0 %v185
    %697 = vmatpush.msra.mxu0 %v181
    %698 = vmatpush.msra.mxu0 %v177
    %699 = vmatpush.msra.mxu0 %v173
    %700 = vmatpush.msra.mxu0 %v169
    %701 = vmatpush.msra.mxu0 %v165
    %702 = vmatpush.msra.mxu0 %v161
    %703 = vmatpush.msra.mxu0 %v157
    %704 = vmatpush.msra.mxu0 %v153
    %705 = vmatpush.msra.mxu0 %v149
    %706 = vmatpush.msra.mxu0 %v145
    %707 = vmatpush.msra.mxu0 %v141
    %708 = vmatpush.msra.mxu0 %v137
    %709 = vmatpush.msra.mxu0 %v133
    %710 = vmatpush.msra.mxu0 %v129
    %711 = vmatpush.msra.mxu0 %v125
    %712 = vmatmul.f32.gmra.mxu0 %v668
    %v713 = vpop.f32.mrf.mxu0
    %v714 = vadd.f32 0.0, %v713
    %715 = vdwg.mxu0
    %716 = vmatpush.msra.mxu0 %v186
    %717 = vmatpush.msra.mxu0 %v182
    %718 = vmatpush.msra.mxu0 %v178
    %719 = vmatpush.msra.mxu0 %v174
    %720 = vmatpush.msra.mxu0 %v170
    %721 = vmatpush.msra.mxu0 %v166
    %722 = vmatpush.msra.mxu0 %v162
    %723 = vmatpush.msra.mxu0 %v158
    %724 = vmatpush.msra.mxu0 %v154
    %725 = vmatpush.msra.mxu0 %v150
    %726 = vmatpush.msra.mxu0 %v146
    %727 = vmatpush.msra.mxu0 %v142
    %728 = vmatpush.msra.mxu0 %v138
    %729 = vmatpush.msra.mxu0 %v134
    %730 = vmatpush.msra.mxu0 %v130
    %731 = vmatpush.msra.mxu0 %v126
    %732 = vmatmul.f32.gmra.mxu0 %v668
    %v733 = vpop.f32.mrf.mxu0
    %v734 = vadd.f32 0.0, %v733
    %735 = vdwg.mxu0
    %736 = vmatpush.msra.mxu0 %v187
    %737 = vmatpush.msra.mxu0 %v183
    %738 = vmatpush.msra.mxu0 %v179
    %739 = vmatpush.msra.mxu0 %v175
    %740 = vmatpush.msra.mxu0 %v171
    %741 = vmatpush.msra.mxu0 %v167
    %742 = vmatpush.msra.mxu0 %v163
    %743 = vmatpush.msra.mxu0 %v159
    %744 = vmatpush.msra.mxu0 %v155
    %745 = vmatpush.msra.mxu0 %v151
    %746 = vmatpush.msra.mxu0 %v147
    %747 = vmatpush.msra.mxu0 %v143
    %748 = vmatpush.msra.mxu0 %v139
    %749 = vmatpush.msra.mxu0 %v135
    %750 = vmatpush.msra.mxu0 %v131
    %751 = vmatpush.msra.mxu0 %v127
    %752 = vmatmul.f32.gmra.mxu0 %v668
    %v753 = vpop.f32.mrf.mxu0
    %v754 = vadd.f32 0.0, %v753
    %755 = vdwg.mxu0
    %v756 = vadd.f32 %v672, %v694
    %v757 = vadd.f32 %v673, %v714
    %v758 = vadd.f32 %v674, %v734
    %v759 = vadd.f32 %v675, %v754
    %v760 = vxor.u32 %v756, 2147483648
    %v761 = vmul.f32 %v760, 1.442695
    %v762 = vpow.pop %v761
    %v763 = vadd.f32 %v762, 1.0
    %v764 = vrcp.pop %v763
    %v765 = vmul.f32 %v763, %v764
    %v766 = vsub.f32 1.0, %v765
    %v767 = vmul.f32 %v764, %v766
    %v768 = vadd.f32 %v764, %v767
    %vm769 = vweird.f32 %v763
    %vm770 = vweird.f32 %v764
    %vm771 = vmor %vm769, %vm770
    %v772 = vsel %vm771, %v764, %v768
    %v773 = vand.u32 2147483647, %v763
    %vm774 = vcmp.eq.f32.partialorder %v773, 8.507059e+37
    %v775 = vand.u32 %v763, 2147483648
    %v776 = vor.u32 1.1754944e-38, %v775
    %v777 = vsel %vm774, %v776, %v772
    %v778 = vmul.f32 1.0, %v777
    %v779 = vxor.u32 %v757, 2147483648
    %v780 = vmul.f32 %v779, 1.442695
    %v781 = vpow.pop %v780
    %v782 = vadd.f32 %v781, 1.0
    %v783 = vrcp.pop %v782
    %v784 = vmul.f32 %v782, %v783
    %v785 = vsub.f32 1.0, %v784
    %v786 = vmul.f32 %v783, %v785
    %v787 = vadd.f32 %v783, %v786
    %vm788 = vweird.f32 %v782
    %vm789 = vweird.f32 %v783
    %vm790 = vmor %vm788, %vm789
    %v791 = vsel %vm790, %v783, %v787
    %v792 = vand.u32 2147483647, %v782
    %vm793 = vcmp.eq.f32.partialorder %v792, 8.507059e+37
    %v794 = vand.u32 %v782, 2147483648
    %v795 = vor.u32 1.1754944e-38, %v794
    %v796 = vsel %vm793, %v795, %v791
    %v797 = vmul.f32 1.0, %v796
    %v798 = vtanh.pop %v758
    %v799 = vxor.u32 %v759, 2147483648
    %v800 = vmul.f32 %v799, 1.442695
    %v801 = vpow.pop %v800
    %v802 = vadd.f32 %v801, 1.0
    %v803 = vrcp.pop %v802
    %v804 = vmul.f32 %v802, %v803
    %v805 = vsub.f32 1.0, %v804
    %v806 = vmul.f32 %v803, %v805
    %v807 = vadd.f32 %v803, %v806
    %vm808 = vweird.f32 %v802
    %vm809 = vweird.f32 %v803
    %vm810 = vmor %vm808, %vm809
    %v811 = vsel %vm810, %v803, %v807
    %v812 = vand.u32 2147483647, %v802
    %vm813 = vcmp.eq.f32.partialorder %v812, 8.507059e+37
    %v814 = vand.u32 %v802, 2147483648
    %v815 = vor.u32 1.1754944e-38, %v814
    %v816 = vsel %vm813, %v815, %v811
    %v817 = vmul.f32 1.0, %v816
    %v818 = vmul.f32 %v797, %v667
    %v819 = vmul.f32 %v778, %v798
    %v820 = vadd.f32 %v818, %v819
    %v821 = vtanh.pop %v820
    %v822 = vmul.f32 %v817, %v821
    %v823 = vsel %vm111, 1, 0
    %824 = vset.pattern.permute.xlu0 0
    %825 = vperm.xlu0 %824, %v823
    %v826 = vpop.permute.xlu0 %825
    %vm827 = vcmp.eq.s32.totalorder %v826, 1
    %v828 = vsel %vm827, %v820, %v667
    %v829 = vsel %vm827, %v822, %v668
    %s830 = scalar_lea.vmem [#allocation3], 24
    %831 = vst [vmem:[%s830] sm:$0xff] %v822
    %s832 = scalar_lea.vmem [#allocation6], 128
    %v833 = vld [vmem:[%s832] sm:$0xff]
    %v834 = vld [vmem:[%s832 + $0x8] sm:$0xff]
    %v835 = vld [vmem:[%s832 + $0x10] sm:$0xff]
    %v836 = vld [vmem:[%s832 + $0x18] sm:$0xff]
    %837 = vmatpush.msra.mxu0 %v184
    %838 = vmatpush.msra.mxu0 %v180
    %839 = vmatpush.msra.mxu0 %v176
    %840 = vmatpush.msra.mxu0 %v172
    %841 = vmatpush.msra.mxu0 %v168
    %842 = vmatpush.msra.mxu0 %v164
    %843 = vmatpush.msra.mxu0 %v160
    %844 = vmatpush.msra.mxu0 %v156
    %845 = vmatpush.msra.mxu0 %v152
    %846 = vmatpush.msra.mxu0 %v148
    %847 = vmatpush.msra.mxu0 %v144
    %848 = vmatpush.msra.mxu0 %v140
    %849 = vmatpush.msra.mxu0 %v136
    %850 = vmatpush.msra.mxu0 %v132
    %851 = vmatpush.msra.mxu0 %v128
    %852 = vmatpush.msra.mxu0 %v124
    %853 = vmatmul.f32.gmra.mxu0 %v829
    %v854 = vpop.f32.mrf.mxu0
    %v855 = vadd.f32 0.0, %v854
    %856 = vdwg.mxu0
    %857 = vmatpush.msra.mxu0 %v185
    %858 = vmatpush.msra.mxu0 %v181
    %859 = vmatpush.msra.mxu0 %v177
    %860 = vmatpush.msra.mxu0 %v173
    %861 = vmatpush.msra.mxu0 %v169
    %862 = vmatpush.msra.mxu0 %v165
    %863 = vmatpush.msra.mxu0 %v161
    %864 = vmatpush.msra.mxu0 %v157
    %865 = vmatpush.msra.mxu0 %v153
    %866 = vmatpush.msra.mxu0 %v149
    %867 = vmatpush.msra.mxu0 %v145
    %868 = vmatpush.msra.mxu0 %v141
    %869 = vmatpush.msra.mxu0 %v137
    %870 = vmatpush.msra.mxu0 %v133
    %871 = vmatpush.msra.mxu0 %v129
    %872 = vmatpush.msra.mxu0 %v125
    %873 = vmatmul.f32.gmra.mxu0 %v829
    %v874 = vpop.f32.mrf.mxu0
    %v875 = vadd.f32 0.0, %v874
    %876 = vdwg.mxu0
    %877 = vmatpush.msra.mxu0 %v186
    %878 = vmatpush.msra.mxu0 %v182
    %879 = vmatpush.msra.mxu0 %v178
    %880 = vmatpush.msra.mxu0 %v174
    %881 = vmatpush.msra.mxu0 %v170
    %882 = vmatpush.msra.mxu0 %v166
    %883 = vmatpush.msra.mxu0 %v162
    %884 = vmatpush.msra.mxu0 %v158
    %885 = vmatpush.msra.mxu0 %v154
    %886 = vmatpush.msra.mxu0 %v150
    %887 = vmatpush.msra.mxu0 %v146
    %888 = vmatpush.msra.mxu0 %v142
    %889 = vmatpush.msra.mxu0 %v138
    %890 = vmatpush.msra.mxu0 %v134
    %891 = vmatpush.msra.mxu0 %v130
    %892 = vmatpush.msra.mxu0 %v126
    %893 = vmatmul.f32.gmra.mxu0 %v829
    %v894 = vpop.f32.mrf.mxu0
    %v895 = vadd.f32 0.0, %v894
    %896 = vdwg.mxu0
    %897 = vmatpush.msra.mxu0 %v187
    %898 = vmatpush.msra.mxu0 %v183
    %899 = vmatpush.msra.mxu0 %v179
    %900 = vmatpush.msra.mxu0 %v175
    %901 = vmatpush.msra.mxu0 %v171
    %902 = vmatpush.msra.mxu0 %v167
    %903 = vmatpush.msra.mxu0 %v163
    %904 = vmatpush.msra.mxu0 %v159
    %905 = vmatpush.msra.mxu0 %v155
    %906 = vmatpush.msra.mxu0 %v151
    %907 = vmatpush.msra.mxu0 %v147
    %908 = vmatpush.msra.mxu0 %v143
    %909 = vmatpush.msra.mxu0 %v139
    %910 = vmatpush.msra.mxu0 %v135
    %911 = vmatpush.msra.mxu0 %v131
    %912 = vmatpush.msra.mxu0 %v127
    %913 = vmatmul.f32.gmra.mxu0 %v829
    %v914 = vpop.f32.mrf.mxu0
    %v915 = vadd.f32 0.0, %v914
    %916 = vdwg.mxu0
    %v917 = vadd.f32 %v833, %v855
    %v918 = vadd.f32 %v834, %v875
    %v919 = vadd.f32 %v835, %v895
    %v920 = vadd.f32 %v836, %v915
    %v921 = vxor.u32 %v917, 2147483648
    %v922 = vmul.f32 %v921, 1.442695
    %v923 = vpow.pop %v922
    %v924 = vadd.f32 %v923, 1.0
    %v925 = vrcp.pop %v924
    %v926 = vmul.f32 %v924, %v925
    %v927 = vsub.f32 1.0, %v926
    %v928 = vmul.f32 %v925, %v927
    %v929 = vadd.f32 %v925, %v928
    %vm930 = vweird.f32 %v924
    %vm931 = vweird.f32 %v925
    %vm932 = vmor %vm930, %vm931
    %v933 = vsel %vm932, %v925, %v929
    %v934 = vand.u32 2147483647, %v924
    %vm935 = vcmp.eq.f32.partialorder %v934, 8.507059e+37
    %v936 = vand.u32 %v924, 2147483648
    %v937 = vor.u32 1.1754944e-38, %v936
    %v938 = vsel %vm935, %v937, %v933
    %v939 = vmul.f32 1.0, %v938
    %v940 = vxor.u32 %v918, 2147483648
    %v941 = vmul.f32 %v940, 1.442695
    %v942 = vpow.pop %v941
    %v943 = vadd.f32 %v942, 1.0
    %v944 = vrcp.pop %v943
    %v945 = vmul.f32 %v943, %v944
    %v946 = vsub.f32 1.0, %v945
    %v947 = vmul.f32 %v944, %v946
    %v948 = vadd.f32 %v944, %v947
    %vm949 = vweird.f32 %v943
    %vm950 = vweird.f32 %v944
    %vm951 = vmor %vm949, %vm950
    %v952 = vsel %vm951, %v944, %v948
    %v953 = vand.u32 2147483647, %v943
    %vm954 = vcmp.eq.f32.partialorder %v953, 8.507059e+37
    %v955 = vand.u32 %v943, 2147483648
    %v956 = vor.u32 1.1754944e-38, %v955
    %v957 = vsel %vm954, %v956, %v952
    %v958 = vmul.f32 1.0, %v957
    %v959 = vtanh.pop %v919
    %v960 = vxor.u32 %v920, 2147483648
    %v961 = vmul.f32 %v960, 1.442695
    %v962 = vpow.pop %v961
    %v963 = vadd.f32 %v962, 1.0
    %v964 = vrcp.pop %v963
    %v965 = vmul.f32 %v963, %v964
    %v966 = vsub.f32 1.0, %v965
    %v967 = vmul.f32 %v964, %v966
    %v968 = vadd.f32 %v964, %v967
    %vm969 = vweird.f32 %v963
    %vm970 = vweird.f32 %v964
    %vm971 = vmor %vm969, %vm970
    %v972 = vsel %vm971, %v964, %v968
    %v973 = vand.u32 2147483647, %v963
    %vm974 = vcmp.eq.f32.partialorder %v973, 8.507059e+37
    %v975 = vand.u32 %v963, 2147483648
    %v976 = vor.u32 1.1754944e-38, %v975
    %v977 = vsel %vm974, %v976, %v972
    %v978 = vmul.f32 1.0, %v977
    %v979 = vmul.f32 %v958, %v828
    %v980 = vmul.f32 %v939, %v959
    %v981 = vadd.f32 %v979, %v980
    %v982 = vtanh.pop %v981
    %v983 = vmul.f32 %v978, %v982
    %v984 = vsel %vm114, 1, 0
    %985 = vset.pattern.permute.xlu0 0
    %986 = vperm.xlu0 %985, %v984
    %v987 = vpop.permute.xlu0 %986
    %vm988 = vcmp.eq.s32.totalorder %v987, 1
    %v989 = vsel %vm988, %v981, %v828
    %v990 = vsel %vm988, %v983, %v829
    %s991 = scalar_lea.vmem [#allocation3], 32
    %992 = vst [vmem:[%s991] sm:$0xff] %v983
    %s993 = scalar_lea.vmem [#allocation6], 160
    %v994 = vld [vmem:[%s993] sm:$0xff]
    %v995 = vld [vmem:[%s993 + $0x8] sm:$0xff]
    %v996 = vld [vmem:[%s993 + $0x10] sm:$0xff]
    %v997 = vld [vmem:[%s993 + $0x18] sm:$0xff]
    %998 = vmatpush.msra.mxu0 %v184
    %999 = vmatpush.msra.mxu0 %v180
    %1000 = vmatpush.msra.mxu0 %v176
    %1001 = vmatpush.msra.mxu0 %v172
    %1002 = vmatpush.msra.mxu0 %v168
    %1003 = vmatpush.msra.mxu0 %v164
    %1004 = vmatpush.msra.mxu0 %v160
    %1005 = vmatpush.msra.mxu0 %v156
    %1006 = vmatpush.msra.mxu0 %v152
    %1007 = vmatpush.msra.mxu0 %v148
    %1008 = vmatpush.msra.mxu0 %v144
    %1009 = vmatpush.msra.mxu0 %v140
    %1010 = vmatpush.msra.mxu0 %v136
    %1011 = vmatpush.msra.mxu0 %v132
    %1012 = vmatpush.msra.mxu0 %v128
    %1013 = vmatpush.msra.mxu0 %v124
    %1014 = vmatmul.f32.gmra.mxu0 %v990
    %v1015 = vpop.f32.mrf.mxu0
    %v1016 = vadd.f32 0.0, %v1015
    %1017 = vdwg.mxu0
    %1018 = vmatpush.msra.mxu0 %v185
    %1019 = vmatpush.msra.mxu0 %v181
    %1020 = vmatpush.msra.mxu0 %v177
    %1021 = vmatpush.msra.mxu0 %v173
    %1022 = vmatpush.msra.mxu0 %v169
    %1023 = vmatpush.msra.mxu0 %v165
    %1024 = vmatpush.msra.mxu0 %v161
    %1025 = vmatpush.msra.mxu0 %v157
    %1026 = vmatpush.msra.mxu0 %v153
    %1027 = vmatpush.msra.mxu0 %v149
    %1028 = vmatpush.msra.mxu0 %v145
    %1029 = vmatpush.msra.mxu0 %v141
    %1030 = vmatpush.msra.mxu0 %v137
    %1031 = vmatpush.msra.mxu0 %v133
    %1032 = vmatpush.msra.mxu0 %v129
    %1033 = vmatpush.msra.mxu0 %v125
    %1034 = vmatmul.f32.gmra.mxu0 %v990
    %v1035 = vpop.f32.mrf.mxu0
    %v1036 = vadd.f32 0.0, %v1035
    %1037 = vdwg.mxu0
    %1038 = vmatpush.msra.mxu0 %v186
    %1039 = vmatpush.msra.mxu0 %v182
    %1040 = vmatpush.msra.mxu0 %v178
    %1041 = vmatpush.msra.mxu0 %v174
    %1042 = vmatpush.msra.mxu0 %v170
    %1043 = vmatpush.msra.mxu0 %v166
    %1044 = vmatpush.msra.mxu0 %v162
    %1045 = vmatpush.msra.mxu0 %v158
    %1046 = vmatpush.msra.mxu0 %v154
    %1047 = vmatpush.msra.mxu0 %v150
    %1048 = vmatpush.msra.mxu0 %v146
    %1049 = vmatpush.msra.mxu0 %v142
    %1050 = vmatpush.msra.mxu0 %v138
    %1051 = vmatpush.msra.mxu0 %v134
    %1052 = vmatpush.msra.mxu0 %v130
    %1053 = vmatpush.msra.mxu0 %v126
    %1054 = vmatmul.f32.gmra.mxu0 %v990
    %v1055 = vpop.f32.mrf.mxu0
    %v1056 = vadd.f32 0.0, %v1055
    %1057 = vdwg.mxu0
    %1058 = vmatpush.msra.mxu0 %v187
    %1059 = vmatpush.msra.mxu0 %v183
    %1060 = vmatpush.msra.mxu0 %v179
    %1061 = vmatpush.msra.mxu0 %v175
    %1062 = vmatpush.msra.mxu0 %v171
    %1063 = vmatpush.msra.mxu0 %v167
    %1064 = vmatpush.msra.mxu0 %v163
    %1065 = vmatpush.msra.mxu0 %v159
    %1066 = vmatpush.msra.mxu0 %v155
    %1067 = vmatpush.msra.mxu0 %v151
    %1068 = vmatpush.msra.mxu0 %v147
    %1069 = vmatpush.msra.mxu0 %v143
    %1070 = vmatpush.msra.mxu0 %v139
    %1071 = vmatpush.msra.mxu0 %v135
    %1072 = vmatpush.msra.mxu0 %v131
    %1073 = vmatpush.msra.mxu0 %v127
    %1074 = vmatmul.f32.gmra.mxu0 %v990
    %v1075 = vpop.f32.mrf.mxu0
    %v1076 = vadd.f32 0.0, %v1075
    %1077 = vdwg.mxu0
    %v1078 = vadd.f32 %v994, %v1016
    %v1079 = vadd.f32 %v995, %v1036
    %v1080 = vadd.f32 %v996, %v1056
    %v1081 = vadd.f32 %v997, %v1076
    %v1082 = vxor.u32 %v1078, 2147483648
    %v1083 = vmul.f32 %v1082, 1.442695
    %v1084 = vpow.pop %v1083
    %v1085 = vadd.f32 %v1084, 1.0
    %v1086 = vrcp.pop %v1085
    %v1087 = vmul.f32 %v1085, %v1086
    %v1088 = vsub.f32 1.0, %v1087
    %v1089 = vmul.f32 %v1086, %v1088
    %v1090 = vadd.f32 %v1086, %v1089
    %vm1091 = vweird.f32 %v1085
    %vm1092 = vweird.f32 %v1086
    %vm1093 = vmor %vm1091, %vm1092
    %v1094 = vsel %vm1093, %v1086, %v1090
    %v1095 = vand.u32 2147483647, %v1085
    %vm1096 = vcmp.eq.f32.partialorder %v1095, 8.507059e+37
    %v1097 = vand.u32 %v1085, 2147483648
    %v1098 = vor.u32 1.1754944e-38, %v1097
    %v1099 = vsel %vm1096, %v1098, %v1094
    %v1100 = vmul.f32 1.0, %v1099
    %v1101 = vxor.u32 %v1079, 2147483648
    %v1102 = vmul.f32 %v1101, 1.442695
    %v1103 = vpow.pop %v1102
    %v1104 = vadd.f32 %v1103, 1.0
    %v1105 = vrcp.pop %v1104
    %v1106 = vmul.f32 %v1104, %v1105
    %v1107 = vsub.f32 1.0, %v1106
    %v1108 = vmul.f32 %v1105, %v1107
    %v1109 = vadd.f32 %v1105, %v1108
    %vm1110 = vweird.f32 %v1104
    %vm1111 = vweird.f32 %v1105
    %vm1112 = vmor %vm1110, %vm1111
    %v1113 = vsel %vm1112, %v1105, %v1109
    %v1114 = vand.u32 2147483647, %v1104
    %vm1115 = vcmp.eq.f32.partialorder %v1114, 8.507059e+37
    %v1116 = vand.u32 %v1104, 2147483648
    %v1117 = vor.u32 1.1754944e-38, %v1116
    %v1118 = vsel %vm1115, %v1117, %v1113
    %v1119 = vmul.f32 1.0, %v1118
    %v1120 = vtanh.pop %v1080
    %v1121 = vxor.u32 %v1081, 2147483648
    %v1122 = vmul.f32 %v1121, 1.442695
    %v1123 = vpow.pop %v1122
    %v1124 = vadd.f32 %v1123, 1.0
    %v1125 = vrcp.pop %v1124
    %v1126 = vmul.f32 %v1124, %v1125
    %v1127 = vsub.f32 1.0, %v1126
    %v1128 = vmul.f32 %v1125, %v1127
    %v1129 = vadd.f32 %v1125, %v1128
    %vm1130 = vweird.f32 %v1124
    %vm1131 = vweird.f32 %v1125
    %vm1132 = vmor %vm1130, %vm1131
    %v1133 = vsel %vm1132, %v1125, %v1129
    %v1134 = vand.u32 2147483647, %v1124
    %vm1135 = vcmp.eq.f32.partialorder %v1134, 8.507059e+37
    %v1136 = vand.u32 %v1124, 2147483648
    %v1137 = vor.u32 1.1754944e-38, %v1136
    %v1138 = vsel %vm1135, %v1137, %v1133
    %v1139 = vmul.f32 1.0, %v1138
    %v1140 = vmul.f32 %v1119, %v989
    %v1141 = vmul.f32 %v1100, %v1120
    %v1142 = vadd.f32 %v1140, %v1141
    %v1143 = vtanh.pop %v1142
    %v1144 = vmul.f32 %v1139, %v1143
    %v1145 = vsel %vm117, 1, 0
    %1146 = vset.pattern.permute.xlu0 0
    %1147 = vperm.xlu0 %1146, %v1145
    %v1148 = vpop.permute.xlu0 %1147
    %vm1149 = vcmp.eq.s32.totalorder %v1148, 1
    %v1150 = vsel %vm1149, %v1142, %v989
    %v1151 = vsel %vm1149, %v1144, %v990
    %s1152 = scalar_lea.vmem [#allocation3], 40
    %1153 = vst [vmem:[%s1152] sm:$0xff] %v1144
    %s1154 = scalar_lea.vmem [#allocation6], 192
    %v1155 = vld [vmem:[%s1154] sm:$0xff]
    %v1156 = vld [vmem:[%s1154 + $0x8] sm:$0xff]
    %v1157 = vld [vmem:[%s1154 + $0x10] sm:$0xff]
    %v1158 = vld [vmem:[%s1154 + $0x18] sm:$0xff]
    %1159 = vmatpush.msra.mxu0 %v184
    %1160 = vmatpush.msra.mxu0 %v180
    %1161 = vmatpush.msra.mxu0 %v176
    %1162 = vmatpush.msra.mxu0 %v172
    %1163 = vmatpush.msra.mxu0 %v168
    %1164 = vmatpush.msra.mxu0 %v164
    %1165 = vmatpush.msra.mxu0 %v160
    %1166 = vmatpush.msra.mxu0 %v156
    %1167 = vmatpush.msra.mxu0 %v152
    %1168 = vmatpush.msra.mxu0 %v148
    %1169 = vmatpush.msra.mxu0 %v144
    %1170 = vmatpush.msra.mxu0 %v140
    %1171 = vmatpush.msra.mxu0 %v136
    %1172 = vmatpush.msra.mxu0 %v132
    %1173 = vmatpush.msra.mxu0 %v128
    %1174 = vmatpush.msra.mxu0 %v124
    %1175 = vmatmul.f32.gmra.mxu0 %v1151
    %v1176 = vpop.f32.mrf.mxu0
    %v1177 = vadd.f32 0.0, %v1176
    %1178 = vdwg.mxu0
    %1179 = vmatpush.msra.mxu0 %v185
    %1180 = vmatpush.msra.mxu0 %v181
    %1181 = vmatpush.msra.mxu0 %v177
    %1182 = vmatpush.msra.mxu0 %v173
    %1183 = vmatpush.msra.mxu0 %v169
    %1184 = vmatpush.msra.mxu0 %v165
    %1185 = vmatpush.msra.mxu0 %v161
    %1186 = vmatpush.msra.mxu0 %v157
    %1187 = vmatpush.msra.mxu0 %v153
    %1188 = vmatpush.msra.mxu0 %v149
    %1189 = vmatpush.msra.mxu0 %v145
    %1190 = vmatpush.msra.mxu0 %v141
    %1191 = vmatpush.msra.mxu0 %v137
    %1192 = vmatpush.msra.mxu0 %v133
    %1193 = vmatpush.msra.mxu0 %v129
    %1194 = vmatpush.msra.mxu0 %v125
    %1195 = vmatmul.f32.gmra.mxu0 %v1151
    %v1196 = vpop.f32.mrf.mxu0
    %v1197 = vadd.f32 0.0, %v1196
    %1198 = vdwg.mxu0
    %1199 = vmatpush.msra.mxu0 %v186
    %1200 = vmatpush.msra.mxu0 %v182
    %1201 = vmatpush.msra.mxu0 %v178
    %1202 = vmatpush.msra.mxu0 %v174
    %1203 = vmatpush.msra.mxu0 %v170
    %1204 = vmatpush.msra.mxu0 %v166
    %1205 = vmatpush.msra.mxu0 %v162
    %1206 = vmatpush.msra.mxu0 %v158
    %1207 = vmatpush.msra.mxu0 %v154
    %1208 = vmatpush.msra.mxu0 %v150
    %1209 = vmatpush.msra.mxu0 %v146
    %1210 = vmatpush.msra.mxu0 %v142
    %1211 = vmatpush.msra.mxu0 %v138
    %1212 = vmatpush.msra.mxu0 %v134
    %1213 = vmatpush.msra.mxu0 %v130
    %1214 = vmatpush.msra.mxu0 %v126
    %1215 = vmatmul.f32.gmra.mxu0 %v1151
    %v1216 = vpop.f32.mrf.mxu0
    %v1217 = vadd.f32 0.0, %v1216
    %1218 = vdwg.mxu0
    %1219 = vmatpush.msra.mxu0 %v187
    %1220 = vmatpush.msra.mxu0 %v183
    %1221 = vmatpush.msra.mxu0 %v179
    %1222 = vmatpush.msra.mxu0 %v175
    %1223 = vmatpush.msra.mxu0 %v171
    %1224 = vmatpush.msra.mxu0 %v167
    %1225 = vmatpush.msra.mxu0 %v163
    %1226 = vmatpush.msra.mxu0 %v159
    %1227 = vmatpush.msra.mxu0 %v155
    %1228 = vmatpush.msra.mxu0 %v151
    %1229 = vmatpush.msra.mxu0 %v147
    %1230 = vmatpush.msra.mxu0 %v143
    %1231 = vmatpush.msra.mxu0 %v139
    %1232 = vmatpush.msra.mxu0 %v135
    %1233 = vmatpush.msra.mxu0 %v131
    %1234 = vmatpush.msra.mxu0 %v127
    %1235 = vmatmul.f32.gmra.mxu0 %v1151
    %v1236 = vpop.f32.mrf.mxu0
    %v1237 = vadd.f32 0.0, %v1236
    %1238 = vdwg.mxu0
    %v1239 = vadd.f32 %v1155, %v1177
    %v1240 = vadd.f32 %v1156, %v1197
    %v1241 = vadd.f32 %v1157, %v1217
    %v1242 = vadd.f32 %v1158, %v1237
    %v1243 = vxor.u32 %v1239, 2147483648
    %v1244 = vmul.f32 %v1243, 1.442695
    %v1245 = vpow.pop %v1244
    %v1246 = vadd.f32 %v1245, 1.0
    %v1247 = vrcp.pop %v1246
    %v1248 = vmul.f32 %v1246, %v1247
    %v1249 = vsub.f32 1.0, %v1248
    %v1250 = vmul.f32 %v1247, %v1249
    %v1251 = vadd.f32 %v1247, %v1250
    %vm1252 = vweird.f32 %v1246
    %vm1253 = vweird.f32 %v1247
    %vm1254 = vmor %vm1252, %vm1253
    %v1255 = vsel %vm1254, %v1247, %v1251
    %v1256 = vand.u32 2147483647, %v1246
    %vm1257 = vcmp.eq.f32.partialorder %v1256, 8.507059e+37
    %v1258 = vand.u32 %v1246, 2147483648
    %v1259 = vor.u32 1.1754944e-38, %v1258
    %v1260 = vsel %vm1257, %v1259, %v1255
    %v1261 = vmul.f32 1.0, %v1260
    %v1262 = vxor.u32 %v1240, 2147483648
    %v1263 = vmul.f32 %v1262, 1.442695
    %v1264 = vpow.pop %v1263
    %v1265 = vadd.f32 %v1264, 1.0
    %v1266 = vrcp.pop %v1265
    %v1267 = vmul.f32 %v1265, %v1266
    %v1268 = vsub.f32 1.0, %v1267
    %v1269 = vmul.f32 %v1266, %v1268
    %v1270 = vadd.f32 %v1266, %v1269
    %vm1271 = vweird.f32 %v1265
    %vm1272 = vweird.f32 %v1266
    %vm1273 = vmor %vm1271, %vm1272
    %v1274 = vsel %vm1273, %v1266, %v1270
    %v1275 = vand.u32 2147483647, %v1265
    %vm1276 = vcmp.eq.f32.partialorder %v1275, 8.507059e+37
    %v1277 = vand.u32 %v1265, 2147483648
    %v1278 = vor.u32 1.1754944e-38, %v1277
    %v1279 = vsel %vm1276, %v1278, %v1274
    %v1280 = vmul.f32 1.0, %v1279
    %v1281 = vtanh.pop %v1241
    %v1282 = vxor.u32 %v1242, 2147483648
    %v1283 = vmul.f32 %v1282, 1.442695
    %v1284 = vpow.pop %v1283
    %v1285 = vadd.f32 %v1284, 1.0
    %v1286 = vrcp.pop %v1285
    %v1287 = vmul.f32 %v1285, %v1286
    %v1288 = vsub.f32 1.0, %v1287
    %v1289 = vmul.f32 %v1286, %v1288
    %v1290 = vadd.f32 %v1286, %v1289
    %vm1291 = vweird.f32 %v1285
    %vm1292 = vweird.f32 %v1286
    %vm1293 = vmor %vm1291, %vm1292
    %v1294 = vsel %vm1293, %v1286, %v1290
    %v1295 = vand.u32 2147483647, %v1285
    %vm1296 = vcmp.eq.f32.partialorder %v1295, 8.507059e+37
    %v1297 = vand.u32 %v1285, 2147483648
    %v1298 = vor.u32 1.1754944e-38, %v1297
    %v1299 = vsel %vm1296, %v1298, %v1294
    %v1300 = vmul.f32 1.0, %v1299
    %v1301 = vmul.f32 %v1280, %v1150
    %v1302 = vmul.f32 %v1261, %v1281
    %v1303 = vadd.f32 %v1301, %v1302
    %v1304 = vtanh.pop %v1303
    %v1305 = vmul.f32 %v1300, %v1304
    %v1306 = vsel %vm120, 1, 0
    %1307 = vset.pattern.permute.xlu0 0
    %1308 = vperm.xlu0 %1307, %v1306
    %v1309 = vpop.permute.xlu0 %1308
    %vm1310 = vcmp.eq.s32.totalorder %v1309, 1
    %v1311 = vsel %vm1310, %v1303, %v1150
    %v1312 = vsel %vm1310, %v1305, %v1151
    %s1313 = scalar_lea.vmem [#allocation3], 48
    %1314 = vst [vmem:[%s1313] sm:$0xff] %v1305
    %s1315 = scalar_lea.vmem [#allocation6], 224
    %v1316 = vld [vmem:[%s1315] sm:$0xff]
    %v1317 = vld [vmem:[%s1315 + $0x8] sm:$0xff]
    %v1318 = vld [vmem:[%s1315 + $0x10] sm:$0xff]
    %v1319 = vld [vmem:[%s1315 + $0x18] sm:$0xff]
    %1320 = vmatpush.msra.mxu0 %v184
    %1321 = vmatpush.msra.mxu0 %v180
    %1322 = vmatpush.msra.mxu0 %v176
    %1323 = vmatpush.msra.mxu0 %v172
    %1324 = vmatpush.msra.mxu0 %v168
    %1325 = vmatpush.msra.mxu0 %v164
    %1326 = vmatpush.msra.mxu0 %v160
    %1327 = vmatpush.msra.mxu0 %v156
    %1328 = vmatpush.msra.mxu0 %v152
    %1329 = vmatpush.msra.mxu0 %v148
    %1330 = vmatpush.msra.mxu0 %v144
    %1331 = vmatpush.msra.mxu0 %v140
    %1332 = vmatpush.msra.mxu0 %v136
    %1333 = vmatpush.msra.mxu0 %v132
    %1334 = vmatpush.msra.mxu0 %v128
    %1335 = vmatpush.msra.mxu0 %v124
    %1336 = vmatmul.f32.gmra.mxu0 %v1312
    %v1337 = vpop.f32.mrf.mxu0
    %v1338 = vadd.f32 0.0, %v1337
    %1339 = vdwg.mxu0
    %1340 = vmatpush.msra.mxu0 %v185
    %1341 = vmatpush.msra.mxu0 %v181
    %1342 = vmatpush.msra.mxu0 %v177
    %1343 = vmatpush.msra.mxu0 %v173
    %1344 = vmatpush.msra.mxu0 %v169
    %1345 = vmatpush.msra.mxu0 %v165
    %1346 = vmatpush.msra.mxu0 %v161
    %1347 = vmatpush.msra.mxu0 %v157
    %1348 = vmatpush.msra.mxu0 %v153
    %1349 = vmatpush.msra.mxu0 %v149
    %1350 = vmatpush.msra.mxu0 %v145
    %1351 = vmatpush.msra.mxu0 %v141
    %1352 = vmatpush.msra.mxu0 %v137
    %1353 = vmatpush.msra.mxu0 %v133
    %1354 = vmatpush.msra.mxu0 %v129
    %1355 = vmatpush.msra.mxu0 %v125
    %1356 = vmatmul.f32.gmra.mxu0 %v1312
    %v1357 = vpop.f32.mrf.mxu0
    %v1358 = vadd.f32 0.0, %v1357
    %1359 = vdwg.mxu0
    %1360 = vmatpush.msra.mxu0 %v186
    %1361 = vmatpush.msra.mxu0 %v182
    %1362 = vmatpush.msra.mxu0 %v178
    %1363 = vmatpush.msra.mxu0 %v174
    %1364 = vmatpush.msra.mxu0 %v170
    %1365 = vmatpush.msra.mxu0 %v166
    %1366 = vmatpush.msra.mxu0 %v162
    %1367 = vmatpush.msra.mxu0 %v158
    %1368 = vmatpush.msra.mxu0 %v154
    %1369 = vmatpush.msra.mxu0 %v150
    %1370 = vmatpush.msra.mxu0 %v146
    %1371 = vmatpush.msra.mxu0 %v142
    %1372 = vmatpush.msra.mxu0 %v138
    %1373 = vmatpush.msra.mxu0 %v134
    %1374 = vmatpush.msra.mxu0 %v130
    %1375 = vmatpush.msra.mxu0 %v126
    %1376 = vmatmul.f32.gmra.mxu0 %v1312
    %v1377 = vpop.f32.mrf.mxu0
    %v1378 = vadd.f32 0.0, %v1377
    %1379 = vdwg.mxu0
    %1380 = vmatpush.msra.mxu0 %v187
    %1381 = vmatpush.msra.mxu0 %v183
    %1382 = vmatpush.msra.mxu0 %v179
    %1383 = vmatpush.msra.mxu0 %v175
    %1384 = vmatpush.msra.mxu0 %v171
    %1385 = vmatpush.msra.mxu0 %v167
    %1386 = vmatpush.msra.mxu0 %v163
    %1387 = vmatpush.msra.mxu0 %v159
    %1388 = vmatpush.msra.mxu0 %v155
    %1389 = vmatpush.msra.mxu0 %v151
    %1390 = vmatpush.msra.mxu0 %v147
    %1391 = vmatpush.msra.mxu0 %v143
    %1392 = vmatpush.msra.mxu0 %v139
    %1393 = vmatpush.msra.mxu0 %v135
    %1394 = vmatpush.msra.mxu0 %v131
    %1395 = vmatpush.msra.mxu0 %v127
    %1396 = vmatmul.f32.gmra.mxu0 %v1312
    %v1397 = vpop.f32.mrf.mxu0
    %v1398 = vadd.f32 0.0, %v1397
    %1399 = vdwg.mxu0
    %v1400 = vadd.f32 %v1316, %v1338
    %v1401 = vadd.f32 %v1317, %v1358
    %v1402 = vadd.f32 %v1318, %v1378
    %v1403 = vadd.f32 %v1319, %v1398
    %v1404 = vxor.u32 %v1400, 2147483648
    %v1405 = vmul.f32 %v1404, 1.442695
    %v1406 = vpow.pop %v1405
    %v1407 = vadd.f32 %v1406, 1.0
    %v1408 = vrcp.pop %v1407
    %v1409 = vmul.f32 %v1407, %v1408
    %v1410 = vsub.f32 1.0, %v1409
    %v1411 = vmul.f32 %v1408, %v1410
    %v1412 = vadd.f32 %v1408, %v1411
    %vm1413 = vweird.f32 %v1407
    %vm1414 = vweird.f32 %v1408
    %vm1415 = vmor %vm1413, %vm1414
    %v1416 = vsel %vm1415, %v1408, %v1412
    %v1417 = vand.u32 2147483647, %v1407
    %vm1418 = vcmp.eq.f32.partialorder %v1417, 8.507059e+37
    %v1419 = vand.u32 %v1407, 2147483648
    %v1420 = vor.u32 1.1754944e-38, %v1419
    %v1421 = vsel %vm1418, %v1420, %v1416
    %v1422 = vmul.f32 1.0, %v1421
    %v1423 = vxor.u32 %v1401, 2147483648
    %v1424 = vmul.f32 %v1423, 1.442695
    %v1425 = vpow.pop %v1424
    %v1426 = vadd.f32 %v1425, 1.0
    %v1427 = vrcp.pop %v1426
    %v1428 = vmul.f32 %v1426, %v1427
    %v1429 = vsub.f32 1.0, %v1428
    %v1430 = vmul.f32 %v1427, %v1429
    %v1431 = vadd.f32 %v1427, %v1430
    %vm1432 = vweird.f32 %v1426
    %vm1433 = vweird.f32 %v1427
    %vm1434 = vmor %vm1432, %vm1433
    %v1435 = vsel %vm1434, %v1427, %v1431
    %v1436 = vand.u32 2147483647, %v1426
    %vm1437 = vcmp.eq.f32.partialorder %v1436, 8.507059e+37
    %v1438 = vand.u32 %v1426, 2147483648
    %v1439 = vor.u32 1.1754944e-38, %v1438
    %v1440 = vsel %vm1437, %v1439, %v1435
    %v1441 = vmul.f32 1.0, %v1440
    %v1442 = vtanh.pop %v1402
    %v1443 = vxor.u32 %v1403, 2147483648
    %v1444 = vmul.f32 %v1443, 1.442695
    %v1445 = vpow.pop %v1444
    %v1446 = vadd.f32 %v1445, 1.0
    %v1447 = vrcp.pop %v1446
    %v1448 = vmul.f32 %v1446, %v1447
    %v1449 = vsub.f32 1.0, %v1448
    %v1450 = vmul.f32 %v1447, %v1449
    %v1451 = vadd.f32 %v1447, %v1450
    %vm1452 = vweird.f32 %v1446
    %vm1453 = vweird.f32 %v1447
    %vm1454 = vmor %vm1452, %vm1453
    %v1455 = vsel %vm1454, %v1447, %v1451
    %v1456 = vand.u32 2147483647, %v1446
    %vm1457 = vcmp.eq.f32.partialorder %v1456, 8.507059e+37
    %v1458 = vand.u32 %v1446, 2147483648
    %v1459 = vor.u32 1.1754944e-38, %v1458
    %v1460 = vsel %vm1457, %v1459, %v1455
    %v1461 = vmul.f32 1.0, %v1460
    %v1462 = vmul.f32 %v1441, %v1311
    %v1463 = vmul.f32 %v1422, %v1442
    %v1464 = vadd.f32 %v1462, %v1463
    %v1465 = vtanh.pop %v1464
    %v1466 = vmul.f32 %v1461, %v1465
    %v1467 = vsel %vm123, 1, 0
    %1468 = vset.pattern.permute.xlu0 0
    %1469 = vperm.xlu0 %1468, %v1467
    %v1470 = vpop.permute.xlu0 %1469
    %vm1471 = vcmp.eq.s32.totalorder %v1470, 1
    %v1472 = vsel %vm1471, %v1464, %v1311
    %v1473 = vsel %vm1471, %v1466, %v1312
    %s1474 = scalar_lea.vmem [#allocation3], 56
    %1475 = vst [vmem:[%s1474] sm:$0xff] %v1466
    %1476 = vst [vmem:[#allocation4] sm:$0xff] %v1473
    %1477 = vst [vmem:[#allocation5] sm:$0xff] %v1472
    %v1478 = vld [vmem:[#allocation11] sm:$0xff]
    %v1479 = vld [vmem:[#allocation11 + $0x8] sm:$0xff]
    %v1480 = vld [vmem:[#allocation11 + $0x10] sm:$0xff]
    %v1481 = vld [vmem:[#allocation11 + $0x18] sm:$0xff]
    %v1482 = vld [vmem:[#allocation11 + $0x20] sm:$0xff]
    %v1483 = vld [vmem:[#allocation11 + $0x28] sm:$0xff]
    %v1484 = vld [vmem:[#allocation11 + $0x30] sm:$0xff]
    %v1485 = vld [vmem:[#allocation11 + $0x38] sm:$0xff]
    %v1486 = vld [vmem:[#allocation11 + $0x40] sm:$0xff]
    %v1487 = vld [vmem:[#allocation11 + $0x48] sm:$0xff]
    %v1488 = vld [vmem:[#allocation11 + $0x50] sm:$0xff]
    %v1489 = vld [vmem:[#allocation11 + $0x58] sm:$0xff]
    %v1490 = vld [vmem:[#allocation11 + $0x60] sm:$0xff]
    %v1491 = vld [vmem:[#allocation11 + $0x68] sm:$0xff]
    %v1492 = vld [vmem:[#allocation11 + $0x70] sm:$0xff]
    %v1493 = vld [vmem:[#allocation11 + $0x78] sm:$0xff]
    %v1494 = vld [vmem:[#allocation11 + $0x80] sm:$0xff]
    %v1495 = vld [vmem:[#allocation11 + $0x88] sm:$0xff]
    %v1496 = vld [vmem:[#allocation11 + $0x90] sm:$0xff]
    %v1497 = vld [vmem:[#allocation11 + $0x98] sm:$0xff]
    %v1498 = vld [vmem:[#allocation11 + $0xa0] sm:$0xff]
    %v1499 = vld [vmem:[#allocation11 + $0xa8] sm:$0xff]
    %v1500 = vld [vmem:[#allocation11 + $0xb0] sm:$0xff]
    %v1501 = vld [vmem:[#allocation11 + $0xb8] sm:$0xff]
    %v1502 = vld [vmem:[#allocation11 + $0xc0] sm:$0xff]
    %v1503 = vld [vmem:[#allocation11 + $0xc8] sm:$0xff]
    %v1504 = vld [vmem:[#allocation11 + $0xd0] sm:$0xff]
    %v1505 = vld [vmem:[#allocation11 + $0xd8] sm:$0xff]
    %v1506 = vld [vmem:[#allocation11 + $0xe0] sm:$0xff]
    %v1507 = vld [vmem:[#allocation11 + $0xe8] sm:$0xff]
    %v1508 = vld [vmem:[#allocation11 + $0xf0] sm:$0xff]
    %v1509 = vld [vmem:[#allocation11 + $0xf8] sm:$0xff]
    %v1510 = vld [vmem:[#allocation11 + $0x100] sm:$0xff]
    %v1511 = vld [vmem:[#allocation11 + $0x108] sm:$0xff]
    %v1512 = vld [vmem:[#allocation11 + $0x110] sm:$0xff]
    %v1513 = vld [vmem:[#allocation11 + $0x118] sm:$0xff]
    %v1514 = vld [vmem:[#allocation11 + $0x120] sm:$0xff]
    %v1515 = vld [vmem:[#allocation11 + $0x128] sm:$0xff]
    %v1516 = vld [vmem:[#allocation11 + $0x130] sm:$0xff]
    %v1517 = vld [vmem:[#allocation11 + $0x138] sm:$0xff]
    %v1518 = vld [vmem:[#allocation11 + $0x140] sm:$0xff]
    %v1519 = vld [vmem:[#allocation11 + $0x148] sm:$0xff]
    %v1520 = vld [vmem:[#allocation11 + $0x150] sm:$0xff]
    %v1521 = vld [vmem:[#allocation11 + $0x158] sm:$0xff]
    %v1522 = vld [vmem:[#allocation11 + $0x160] sm:$0xff]
    %v1523 = vld [vmem:[#allocation11 + $0x168] sm:$0xff]
    %v1524 = vld [vmem:[#allocation11 + $0x170] sm:$0xff]
    %v1525 = vld [vmem:[#allocation11 + $0x178] sm:$0xff]
    %v1526 = vld [vmem:[#allocation11 + $0x180] sm:$0xff]
    %v1527 = vld [vmem:[#allocation11 + $0x188] sm:$0xff]
    %v1528 = vld [vmem:[#allocation11 + $0x190] sm:$0xff]
    %v1529 = vld [vmem:[#allocation11 + $0x198] sm:$0xff]
    %v1530 = vld [vmem:[#allocation11 + $0x1a0] sm:$0xff]
    %v1531 = vld [vmem:[#allocation11 + $0x1a8] sm:$0xff]
    %v1532 = vld [vmem:[#allocation11 + $0x1b0] sm:$0xff]
    %v1533 = vld [vmem:[#allocation11 + $0x1b8] sm:$0xff]
    %v1534 = vld [vmem:[#allocation11 + $0x1c0] sm:$0xff]
    %v1535 = vld [vmem:[#allocation11 + $0x1c8] sm:$0xff]
    %v1536 = vld [vmem:[#allocation11 + $0x1d0] sm:$0xff]
    %v1537 = vld [vmem:[#allocation11 + $0x1d8] sm:$0xff]
    %v1538 = vld [vmem:[#allocation11 + $0x1e0] sm:$0xff]
    %v1539 = vld [vmem:[#allocation11 + $0x1e8] sm:$0xff]
    %v1540 = vld [vmem:[#allocation11 + $0x1f0] sm:$0xff]
    %v1541 = vld [vmem:[#allocation11 + $0x1f8] sm:$0xff]
    %v1542 = vld [vmem:[#allocation3] sm:$0xff]
    %v1543 = vld [vmem:[#allocation3 + $0x8] sm:$0xff]
    %v1544 = vld [vmem:[#allocation3 + $0x10] sm:$0xff]
    %v1545 = vld [vmem:[#allocation3 + $0x18] sm:$0xff]
    %v1546 = vld [vmem:[#allocation3 + $0x20] sm:$0xff]
    %v1547 = vld [vmem:[#allocation3 + $0x28] sm:$0xff]
    %v1548 = vld [vmem:[#allocation3 + $0x30] sm:$0xff]
    %v1549 = vld [vmem:[#allocation3 + $0x38] sm:$0xff]
    %v1550 = vld [vmem:[#allocation12] sm:$0xff]
    %v1551 = vld [vmem:[#allocation12 + $0x8] sm:$0xff]
    %v1552 = vld [vmem:[#allocation12 + $0x10] sm:$0xff]
    %v1553 = vld [vmem:[#allocation12 + $0x18] sm:$0xff]
    %v1554 = vld [vmem:[#allocation12 + $0x20] sm:$0xff]
    %v1555 = vld [vmem:[#allocation12 + $0x28] sm:$0xff]
    %v1556 = vld [vmem:[#allocation12 + $0x30] sm:$0xff]
    %v1557 = vld [vmem:[#allocation12 + $0x38] sm:$0xff]
    %v1558 = vld [vmem:[#allocation12 + $0x40] sm:$0xff]
    %v1559 = vld [vmem:[#allocation12 + $0x48] sm:$0xff]
    %v1560 = vld [vmem:[#allocation12 + $0x50] sm:$0xff]
    %v1561 = vld [vmem:[#allocation12 + $0x58] sm:$0xff]
    %v1562 = vld [vmem:[#allocation12 + $0x60] sm:$0xff]
    %v1563 = vld [vmem:[#allocation12 + $0x68] sm:$0xff]
    %v1564 = vld [vmem:[#allocation12 + $0x70] sm:$0xff]
    %v1565 = vld [vmem:[#allocation12 + $0x78] sm:$0xff]
    %v1566 = vld [vmem:[#allocation12 + $0x80] sm:$0xff]
    %v1567 = vld [vmem:[#allocation12 + $0x88] sm:$0xff]
    %v1568 = vld [vmem:[#allocation12 + $0x90] sm:$0xff]
    %v1569 = vld [vmem:[#allocation12 + $0x98] sm:$0xff]
    %v1570 = vld [vmem:[#allocation12 + $0xa0] sm:$0xff]
    %v1571 = vld [vmem:[#allocation12 + $0xa8] sm:$0xff]
    %v1572 = vld [vmem:[#allocation12 + $0xb0] sm:$0xff]
    %v1573 = vld [vmem:[#allocation12 + $0xb8] sm:$0xff]
    %v1574 = vld [vmem:[#allocation12 + $0xc0] sm:$0xff]
    %v1575 = vld [vmem:[#allocation12 + $0xc8] sm:$0xff]
    %v1576 = vld [vmem:[#allocation12 + $0xd0] sm:$0xff]
    %v1577 = vld [vmem:[#allocation12 + $0xd8] sm:$0xff]
    %v1578 = vld [vmem:[#allocation12 + $0xe0] sm:$0xff]
    %v1579 = vld [vmem:[#allocation12 + $0xe8] sm:$0xff]
    %v1580 = vld [vmem:[#allocation12 + $0xf0] sm:$0xff]
    %v1581 = vld [vmem:[#allocation12 + $0xf8] sm:$0xff]
    %v1582 = vld [vmem:[#allocation12 + $0x100] sm:$0xff]
    %v1583 = vld [vmem:[#allocation12 + $0x108] sm:$0xff]
    %v1584 = vld [vmem:[#allocation12 + $0x110] sm:$0xff]
    %v1585 = vld [vmem:[#allocation12 + $0x118] sm:$0xff]
    %v1586 = vld [vmem:[#allocation12 + $0x120] sm:$0xff]
    %v1587 = vld [vmem:[#allocation12 + $0x128] sm:$0xff]
    %v1588 = vld [vmem:[#allocation12 + $0x130] sm:$0xff]
    %v1589 = vld [vmem:[#allocation12 + $0x138] sm:$0xff]
    %v1590 = vld [vmem:[#allocation12 + $0x140] sm:$0xff]
    %v1591 = vld [vmem:[#allocation12 + $0x148] sm:$0xff]
    %v1592 = vld [vmem:[#allocation12 + $0x150] sm:$0xff]
    %v1593 = vld [vmem:[#allocation12 + $0x158] sm:$0xff]
    %v1594 = vld [vmem:[#allocation12 + $0x160] sm:$0xff]
    %v1595 = vld [vmem:[#allocation12 + $0x168] sm:$0xff]
    %v1596 = vld [vmem:[#allocation12 + $0x170] sm:$0xff]
    %v1597 = vld [vmem:[#allocation12 + $0x178] sm:$0xff]
    %v1598 = vld [vmem:[#allocation12 + $0x180] sm:$0xff]
    %v1599 = vld [vmem:[#allocation12 + $0x188] sm:$0xff]
    %v1600 = vld [vmem:[#allocation12 + $0x190] sm:$0xff]
    %v1601 = vld [vmem:[#allocation12 + $0x198] sm:$0xff]
    %v1602 = vld [vmem:[#allocation12 + $0x1a0] sm:$0xff]
    %v1603 = vld [vmem:[#allocation12 + $0x1a8] sm:$0xff]
    %v1604 = vld [vmem:[#allocation12 + $0x1b0] sm:$0xff]
    %v1605 = vld [vmem:[#allocation12 + $0x1b8] sm:$0xff]
    %v1606 = vld [vmem:[#allocation12 + $0x1c0] sm:$0xff]
    %v1607 = vld [vmem:[#allocation12 + $0x1c8] sm:$0xff]
    %v1608 = vld [vmem:[#allocation12 + $0x1d0] sm:$0xff]
    %v1609 = vld [vmem:[#allocation12 + $0x1d8] sm:$0xff]
    %v1610 = vld [vmem:[#allocation12 + $0x1e0] sm:$0xff]
    %v1611 = vld [vmem:[#allocation12 + $0x1e8] sm:$0xff]
    %v1612 = vld [vmem:[#allocation12 + $0x1f0] sm:$0xff]
    %v1613 = vld [vmem:[#allocation12 + $0x1f8] sm:$0xff]
    %1614 = vmatpush.msra.mxu0 %v1610
    %1615 = vmatpush.msra.mxu0 %v1606
    %1616 = vmatpush.msra.mxu0 %v1602
    %1617 = vmatpush.msra.mxu0 %v1598
    %1618 = vmatpush.msra.mxu0 %v1594
    %1619 = vmatpush.msra.mxu0 %v1590
    %1620 = vmatpush.msra.mxu0 %v1586
    %1621 = vmatpush.msra.mxu0 %v1582
    %1622 = vmatpush.msra.mxu0 %v1578
    %1623 = vmatpush.msra.mxu0 %v1574
    %1624 = vmatpush.msra.mxu0 %v1570
    %1625 = vmatpush.msra.mxu0 %v1566
    %1626 = vmatpush.msra.mxu0 %v1562
    %1627 = vmatpush.msra.mxu0 %v1558
    %1628 = vmatpush.msra.mxu0 %v1554
    %1629 = vmatpush.msra.mxu0 %v1550
    %1630 = vmatmul.f32.gmra.mxu0 %v1542
    %v1631 = vpop.f32.mrf.mxu0
    %v1632 = vadd.f32 0.0, %v1631
    %1633 = vmatmul.f32.gmra.mxu0 %v1543
    %v1634 = vpop.f32.mrf.mxu0
    %v1635 = vadd.f32 0.0, %v1634
    %1636 = vmatmul.f32.gmra.mxu0 %v1544
    %v1637 = vpop.f32.mrf.mxu0
    %v1638 = vadd.f32 0.0, %v1637
    %1639 = vmatmul.f32.gmra.mxu0 %v1545
    %v1640 = vpop.f32.mrf.mxu0
    %v1641 = vadd.f32 0.0, %v1640
    %1642 = vmatmul.f32.gmra.mxu0 %v1546
    %v1643 = vpop.f32.mrf.mxu0
    %v1644 = vadd.f32 0.0, %v1643
    %1645 = vmatmul.f32.gmra.mxu0 %v1547
    %v1646 = vpop.f32.mrf.mxu0
    %v1647 = vadd.f32 0.0, %v1646
    %1648 = vmatmul.f32.gmra.mxu0 %v1548
    %v1649 = vpop.f32.mrf.mxu0
    %v1650 = vadd.f32 0.0, %v1649
    %1651 = vmatmul.f32.gmra.mxu0 %v1549
    %v1652 = vpop.f32.mrf.mxu0
    %v1653 = vadd.f32 0.0, %v1652
    %1654 = vdwg.mxu0
    %1655 = vmatpush.msra.mxu0 %v1611
    %1656 = vmatpush.msra.mxu0 %v1607
    %1657 = vmatpush.msra.mxu0 %v1603
    %1658 = vmatpush.msra.mxu0 %v1599
    %1659 = vmatpush.msra.mxu0 %v1595
    %1660 = vmatpush.msra.mxu0 %v1591
    %1661 = vmatpush.msra.mxu0 %v1587
    %1662 = vmatpush.msra.mxu0 %v1583
    %1663 = vmatpush.msra.mxu0 %v1579
    %1664 = vmatpush.msra.mxu0 %v1575
    %1665 = vmatpush.msra.mxu0 %v1571
    %1666 = vmatpush.msra.mxu0 %v1567
    %1667 = vmatpush.msra.mxu0 %v1563
    %1668 = vmatpush.msra.mxu0 %v1559
    %1669 = vmatpush.msra.mxu0 %v1555
    %1670 = vmatpush.msra.mxu0 %v1551
    %1671 = vmatmul.f32.gmra.mxu0 %v1542
    %v1672 = vpop.f32.mrf.mxu0
    %v1673 = vadd.f32 0.0, %v1672
    %1674 = vmatmul.f32.gmra.mxu0 %v1543
    %v1675 = vpop.f32.mrf.mxu0
    %v1676 = vadd.f32 0.0, %v1675
    %1677 = vmatmul.f32.gmra.mxu0 %v1544
    %v1678 = vpop.f32.mrf.mxu0
    %v1679 = vadd.f32 0.0, %v1678
    %1680 = vmatmul.f32.gmra.mxu0 %v1545
    %v1681 = vpop.f32.mrf.mxu0
    %v1682 = vadd.f32 0.0, %v1681
    %1683 = vmatmul.f32.gmra.mxu0 %v1546
    %v1684 = vpop.f32.mrf.mxu0
    %v1685 = vadd.f32 0.0, %v1684
    %1686 = vmatmul.f32.gmra.mxu0 %v1547
    %v1687 = vpop.f32.mrf.mxu0
    %v1688 = vadd.f32 0.0, %v1687
    %1689 = vmatmul.f32.gmra.mxu0 %v1548
    %v1690 = vpop.f32.mrf.mxu0
    %v1691 = vadd.f32 0.0, %v1690
    %1692 = vmatmul.f32.gmra.mxu0 %v1549
    %v1693 = vpop.f32.mrf.mxu0
    %v1694 = vadd.f32 0.0, %v1693
    %1695 = vdwg.mxu0
    %1696 = vmatpush.msra.mxu0 %v1612
    %1697 = vmatpush.msra.mxu0 %v1608
    %1698 = vmatpush.msra.mxu0 %v1604
    %1699 = vmatpush.msra.mxu0 %v1600
    %1700 = vmatpush.msra.mxu0 %v1596
    %1701 = vmatpush.msra.mxu0 %v1592
    %1702 = vmatpush.msra.mxu0 %v1588
    %1703 = vmatpush.msra.mxu0 %v1584
    %1704 = vmatpush.msra.mxu0 %v1580
    %1705 = vmatpush.msra.mxu0 %v1576
    %1706 = vmatpush.msra.mxu0 %v1572
    %1707 = vmatpush.msra.mxu0 %v1568
    %1708 = vmatpush.msra.mxu0 %v1564
    %1709 = vmatpush.msra.mxu0 %v1560
    %1710 = vmatpush.msra.mxu0 %v1556
    %1711 = vmatpush.msra.mxu0 %v1552
    %1712 = vmatmul.f32.gmra.mxu0 %v1542
    %v1713 = vpop.f32.mrf.mxu0
    %v1714 = vadd.f32 0.0, %v1713
    %1715 = vmatmul.f32.gmra.mxu0 %v1543
    %v1716 = vpop.f32.mrf.mxu0
    %v1717 = vadd.f32 0.0, %v1716
    %1718 = vmatmul.f32.gmra.mxu0 %v1544
    %v1719 = vpop.f32.mrf.mxu0
    %v1720 = vadd.f32 0.0, %v1719
    %1721 = vmatmul.f32.gmra.mxu0 %v1545
    %v1722 = vpop.f32.mrf.mxu0
    %v1723 = vadd.f32 0.0, %v1722
    %1724 = vmatmul.f32.gmra.mxu0 %v1546
    %v1725 = vpop.f32.mrf.mxu0
    %v1726 = vadd.f32 0.0, %v1725
    %1727 = vmatmul.f32.gmra.mxu0 %v1547
    %v1728 = vpop.f32.mrf.mxu0
    %v1729 = vadd.f32 0.0, %v1728
    %1730 = vmatmul.f32.gmra.mxu0 %v1548
    %v1731 = vpop.f32.mrf.mxu0
    %v1732 = vadd.f32 0.0, %v1731
    %1733 = vmatmul.f32.gmra.mxu0 %v1549
    %v1734 = vpop.f32.mrf.mxu0
    %v1735 = vadd.f32 0.0, %v1734
    %1736 = vdwg.mxu0
    %1737 = vmatpush.msra.mxu0 %v1613
    %1738 = vmatpush.msra.mxu0 %v1609
    %1739 = vmatpush.msra.mxu0 %v1605
    %1740 = vmatpush.msra.mxu0 %v1601
    %1741 = vmatpush.msra.mxu0 %v1597
    %1742 = vmatpush.msra.mxu0 %v1593
    %1743 = vmatpush.msra.mxu0 %v1589
    %1744 = vmatpush.msra.mxu0 %v1585
    %1745 = vmatpush.msra.mxu0 %v1581
    %1746 = vmatpush.msra.mxu0 %v1577
    %1747 = vmatpush.msra.mxu0 %v1573
    %1748 = vmatpush.msra.mxu0 %v1569
    %1749 = vmatpush.msra.mxu0 %v1565
    %1750 = vmatpush.msra.mxu0 %v1561
    %1751 = vmatpush.msra.mxu0 %v1557
    %1752 = vmatpush.msra.mxu0 %v1553
    %1753 = vmatmul.f32.gmra.mxu0 %v1542
    %v1754 = vpop.f32.mrf.mxu0
    %v1755 = vadd.f32 0.0, %v1754
    %1756 = vmatmul.f32.gmra.mxu0 %v1543
    %v1757 = vpop.f32.mrf.mxu0
    %v1758 = vadd.f32 0.0, %v1757
    %1759 = vmatmul.f32.gmra.mxu0 %v1544
    %v1760 = vpop.f32.mrf.mxu0
    %v1761 = vadd.f32 0.0, %v1760
    %1762 = vmatmul.f32.gmra.mxu0 %v1545
    %v1763 = vpop.f32.mrf.mxu0
    %v1764 = vadd.f32 0.0, %v1763
    %1765 = vmatmul.f32.gmra.mxu0 %v1546
    %v1766 = vpop.f32.mrf.mxu0
    %v1767 = vadd.f32 0.0, %v1766
    %1768 = vmatmul.f32.gmra.mxu0 %v1547
    %v1769 = vpop.f32.mrf.mxu0
    %v1770 = vadd.f32 0.0, %v1769
    %1771 = vmatmul.f32.gmra.mxu0 %v1548
    %v1772 = vpop.f32.mrf.mxu0
    %v1773 = vadd.f32 0.0, %v1772
    %1774 = vmatmul.f32.gmra.mxu0 %v1549
    %v1775 = vpop.f32.mrf.mxu0
    %v1776 = vadd.f32 0.0, %v1775
    %1777 = vdwg.mxu0
    %v1778 = vld [vmem:[%s5] sm:$0xf]
    %v1780 = vperm.slane %v1778, 0
    %v1781 = vperm.slane %v1778, 1
    %v1782 = vperm.slane %v1778, 2
    %v1783 = vperm.slane %v1778, 3
    %v1788 = vadd.f32 %v1632, %v1780
    %v1789 = vadd.f32 %v1673, %v1781
    %v1790 = vadd.f32 %v1714, %v1782
    %v1791 = vadd.f32 %v1755, %v1783
    %v1792 = vadd.f32 %v1635, %v1780
    %v1793 = vadd.f32 %v1676, %v1781
    %v1794 = vadd.f32 %v1717, %v1782
    %v1795 = vadd.f32 %v1758, %v1783
    %v1796 = vadd.f32 %v1638, %v1780
    %v1797 = vadd.f32 %v1679, %v1781
    %v1798 = vadd.f32 %v1720, %v1782
    %v1799 = vadd.f32 %v1761, %v1783
    %v1800 = vadd.f32 %v1641, %v1780
    %v1801 = vadd.f32 %v1682, %v1781
    %v1802 = vadd.f32 %v1723, %v1782
    %v1803 = vadd.f32 %v1764, %v1783
    %v1804 = vadd.f32 %v1644, %v1780
    %v1805 = vadd.f32 %v1685, %v1781
    %v1806 = vadd.f32 %v1726, %v1782
    %v1807 = vadd.f32 %v1767, %v1783
    %v1808 = vadd.f32 %v1647, %v1780
    %v1809 = vadd.f32 %v1688, %v1781
    %v1810 = vadd.f32 %v1729, %v1782
    %v1811 = vadd.f32 %v1770, %v1783
    %v1812 = vadd.f32 %v1650, %v1780
    %v1813 = vadd.f32 %v1691, %v1781
    %v1814 = vadd.f32 %v1732, %v1782
    %v1815 = vadd.f32 %v1773, %v1783
    %v1816 = vadd.f32 %v1653, %v1780
    %v1817 = vadd.f32 %v1694, %v1781
    %v1818 = vadd.f32 %v1735, %v1782
    %v1819 = vadd.f32 %v1776, %v1783
    %1820 = vst [vmem:[#allocation2] sm:$0xff] %v1788
    %1821 = vst [vmem:[#allocation2 + $0x8] sm:$0xff] %v1789
    %1822 = vst [vmem:[#allocation2 + $0x10] sm:$0xff] %v1790
    %1823 = vst [vmem:[#allocation2 + $0x18] sm:$0xff] %v1791
    %1824 = vst [vmem:[#allocation2 + $0x20] sm:$0xff] %v1792
    %1825 = vst [vmem:[#allocation2 + $0x28] sm:$0xff] %v1793
    %1826 = vst [vmem:[#allocation2 + $0x30] sm:$0xff] %v1794
    %1827 = vst [vmem:[#allocation2 + $0x38] sm:$0xff] %v1795
    %1828 = vst [vmem:[#allocation2 + $0x40] sm:$0xff] %v1796
    %1829 = vst [vmem:[#allocation2 + $0x48] sm:$0xff] %v1797
    %1830 = vst [vmem:[#allocation2 + $0x50] sm:$0xff] %v1798
    %1831 = vst [vmem:[#allocation2 + $0x58] sm:$0xff] %v1799
    %1832 = vst [vmem:[#allocation2 + $0x60] sm:$0xff] %v1800
    %1833 = vst [vmem:[#allocation2 + $0x68] sm:$0xff] %v1801
    %1834 = vst [vmem:[#allocation2 + $0x70] sm:$0xff] %v1802
    %1835 = vst [vmem:[#allocation2 + $0x78] sm:$0xff] %v1803
    %1836 = vst [vmem:[#allocation2 + $0x80] sm:$0xff] %v1804
    %1837 = vst [vmem:[#allocation2 + $0x88] sm:$0xff] %v1805
    %1838 = vst [vmem:[#allocation2 + $0x90] sm:$0xff] %v1806
    %1839 = vst [vmem:[#allocation2 + $0x98] sm:$0xff] %v1807
    %1840 = vst [vmem:[#allocation2 + $0xa0] sm:$0xff] %v1808
    %1841 = vst [vmem:[#allocation2 + $0xa8] sm:$0xff] %v1809
    %1842 = vst [vmem:[#allocation2 + $0xb0] sm:$0xff] %v1810
    %1843 = vst [vmem:[#allocation2 + $0xb8] sm:$0xff] %v1811
    %1844 = vst [vmem:[#allocation2 + $0xc0] sm:$0xff] %v1812
    %1845 = vst [vmem:[#allocation2 + $0xc8] sm:$0xff] %v1813
    %1846 = vst [vmem:[#allocation2 + $0xd0] sm:$0xff] %v1814
    %1847 = vst [vmem:[#allocation2 + $0xd8] sm:$0xff] %v1815
    %1848 = vst [vmem:[#allocation2 + $0xe0] sm:$0xff] %v1816
    %1849 = vst [vmem:[#allocation2 + $0xe8] sm:$0xff] %v1817
    %1850 = vst [vmem:[#allocation2 + $0xf0] sm:$0xff] %v1818
    %1851 = vst [vmem:[#allocation2 + $0xf8] sm:$0xff] %v1819
    %s1852 = scalar_lea.vmem [#allocation4], 8
    %v1853 = vld [vmem:[%s1852] sm:$0xff]
    %s1854 = scalar_lea.vmem [#allocation5], 8
    %v1855 = vld [vmem:[%s1854] sm:$0xff]
    %v1856 = vld [vmem:[#allocation2] sm:$0xff]
    %v1857 = vld [vmem:[#allocation2 + $0x8] sm:$0xff]
    %v1858 = vld [vmem:[#allocation2 + $0x10] sm:$0xff]
    %v1859 = vld [vmem:[#allocation2 + $0x18] sm:$0xff]
    %1860 = vmatpush.msra.mxu0 %v1538
    %1861 = vmatpush.msra.mxu0 %v1534
    %1862 = vmatpush.msra.mxu0 %v1530
    %1863 = vmatpush.msra.mxu0 %v1526
    %1864 = vmatpush.msra.mxu0 %v1522
    %1865 = vmatpush.msra.mxu0 %v1518
    %1866 = vmatpush.msra.mxu0 %v1514
    %1867 = vmatpush.msra.mxu0 %v1510
    %1868 = vmatpush.msra.mxu0 %v1506
    %1869 = vmatpush.msra.mxu0 %v1502
    %1870 = vmatpush.msra.mxu0 %v1498
    %1871 = vmatpush.msra.mxu0 %v1494
    %1872 = vmatpush.msra.mxu0 %v1490
    %1873 = vmatpush.msra.mxu0 %v1486
    %1874 = vmatpush.msra.mxu0 %v1482
    %1875 = vmatpush.msra.mxu0 %v1478
    %1876 = vmatmul.f32.gmra.mxu0 %v1853
    %v1877 = vpop.f32.mrf.mxu0
    %v1878 = vadd.f32 0.0, %v1877
    %1879 = vdwg.mxu0
    %1880 = vmatpush.msra.mxu0 %v1539
    %1881 = vmatpush.msra.mxu0 %v1535
    %1882 = vmatpush.msra.mxu0 %v1531
    %1883 = vmatpush.msra.mxu0 %v1527
    %1884 = vmatpush.msra.mxu0 %v1523
    %1885 = vmatpush.msra.mxu0 %v1519
    %1886 = vmatpush.msra.mxu0 %v1515
    %1887 = vmatpush.msra.mxu0 %v1511
    %1888 = vmatpush.msra.mxu0 %v1507
    %1889 = vmatpush.msra.mxu0 %v1503
    %1890 = vmatpush.msra.mxu0 %v1499
    %1891 = vmatpush.msra.mxu0 %v1495
    %1892 = vmatpush.msra.mxu0 %v1491
    %1893 = vmatpush.msra.mxu0 %v1487
    %1894 = vmatpush.msra.mxu0 %v1483
    %1895 = vmatpush.msra.mxu0 %v1479
    %1896 = vmatmul.f32.gmra.mxu0 %v1853
    %v1897 = vpop.f32.mrf.mxu0
    %v1898 = vadd.f32 0.0, %v1897
    %1899 = vdwg.mxu0
    %1900 = vmatpush.msra.mxu0 %v1540
    %1901 = vmatpush.msra.mxu0 %v1536
    %1902 = vmatpush.msra.mxu0 %v1532
    %1903 = vmatpush.msra.mxu0 %v1528
    %1904 = vmatpush.msra.mxu0 %v1524
    %1905 = vmatpush.msra.mxu0 %v1520
    %1906 = vmatpush.msra.mxu0 %v1516
    %1907 = vmatpush.msra.mxu0 %v1512
    %1908 = vmatpush.msra.mxu0 %v1508
    %1909 = vmatpush.msra.mxu0 %v1504
    %1910 = vmatpush.msra.mxu0 %v1500
    %1911 = vmatpush.msra.mxu0 %v1496
    %1912 = vmatpush.msra.mxu0 %v1492
    %1913 = vmatpush.msra.mxu0 %v1488
    %1914 = vmatpush.msra.mxu0 %v1484
    %1915 = vmatpush.msra.mxu0 %v1480
    %1916 = vmatmul.f32.gmra.mxu0 %v1853
    %v1917 = vpop.f32.mrf.mxu0
    %v1918 = vadd.f32 0.0, %v1917
    %1919 = vdwg.mxu0
    %1920 = vmatpush.msra.mxu0 %v1541
    %1921 = vmatpush.msra.mxu0 %v1537
    %1922 = vmatpush.msra.mxu0 %v1533
    %1923 = vmatpush.msra.mxu0 %v1529
    %1924 = vmatpush.msra.mxu0 %v1525
    %1925 = vmatpush.msra.mxu0 %v1521
    %1926 = vmatpush.msra.mxu0 %v1517
    %1927 = vmatpush.msra.mxu0 %v1513
    %1928 = vmatpush.msra.mxu0 %v1509
    %1929 = vmatpush.msra.mxu0 %v1505
    %1930 = vmatpush.msra.mxu0 %v1501
    %1931 = vmatpush.msra.mxu0 %v1497
    %1932 = vmatpush.msra.mxu0 %v1493
    %1933 = vmatpush.msra.mxu0 %v1489
    %1934 = vmatpush.msra.mxu0 %v1485
    %1935 = vmatpush.msra.mxu0 %v1481
    %1936 = vmatmul.f32.gmra.mxu0 %v1853
    %v1937 = vpop.f32.mrf.mxu0
    %v1938 = vadd.f32 0.0, %v1937
    %1939 = vdwg.mxu0
    %v1940 = vadd.f32 %v1856, %v1878
    %v1941 = vadd.f32 %v1857, %v1898
    %v1942 = vadd.f32 %v1858, %v1918
    %v1943 = vadd.f32 %v1859, %v1938
    %v1944 = vxor.u32 %v1940, 2147483648
    %v1945 = vmul.f32 %v1944, 1.442695
    %v1946 = vpow.pop %v1945
    %v1947 = vadd.f32 %v1946, 1.0
    %v1948 = vrcp.pop %v1947
    %v1949 = vmul.f32 %v1947, %v1948
    %v1950 = vsub.f32 1.0, %v1949
    %v1951 = vmul.f32 %v1948, %v1950
    %v1952 = vadd.f32 %v1948, %v1951
    %vm1953 = vweird.f32 %v1947
    %vm1954 = vweird.f32 %v1948
    %vm1955 = vmor %vm1953, %vm1954
    %v1956 = vsel %vm1955, %v1948, %v1952
    %v1957 = vand.u32 2147483647, %v1947
    %vm1958 = vcmp.eq.f32.partialorder %v1957, 8.507059e+37
    %v1959 = vand.u32 %v1947, 2147483648
    %v1960 = vor.u32 1.1754944e-38, %v1959
    %v1961 = vsel %vm1958, %v1960, %v1956
    %v1962 = vmul.f32 1.0, %v1961
    %v1963 = vxor.u32 %v1941, 2147483648
    %v1964 = vmul.f32 %v1963, 1.442695
    %v1965 = vpow.pop %v1964
    %v1966 = vadd.f32 %v1965, 1.0
    %v1967 = vrcp.pop %v1966
    %v1968 = vmul.f32 %v1966, %v1967
    %v1969 = vsub.f32 1.0, %v1968
    %v1970 = vmul.f32 %v1967, %v1969
    %v1971 = vadd.f32 %v1967, %v1970
    %vm1972 = vweird.f32 %v1966
    %vm1973 = vweird.f32 %v1967
    %vm1974 = vmor %vm1972, %vm1973
    %v1975 = vsel %vm1974, %v1967, %v1971
    %v1976 = vand.u32 2147483647, %v1966
    %vm1977 = vcmp.eq.f32.partialorder %v1976, 8.507059e+37
    %v1978 = vand.u32 %v1966, 2147483648
    %v1979 = vor.u32 1.1754944e-38, %v1978
    %v1980 = vsel %vm1977, %v1979, %v1975
    %v1981 = vmul.f32 1.0, %v1980
    %v1982 = vtanh.pop %v1942
    %v1983 = vxor.u32 %v1943, 2147483648
    %v1984 = vmul.f32 %v1983, 1.442695
    %v1985 = vpow.pop %v1984
    %v1986 = vadd.f32 %v1985, 1.0
    %v1987 = vrcp.pop %v1986
    %v1988 = vmul.f32 %v1986, %v1987
    %v1989 = vsub.f32 1.0, %v1988
    %v1990 = vmul.f32 %v1987, %v1989
    %v1991 = vadd.f32 %v1987, %v1990
    %vm1992 = vweird.f32 %v1986
    %vm1993 = vweird.f32 %v1987
    %vm1994 = vmor %vm1992, %vm1993
    %v1995 = vsel %vm1994, %v1987, %v1991
    %v1996 = vand.u32 2147483647, %v1986
    %vm1997 = vcmp.eq.f32.partialorder %v1996, 8.507059e+37
    %v1998 = vand.u32 %v1986, 2147483648
    %v1999 = vor.u32 1.1754944e-38, %v1998
    %v2000 = vsel %vm1997, %v1999, %v1995
    %v2001 = vmul.f32 1.0, %v2000
    %v2002 = vmul.f32 %v1981, %v1855
    %v2003 = vmul.f32 %v1962, %v1982
    %v2004 = vadd.f32 %v2002, %v2003
    %v2005 = vtanh.pop %v2004
    %v2006 = vmul.f32 %v2001, %v2005
    %v2007 = vsel %vm345, %v2004, %v1855
    %v2008 = vsel %vm345, %v2006, %v1853
    %v2009 = vsel %vm345, %v2006, 0.0
    %2010 = vst [vmem:[#allocation14] sm:$0xff] %v2009
    %s2011 = scalar_lea.vmem [#allocation2], 32
    %v2012 = vld [vmem:[%s2011] sm:$0xff]
    %v2013 = vld [vmem:[%s2011 + $0x8] sm:$0xff]
    %v2014 = vld [vmem:[%s2011 + $0x10] sm:$0xff]
    %v2015 = vld [vmem:[%s2011 + $0x18] sm:$0xff]
    %2016 = vmatpush.msra.mxu0 %v1538
    %2017 = vmatpush.msra.mxu0 %v1534
    %2018 = vmatpush.msra.mxu0 %v1530
    %2019 = vmatpush.msra.mxu0 %v1526
    %2020 = vmatpush.msra.mxu0 %v1522
    %2021 = vmatpush.msra.mxu0 %v1518
    %2022 = vmatpush.msra.mxu0 %v1514
    %2023 = vmatpush.msra.mxu0 %v1510
    %2024 = vmatpush.msra.mxu0 %v1506
    %2025 = vmatpush.msra.mxu0 %v1502
    %2026 = vmatpush.msra.mxu0 %v1498
    %2027 = vmatpush.msra.mxu0 %v1494
    %2028 = vmatpush.msra.mxu0 %v1490
    %2029 = vmatpush.msra.mxu0 %v1486
    %2030 = vmatpush.msra.mxu0 %v1482
    %2031 = vmatpush.msra.mxu0 %v1478
    %2032 = vmatmul.f32.gmra.mxu0 %v2008
    %v2033 = vpop.f32.mrf.mxu0
    %v2034 = vadd.f32 0.0, %v2033
    %2035 = vdwg.mxu0
    %2036 = vmatpush.msra.mxu0 %v1539
    %2037 = vmatpush.msra.mxu0 %v1535
    %2038 = vmatpush.msra.mxu0 %v1531
    %2039 = vmatpush.msra.mxu0 %v1527
    %2040 = vmatpush.msra.mxu0 %v1523
    %2041 = vmatpush.msra.mxu0 %v1519
    %2042 = vmatpush.msra.mxu0 %v1515
    %2043 = vmatpush.msra.mxu0 %v1511
    %2044 = vmatpush.msra.mxu0 %v1507
    %2045 = vmatpush.msra.mxu0 %v1503
    %2046 = vmatpush.msra.mxu0 %v1499
    %2047 = vmatpush.msra.mxu0 %v1495
    %2048 = vmatpush.msra.mxu0 %v1491
    %2049 = vmatpush.msra.mxu0 %v1487
    %2050 = vmatpush.msra.mxu0 %v1483
    %2051 = vmatpush.msra.mxu0 %v1479
    %2052 = vmatmul.f32.gmra.mxu0 %v2008
    %v2053 = vpop.f32.mrf.mxu0
    %v2054 = vadd.f32 0.0, %v2053
    %2055 = vdwg.mxu0
    %2056 = vmatpush.msra.mxu0 %v1540
    %2057 = vmatpush.msra.mxu0 %v1536
    %2058 = vmatpush.msra.mxu0 %v1532
    %2059 = vmatpush.msra.mxu0 %v1528
    %2060 = vmatpush.msra.mxu0 %v1524
    %2061 = vmatpush.msra.mxu0 %v1520
    %2062 = vmatpush.msra.mxu0 %v1516
    %2063 = vmatpush.msra.mxu0 %v1512
    %2064 = vmatpush.msra.mxu0 %v1508
    %2065 = vmatpush.msra.mxu0 %v1504
    %2066 = vmatpush.msra.mxu0 %v1500
    %2067 = vmatpush.msra.mxu0 %v1496
    %2068 = vmatpush.msra.mxu0 %v1492
    %2069 = vmatpush.msra.mxu0 %v1488
    %2070 = vmatpush.msra.mxu0 %v1484
    %2071 = vmatpush.msra.mxu0 %v1480
    %2072 = vmatmul.f32.gmra.mxu0 %v2008
    %v2073 = vpop.f32.mrf.mxu0
    %v2074 = vadd.f32 0.0, %v2073
    %2075 = vdwg.mxu0
    %2076 = vmatpush.msra.mxu0 %v1541
    %2077 = vmatpush.msra.mxu0 %v1537
    %2078 = vmatpush.msra.mxu0 %v1533
    %2079 = vmatpush.msra.mxu0 %v1529
    %2080 = vmatpush.msra.mxu0 %v1525
    %2081 = vmatpush.msra.mxu0 %v1521
    %2082 = vmatpush.msra.mxu0 %v1517
    %2083 = vmatpush.msra.mxu0 %v1513
    %2084 = vmatpush.msra.mxu0 %v1509
    %2085 = vmatpush.msra.mxu0 %v1505
    %2086 = vmatpush.msra.mxu0 %v1501
    %2087 = vmatpush.msra.mxu0 %v1497
    %2088 = vmatpush.msra.mxu0 %v1493
    %2089 = vmatpush.msra.mxu0 %v1489
    %2090 = vmatpush.msra.mxu0 %v1485
    %2091 = vmatpush.msra.mxu0 %v1481
    %2092 = vmatmul.f32.gmra.mxu0 %v2008
    %v2093 = vpop.f32.mrf.mxu0
    %v2094 = vadd.f32 0.0, %v2093
    %2095 = vdwg.mxu0
    %v2096 = vadd.f32 %v2012, %v2034
    %v2097 = vadd.f32 %v2013, %v2054
    %v2098 = vadd.f32 %v2014, %v2074
    %v2099 = vadd.f32 %v2015, %v2094
    %v2100 = vxor.u32 %v2096, 2147483648
    %v2101 = vmul.f32 %v2100, 1.442695
    %v2102 = vpow.pop %v2101
    %v2103 = vadd.f32 %v2102, 1.0
    %v2104 = vrcp.pop %v2103
    %v2105 = vmul.f32 %v2103, %v2104
    %v2106 = vsub.f32 1.0, %v2105
    %v2107 = vmul.f32 %v2104, %v2106
    %v2108 = vadd.f32 %v2104, %v2107
    %vm2109 = vweird.f32 %v2103
    %vm2110 = vweird.f32 %v2104
    %vm2111 = vmor %vm2109, %vm2110
    %v2112 = vsel %vm2111, %v2104, %v2108
    %v2113 = vand.u32 2147483647, %v2103
    %vm2114 = vcmp.eq.f32.partialorder %v2113, 8.507059e+37
    %v2115 = vand.u32 %v2103, 2147483648
    %v2116 = vor.u32 1.1754944e-38, %v2115
    %v2117 = vsel %vm2114, %v2116, %v2112
    %v2118 = vmul.f32 1.0, %v2117
    %v2119 = vxor.u32 %v2097, 2147483648
    %v2120 = vmul.f32 %v2119, 1.442695
    %v2121 = vpow.pop %v2120
    %v2122 = vadd.f32 %v2121, 1.0
    %v2123 = vrcp.pop %v2122
    %v2124 = vmul.f32 %v2122, %v2123
    %v2125 = vsub.f32 1.0, %v2124
    %v2126 = vmul.f32 %v2123, %v2125
    %v2127 = vadd.f32 %v2123, %v2126
    %vm2128 = vweird.f32 %v2122
    %vm2129 = vweird.f32 %v2123
    %vm2130 = vmor %vm2128, %vm2129
    %v2131 = vsel %vm2130, %v2123, %v2127
    %v2132 = vand.u32 2147483647, %v2122
    %vm2133 = vcmp.eq.f32.partialorder %v2132, 8.507059e+37
    %v2134 = vand.u32 %v2122, 2147483648
    %v2135 = vor.u32 1.1754944e-38, %v2134
    %v2136 = vsel %vm2133, %v2135, %v2131
    %v2137 = vmul.f32 1.0, %v2136
    %v2138 = vtanh.pop %v2098
    %v2139 = vxor.u32 %v2099, 2147483648
    %v2140 = vmul.f32 %v2139, 1.442695
    %v2141 = vpow.pop %v2140
    %v2142 = vadd.f32 %v2141, 1.0
    %v2143 = vrcp.pop %v2142
    %v2144 = vmul.f32 %v2142, %v2143
    %v2145 = vsub.f32 1.0, %v2144
    %v2146 = vmul.f32 %v2143, %v2145
    %v2147 = vadd.f32 %v2143, %v2146
    %vm2148 = vweird.f32 %v2142
    %vm2149 = vweird.f32 %v2143
    %vm2150 = vmor %vm2148, %vm2149
    %v2151 = vsel %vm2150, %v2143, %v2147
    %v2152 = vand.u32 2147483647, %v2142
    %vm2153 = vcmp.eq.f32.partialorder %v2152, 8.507059e+37
    %v2154 = vand.u32 %v2142, 2147483648
    %v2155 = vor.u32 1.1754944e-38, %v2154
    %v2156 = vsel %vm2153, %v2155, %v2151
    %v2157 = vmul.f32 1.0, %v2156
    %v2158 = vmul.f32 %v2137, %v2007
    %v2159 = vmul.f32 %v2118, %v2138
    %v2160 = vadd.f32 %v2158, %v2159
    %v2161 = vtanh.pop %v2160
    %v2162 = vmul.f32 %v2157, %v2161
    %v2163 = vsel %vm505, %v2160, %v2007
    %v2164 = vsel %vm505, %v2162, %v2008
    %v2165 = vsel %vm505, %v2162, 0.0
    %s2166 = scalar_lea.vmem [#allocation14], 8
    %2167 = vst [vmem:[%s2166] sm:$0xff] %v2165
    %s2168 = scalar_lea.vmem [#allocation2], 64
    %v2169 = vld [vmem:[%s2168] sm:$0xff]
    %v2170 = vld [vmem:[%s2168 + $0x8] sm:$0xff]
    %v2171 = vld [vmem:[%s2168 + $0x10] sm:$0xff]
    %v2172 = vld [vmem:[%s2168 + $0x18] sm:$0xff]
    %2173 = vmatpush.msra.mxu0 %v1538
    %2174 = vmatpush.msra.mxu0 %v1534
    %2175 = vmatpush.msra.mxu0 %v1530
    %2176 = vmatpush.msra.mxu0 %v1526
    %2177 = vmatpush.msra.mxu0 %v1522
    %2178 = vmatpush.msra.mxu0 %v1518
    %2179 = vmatpush.msra.mxu0 %v1514
    %2180 = vmatpush.msra.mxu0 %v1510
    %2181 = vmatpush.msra.mxu0 %v1506
    %2182 = vmatpush.msra.mxu0 %v1502
    %2183 = vmatpush.msra.mxu0 %v1498
    %2184 = vmatpush.msra.mxu0 %v1494
    %2185 = vmatpush.msra.mxu0 %v1490
    %2186 = vmatpush.msra.mxu0 %v1486
    %2187 = vmatpush.msra.mxu0 %v1482
    %2188 = vmatpush.msra.mxu0 %v1478
    %2189 = vmatmul.f32.gmra.mxu0 %v2164
    %v2190 = vpop.f32.mrf.mxu0
    %v2191 = vadd.f32 0.0, %v2190
    %2192 = vdwg.mxu0
    %2193 = vmatpush.msra.mxu0 %v1539
    %2194 = vmatpush.msra.mxu0 %v1535
    %2195 = vmatpush.msra.mxu0 %v1531
    %2196 = vmatpush.msra.mxu0 %v1527
    %2197 = vmatpush.msra.mxu0 %v1523
    %2198 = vmatpush.msra.mxu0 %v1519
    %2199 = vmatpush.msra.mxu0 %v1515
    %2200 = vmatpush.msra.mxu0 %v1511
    %2201 = vmatpush.msra.mxu0 %v1507
    %2202 = vmatpush.msra.mxu0 %v1503
    %2203 = vmatpush.msra.mxu0 %v1499
    %2204 = vmatpush.msra.mxu0 %v1495
    %2205 = vmatpush.msra.mxu0 %v1491
    %2206 = vmatpush.msra.mxu0 %v1487
    %2207 = vmatpush.msra.mxu0 %v1483
    %2208 = vmatpush.msra.mxu0 %v1479
    %2209 = vmatmul.f32.gmra.mxu0 %v2164
    %v2210 = vpop.f32.mrf.mxu0
    %v2211 = vadd.f32 0.0, %v2210
    %2212 = vdwg.mxu0
    %2213 = vmatpush.msra.mxu0 %v1540
    %2214 = vmatpush.msra.mxu0 %v1536
    %2215 = vmatpush.msra.mxu0 %v1532
    %2216 = vmatpush.msra.mxu0 %v1528
    %2217 = vmatpush.msra.mxu0 %v1524
    %2218 = vmatpush.msra.mxu0 %v1520
    %2219 = vmatpush.msra.mxu0 %v1516
    %2220 = vmatpush.msra.mxu0 %v1512
    %2221 = vmatpush.msra.mxu0 %v1508
    %2222 = vmatpush.msra.mxu0 %v1504
    %2223 = vmatpush.msra.mxu0 %v1500
    %2224 = vmatpush.msra.mxu0 %v1496
    %2225 = vmatpush.msra.mxu0 %v1492
    %2226 = vmatpush.msra.mxu0 %v1488
    %2227 = vmatpush.msra.mxu0 %v1484
    %2228 = vmatpush.msra.mxu0 %v1480
    %2229 = vmatmul.f32.gmra.mxu0 %v2164
    %v2230 = vpop.f32.mrf.mxu0
    %v2231 = vadd.f32 0.0, %v2230
    %2232 = vdwg.mxu0
    %2233 = vmatpush.msra.mxu0 %v1541
    %2234 = vmatpush.msra.mxu0 %v1537
    %2235 = vmatpush.msra.mxu0 %v1533
    %2236 = vmatpush.msra.mxu0 %v1529
    %2237 = vmatpush.msra.mxu0 %v1525
    %2238 = vmatpush.msra.mxu0 %v1521
    %2239 = vmatpush.msra.mxu0 %v1517
    %2240 = vmatpush.msra.mxu0 %v1513
    %2241 = vmatpush.msra.mxu0 %v1509
    %2242 = vmatpush.msra.mxu0 %v1505
    %2243 = vmatpush.msra.mxu0 %v1501
    %2244 = vmatpush.msra.mxu0 %v1497
    %2245 = vmatpush.msra.mxu0 %v1493
    %2246 = vmatpush.msra.mxu0 %v1489
    %2247 = vmatpush.msra.mxu0 %v1485
    %2248 = vmatpush.msra.mxu0 %v1481
    %2249 = vmatmul.f32.gmra.mxu0 %v2164
    %v2250 = vpop.f32.mrf.mxu0
    %v2251 = vadd.f32 0.0, %v2250
    %2252 = vdwg.mxu0
    %v2253 = vadd.f32 %v2169, %v2191
    %v2254 = vadd.f32 %v2170, %v2211
    %v2255 = vadd.f32 %v2171, %v2231
    %v2256 = vadd.f32 %v2172, %v2251
    %v2257 = vxor.u32 %v2253, 2147483648
    %v2258 = vmul.f32 %v2257, 1.442695
    %v2259 = vpow.pop %v2258
    %v2260 = vadd.f32 %v2259, 1.0
    %v2261 = vrcp.pop %v2260
    %v2262 = vmul.f32 %v2260, %v2261
    %v2263 = vsub.f32 1.0, %v2262
    %v2264 = vmul.f32 %v2261, %v2263
    %v2265 = vadd.f32 %v2261, %v2264
    %vm2266 = vweird.f32 %v2260
    %vm2267 = vweird.f32 %v2261
    %vm2268 = vmor %vm2266, %vm2267
    %v2269 = vsel %vm2268, %v2261, %v2265
    %v2270 = vand.u32 2147483647, %v2260
    %vm2271 = vcmp.eq.f32.partialorder %v2270, 8.507059e+37
    %v2272 = vand.u32 %v2260, 2147483648
    %v2273 = vor.u32 1.1754944e-38, %v2272
    %v2274 = vsel %vm2271, %v2273, %v2269
    %v2275 = vmul.f32 1.0, %v2274
    %v2276 = vxor.u32 %v2254, 2147483648
    %v2277 = vmul.f32 %v2276, 1.442695
    %v2278 = vpow.pop %v2277
    %v2279 = vadd.f32 %v2278, 1.0
    %v2280 = vrcp.pop %v2279
    %v2281 = vmul.f32 %v2279, %v2280
    %v2282 = vsub.f32 1.0, %v2281
    %v2283 = vmul.f32 %v2280, %v2282
    %v2284 = vadd.f32 %v2280, %v2283
    %vm2285 = vweird.f32 %v2279
    %vm2286 = vweird.f32 %v2280
    %vm2287 = vmor %vm2285, %vm2286
    %v2288 = vsel %vm2287, %v2280, %v2284
    %v2289 = vand.u32 2147483647, %v2279
    %vm2290 = vcmp.eq.f32.partialorder %v2289, 8.507059e+37
    %v2291 = vand.u32 %v2279, 2147483648
    %v2292 = vor.u32 1.1754944e-38, %v2291
    %v2293 = vsel %vm2290, %v2292, %v2288
    %v2294 = vmul.f32 1.0, %v2293
    %v2295 = vtanh.pop %v2255
    %v2296 = vxor.u32 %v2256, 2147483648
    %v2297 = vmul.f32 %v2296, 1.442695
    %v2298 = vpow.pop %v2297
    %v2299 = vadd.f32 %v2298, 1.0
    %v2300 = vrcp.pop %v2299
    %v2301 = vmul.f32 %v2299, %v2300
    %v2302 = vsub.f32 1.0, %v2301
    %v2303 = vmul.f32 %v2300, %v2302
    %v2304 = vadd.f32 %v2300, %v2303
    %vm2305 = vweird.f32 %v2299
    %vm2306 = vweird.f32 %v2300
    %vm2307 = vmor %vm2305, %vm2306
    %v2308 = vsel %vm2307, %v2300, %v2304
    %v2309 = vand.u32 2147483647, %v2299
    %vm2310 = vcmp.eq.f32.partialorder %v2309, 8.507059e+37
    %v2311 = vand.u32 %v2299, 2147483648
    %v2312 = vor.u32 1.1754944e-38, %v2311
    %v2313 = vsel %vm2310, %v2312, %v2308
    %v2314 = vmul.f32 1.0, %v2313
    %v2315 = vmul.f32 %v2294, %v2163
    %v2316 = vmul.f32 %v2275, %v2295
    %v2317 = vadd.f32 %v2315, %v2316
    %v2318 = vtanh.pop %v2317
    %v2319 = vmul.f32 %v2314, %v2318
    %v2320 = vsel %vm666, %v2317, %v2163
    %v2321 = vsel %vm666, %v2319, %v2164
    %v2322 = vsel %vm666, %v2319, 0.0
    %s2323 = scalar_lea.vmem [#allocation14], 16
    %2324 = vst [vmem:[%s2323] sm:$0xff] %v2322
    %s2325 = scalar_lea.vmem [#allocation2], 96
    %v2326 = vld [vmem:[%s2325] sm:$0xff]
    %v2327 = vld [vmem:[%s2325 + $0x8] sm:$0xff]
    %v2328 = vld [vmem:[%s2325 + $0x10] sm:$0xff]
    %v2329 = vld [vmem:[%s2325 + $0x18] sm:$0xff]
    %2330 = vmatpush.msra.mxu0 %v1538
    %2331 = vmatpush.msra.mxu0 %v1534
    %2332 = vmatpush.msra.mxu0 %v1530
    %2333 = vmatpush.msra.mxu0 %v1526
    %2334 = vmatpush.msra.mxu0 %v1522
    %2335 = vmatpush.msra.mxu0 %v1518
    %2336 = vmatpush.msra.mxu0 %v1514
    %2337 = vmatpush.msra.mxu0 %v1510
    %2338 = vmatpush.msra.mxu0 %v1506
    %2339 = vmatpush.msra.mxu0 %v1502
    %2340 = vmatpush.msra.mxu0 %v1498
    %2341 = vmatpush.msra.mxu0 %v1494
    %2342 = vmatpush.msra.mxu0 %v1490
    %2343 = vmatpush.msra.mxu0 %v1486
    %2344 = vmatpush.msra.mxu0 %v1482
    %2345 = vmatpush.msra.mxu0 %v1478
    %2346 = vmatmul.f32.gmra.mxu0 %v2321
    %v2347 = vpop.f32.mrf.mxu0
    %v2348 = vadd.f32 0.0, %v2347
    %2349 = vdwg.mxu0
    %2350 = vmatpush.msra.mxu0 %v1539
    %2351 = vmatpush.msra.mxu0 %v1535
    %2352 = vmatpush.msra.mxu0 %v1531
    %2353 = vmatpush.msra.mxu0 %v1527
    %2354 = vmatpush.msra.mxu0 %v1523
    %2355 = vmatpush.msra.mxu0 %v1519
    %2356 = vmatpush.msra.mxu0 %v1515
    %2357 = vmatpush.msra.mxu0 %v1511
    %2358 = vmatpush.msra.mxu0 %v1507
    %2359 = vmatpush.msra.mxu0 %v1503
    %2360 = vmatpush.msra.mxu0 %v1499
    %2361 = vmatpush.msra.mxu0 %v1495
    %2362 = vmatpush.msra.mxu0 %v1491
    %2363 = vmatpush.msra.mxu0 %v1487
    %2364 = vmatpush.msra.mxu0 %v1483
    %2365 = vmatpush.msra.mxu0 %v1479
    %2366 = vmatmul.f32.gmra.mxu0 %v2321
    %v2367 = vpop.f32.mrf.mxu0
    %v2368 = vadd.f32 0.0, %v2367
    %2369 = vdwg.mxu0
    %2370 = vmatpush.msra.mxu0 %v1540
    %2371 = vmatpush.msra.mxu0 %v1536
    %2372 = vmatpush.msra.mxu0 %v1532
    %2373 = vmatpush.msra.mxu0 %v1528
    %2374 = vmatpush.msra.mxu0 %v1524
    %2375 = vmatpush.msra.mxu0 %v1520
    %2376 = vmatpush.msra.mxu0 %v1516
    %2377 = vmatpush.msra.mxu0 %v1512
    %2378 = vmatpush.msra.mxu0 %v1508
    %2379 = vmatpush.msra.mxu0 %v1504
    %2380 = vmatpush.msra.mxu0 %v1500
    %2381 = vmatpush.msra.mxu0 %v1496
    %2382 = vmatpush.msra.mxu0 %v1492
    %2383 = vmatpush.msra.mxu0 %v1488
    %2384 = vmatpush.msra.mxu0 %v1484
    %2385 = vmatpush.msra.mxu0 %v1480
    %2386 = vmatmul.f32.gmra.mxu0 %v2321
    %v2387 = vpop.f32.mrf.mxu0
    %v2388 = vadd.f32 0.0, %v2387
    %2389 = vdwg.mxu0
    %2390 = vmatpush.msra.mxu0 %v1541
    %2391 = vmatpush.msra.mxu0 %v1537
    %2392 = vmatpush.msra.mxu0 %v1533
    %2393 = vmatpush.msra.mxu0 %v1529
    %2394 = vmatpush.msra.mxu0 %v1525
    %2395 = vmatpush.msra.mxu0 %v1521
    %2396 = vmatpush.msra.mxu0 %v1517
    %2397 = vmatpush.msra.mxu0 %v1513
    %2398 = vmatpush.msra.mxu0 %v1509
    %2399 = vmatpush.msra.mxu0 %v1505
    %2400 = vmatpush.msra.mxu0 %v1501
    %2401 = vmatpush.msra.mxu0 %v1497
    %2402 = vmatpush.msra.mxu0 %v1493
    %2403 = vmatpush.msra.mxu0 %v1489
    %2404 = vmatpush.msra.mxu0 %v1485
    %2405 = vmatpush.msra.mxu0 %v1481
    %2406 = vmatmul.f32.gmra.mxu0 %v2321
    %v2407 = vpop.f32.mrf.mxu0
    %v2408 = vadd.f32 0.0, %v2407
    %2409 = vdwg.mxu0
    %v2410 = vadd.f32 %v2326, %v2348
    %v2411 = vadd.f32 %v2327, %v2368
    %v2412 = vadd.f32 %v2328, %v2388
    %v2413 = vadd.f32 %v2329, %v2408
    %v2414 = vxor.u32 %v2410, 2147483648
    %v2415 = vmul.f32 %v2414, 1.442695
    %v2416 = vpow.pop %v2415
    %v2417 = vadd.f32 %v2416, 1.0
    %v2418 = vrcp.pop %v2417
    %v2419 = vmul.f32 %v2417, %v2418
    %v2420 = vsub.f32 1.0, %v2419
    %v2421 = vmul.f32 %v2418, %v2420
    %v2422 = vadd.f32 %v2418, %v2421
    %vm2423 = vweird.f32 %v2417
    %vm2424 = vweird.f32 %v2418
    %vm2425 = vmor %vm2423, %vm2424
    %v2426 = vsel %vm2425, %v2418, %v2422
    %v2427 = vand.u32 2147483647, %v2417
    %vm2428 = vcmp.eq.f32.partialorder %v2427, 8.507059e+37
    %v2429 = vand.u32 %v2417, 2147483648
    %v2430 = vor.u32 1.1754944e-38, %v2429
    %v2431 = vsel %vm2428, %v2430, %v2426
    %v2432 = vmul.f32 1.0, %v2431
    %v2433 = vxor.u32 %v2411, 2147483648
    %v2434 = vmul.f32 %v2433, 1.442695
    %v2435 = vpow.pop %v2434
    %v2436 = vadd.f32 %v2435, 1.0
    %v2437 = vrcp.pop %v2436
    %v2438 = vmul.f32 %v2436, %v2437
    %v2439 = vsub.f32 1.0, %v2438
    %v2440 = vmul.f32 %v2437, %v2439
    %v2441 = vadd.f32 %v2437, %v2440
    %vm2442 = vweird.f32 %v2436
    %vm2443 = vweird.f32 %v2437
    %vm2444 = vmor %vm2442, %vm2443
    %v2445 = vsel %vm2444, %v2437, %v2441
    %v2446 = vand.u32 2147483647, %v2436
    %vm2447 = vcmp.eq.f32.partialorder %v2446, 8.507059e+37
    %v2448 = vand.u32 %v2436, 2147483648
    %v2449 = vor.u32 1.1754944e-38, %v2448
    %v2450 = vsel %vm2447, %v2449, %v2445
    %v2451 = vmul.f32 1.0, %v2450
    %v2452 = vtanh.pop %v2412
    %v2453 = vxor.u32 %v2413, 2147483648
    %v2454 = vmul.f32 %v2453, 1.442695
    %v2455 = vpow.pop %v2454
    %v2456 = vadd.f32 %v2455, 1.0
    %v2457 = vrcp.pop %v2456
    %v2458 = vmul.f32 %v2456, %v2457
    %v2459 = vsub.f32 1.0, %v2458
    %v2460 = vmul.f32 %v2457, %v2459
    %v2461 = vadd.f32 %v2457, %v2460
    %vm2462 = vweird.f32 %v2456
    %vm2463 = vweird.f32 %v2457
    %vm2464 = vmor %vm2462, %vm2463
    %v2465 = vsel %vm2464, %v2457, %v2461
    %v2466 = vand.u32 2147483647, %v2456
    %vm2467 = vcmp.eq.f32.partialorder %v2466, 8.507059e+37
    %v2468 = vand.u32 %v2456, 2147483648
    %v2469 = vor.u32 1.1754944e-38, %v2468
    %v2470 = vsel %vm2467, %v2469, %v2465
    %v2471 = vmul.f32 1.0, %v2470
    %v2472 = vmul.f32 %v2451, %v2320
    %v2473 = vmul.f32 %v2432, %v2452
    %v2474 = vadd.f32 %v2472, %v2473
    %v2475 = vtanh.pop %v2474
    %v2476 = vmul.f32 %v2471, %v2475
    %v2477 = vsel %vm827, %v2474, %v2320
    %v2478 = vsel %vm827, %v2476, %v2321
    %v2479 = vsel %vm827, %v2476, 0.0
    %s2480 = scalar_lea.vmem [#allocation14], 24
    %2481 = vst [vmem:[%s2480] sm:$0xff] %v2479
    %s2482 = scalar_lea.vmem [#allocation2], 128
    %v2483 = vld [vmem:[%s2482] sm:$0xff]
    %v2484 = vld [vmem:[%s2482 + $0x8] sm:$0xff]
    %v2485 = vld [vmem:[%s2482 + $0x10] sm:$0xff]
    %v2486 = vld [vmem:[%s2482 + $0x18] sm:$0xff]
    %2487 = vmatpush.msra.mxu0 %v1538
    %2488 = vmatpush.msra.mxu0 %v1534
    %2489 = vmatpush.msra.mxu0 %v1530
    %2490 = vmatpush.msra.mxu0 %v1526
    %2491 = vmatpush.msra.mxu0 %v1522
    %2492 = vmatpush.msra.mxu0 %v1518
    %2493 = vmatpush.msra.mxu0 %v1514
    %2494 = vmatpush.msra.mxu0 %v1510
    %2495 = vmatpush.msra.mxu0 %v1506
    %2496 = vmatpush.msra.mxu0 %v1502
    %2497 = vmatpush.msra.mxu0 %v1498
    %2498 = vmatpush.msra.mxu0 %v1494
    %2499 = vmatpush.msra.mxu0 %v1490
    %2500 = vmatpush.msra.mxu0 %v1486
    %2501 = vmatpush.msra.mxu0 %v1482
    %2502 = vmatpush.msra.mxu0 %v1478
    %2503 = vmatmul.f32.gmra.mxu0 %v2478
    %v2504 = vpop.f32.mrf.mxu0
    %v2505 = vadd.f32 0.0, %v2504
    %2506 = vdwg.mxu0
    %2507 = vmatpush.msra.mxu0 %v1539
    %2508 = vmatpush.msra.mxu0 %v1535
    %2509 = vmatpush.msra.mxu0 %v1531
    %2510 = vmatpush.msra.mxu0 %v1527
    %2511 = vmatpush.msra.mxu0 %v1523
    %2512 = vmatpush.msra.mxu0 %v1519
    %2513 = vmatpush.msra.mxu0 %v1515
    %2514 = vmatpush.msra.mxu0 %v1511
    %2515 = vmatpush.msra.mxu0 %v1507
    %2516 = vmatpush.msra.mxu0 %v1503
    %2517 = vmatpush.msra.mxu0 %v1499
    %2518 = vmatpush.msra.mxu0 %v1495
    %2519 = vmatpush.msra.mxu0 %v1491
    %2520 = vmatpush.msra.mxu0 %v1487
    %2521 = vmatpush.msra.mxu0 %v1483
    %2522 = vmatpush.msra.mxu0 %v1479
    %2523 = vmatmul.f32.gmra.mxu0 %v2478
    %v2524 = vpop.f32.mrf.mxu0
    %v2525 = vadd.f32 0.0, %v2524
    %2526 = vdwg.mxu0
    %2527 = vmatpush.msra.mxu0 %v1540
    %2528 = vmatpush.msra.mxu0 %v1536
    %2529 = vmatpush.msra.mxu0 %v1532
    %2530 = vmatpush.msra.mxu0 %v1528
    %2531 = vmatpush.msra.mxu0 %v1524
    %2532 = vmatpush.msra.mxu0 %v1520
    %2533 = vmatpush.msra.mxu0 %v1516
    %2534 = vmatpush.msra.mxu0 %v1512
    %2535 = vmatpush.msra.mxu0 %v1508
    %2536 = vmatpush.msra.mxu0 %v1504
    %2537 = vmatpush.msra.mxu0 %v1500
    %2538 = vmatpush.msra.mxu0 %v1496
    %2539 = vmatpush.msra.mxu0 %v1492
    %2540 = vmatpush.msra.mxu0 %v1488
    %2541 = vmatpush.msra.mxu0 %v1484
    %2542 = vmatpush.msra.mxu0 %v1480
    %2543 = vmatmul.f32.gmra.mxu0 %v2478
    %v2544 = vpop.f32.mrf.mxu0
    %v2545 = vadd.f32 0.0, %v2544
    %2546 = vdwg.mxu0
    %2547 = vmatpush.msra.mxu0 %v1541
    %2548 = vmatpush.msra.mxu0 %v1537
    %2549 = vmatpush.msra.mxu0 %v1533
    %2550 = vmatpush.msra.mxu0 %v1529
    %2551 = vmatpush.msra.mxu0 %v1525
    %2552 = vmatpush.msra.mxu0 %v1521
    %2553 = vmatpush.msra.mxu0 %v1517
    %2554 = vmatpush.msra.mxu0 %v1513
    %2555 = vmatpush.msra.mxu0 %v1509
    %2556 = vmatpush.msra.mxu0 %v1505
    %2557 = vmatpush.msra.mxu0 %v1501
    %2558 = vmatpush.msra.mxu0 %v1497
    %2559 = vmatpush.msra.mxu0 %v1493
    %2560 = vmatpush.msra.mxu0 %v1489
    %2561 = vmatpush.msra.mxu0 %v1485
    %2562 = vmatpush.msra.mxu0 %v1481
    %2563 = vmatmul.f32.gmra.mxu0 %v2478
    %v2564 = vpop.f32.mrf.mxu0
    %v2565 = vadd.f32 0.0, %v2564
    %2566 = vdwg.mxu0
    %v2567 = vadd.f32 %v2483, %v2505
    %v2568 = vadd.f32 %v2484, %v2525
    %v2569 = vadd.f32 %v2485, %v2545
    %v2570 = vadd.f32 %v2486, %v2565
    %v2571 = vxor.u32 %v2567, 2147483648
    %v2572 = vmul.f32 %v2571, 1.442695
    %v2573 = vpow.pop %v2572
    %v2574 = vadd.f32 %v2573, 1.0
    %v2575 = vrcp.pop %v2574
    %v2576 = vmul.f32 %v2574, %v2575
    %v2577 = vsub.f32 1.0, %v2576
    %v2578 = vmul.f32 %v2575, %v2577
    %v2579 = vadd.f32 %v2575, %v2578
    %vm2580 = vweird.f32 %v2574
    %vm2581 = vweird.f32 %v2575
    %vm2582 = vmor %vm2580, %vm2581
    %v2583 = vsel %vm2582, %v2575, %v2579
    %v2584 = vand.u32 2147483647, %v2574
    %vm2585 = vcmp.eq.f32.partialorder %v2584, 8.507059e+37
    %v2586 = vand.u32 %v2574, 2147483648
    %v2587 = vor.u32 1.1754944e-38, %v2586
    %v2588 = vsel %vm2585, %v2587, %v2583
    %v2589 = vmul.f32 1.0, %v2588
    %v2590 = vxor.u32 %v2568, 2147483648
    %v2591 = vmul.f32 %v2590, 1.442695
    %v2592 = vpow.pop %v2591
    %v2593 = vadd.f32 %v2592, 1.0
    %v2594 = vrcp.pop %v2593
    %v2595 = vmul.f32 %v2593, %v2594
    %v2596 = vsub.f32 1.0, %v2595
    %v2597 = vmul.f32 %v2594, %v2596
    %v2598 = vadd.f32 %v2594, %v2597
    %vm2599 = vweird.f32 %v2593
    %vm2600 = vweird.f32 %v2594
    %vm2601 = vmor %vm2599, %vm2600
    %v2602 = vsel %vm2601, %v2594, %v2598
    %v2603 = vand.u32 2147483647, %v2593
    %vm2604 = vcmp.eq.f32.partialorder %v2603, 8.507059e+37
    %v2605 = vand.u32 %v2593, 2147483648
    %v2606 = vor.u32 1.1754944e-38, %v2605
    %v2607 = vsel %vm2604, %v2606, %v2602
    %v2608 = vmul.f32 1.0, %v2607
    %v2609 = vtanh.pop %v2569
    %v2610 = vxor.u32 %v2570, 2147483648
    %v2611 = vmul.f32 %v2610, 1.442695
    %v2612 = vpow.pop %v2611
    %v2613 = vadd.f32 %v2612, 1.0
    %v2614 = vrcp.pop %v2613
    %v2615 = vmul.f32 %v2613, %v2614
    %v2616 = vsub.f32 1.0, %v2615
    %v2617 = vmul.f32 %v2614, %v2616
    %v2618 = vadd.f32 %v2614, %v2617
    %vm2619 = vweird.f32 %v2613
    %vm2620 = vweird.f32 %v2614
    %vm2621 = vmor %vm2619, %vm2620
    %v2622 = vsel %vm2621, %v2614, %v2618
    %v2623 = vand.u32 2147483647, %v2613
    %vm2624 = vcmp.eq.f32.partialorder %v2623, 8.507059e+37
    %v2625 = vand.u32 %v2613, 2147483648
    %v2626 = vor.u32 1.1754944e-38, %v2625
    %v2627 = vsel %vm2624, %v2626, %v2622
    %v2628 = vmul.f32 1.0, %v2627
    %v2629 = vmul.f32 %v2608, %v2477
    %v2630 = vmul.f32 %v2589, %v2609
    %v2631 = vadd.f32 %v2629, %v2630
    %v2632 = vtanh.pop %v2631
    %v2633 = vmul.f32 %v2628, %v2632
    %v2634 = vsel %vm988, %v2631, %v2477
    %v2635 = vsel %vm988, %v2633, %v2478
    %v2636 = vsel %vm988, %v2633, 0.0
    %s2637 = scalar_lea.vmem [#allocation14], 32
    %2638 = vst [vmem:[%s2637] sm:$0xff] %v2636
    %s2639 = scalar_lea.vmem [#allocation2], 160
    %v2640 = vld [vmem:[%s2639] sm:$0xff]
    %v2641 = vld [vmem:[%s2639 + $0x8] sm:$0xff]
    %v2642 = vld [vmem:[%s2639 + $0x10] sm:$0xff]
    %v2643 = vld [vmem:[%s2639 + $0x18] sm:$0xff]
    %2644 = vmatpush.msra.mxu0 %v1538
    %2645 = vmatpush.msra.mxu0 %v1534
    %2646 = vmatpush.msra.mxu0 %v1530
    %2647 = vmatpush.msra.mxu0 %v1526
    %2648 = vmatpush.msra.mxu0 %v1522
    %2649 = vmatpush.msra.mxu0 %v1518
    %2650 = vmatpush.msra.mxu0 %v1514
    %2651 = vmatpush.msra.mxu0 %v1510
    %2652 = vmatpush.msra.mxu0 %v1506
    %2653 = vmatpush.msra.mxu0 %v1502
    %2654 = vmatpush.msra.mxu0 %v1498
    %2655 = vmatpush.msra.mxu0 %v1494
    %2656 = vmatpush.msra.mxu0 %v1490
    %2657 = vmatpush.msra.mxu0 %v1486
    %2658 = vmatpush.msra.mxu0 %v1482
    %2659 = vmatpush.msra.mxu0 %v1478
    %2660 = vmatmul.f32.gmra.mxu0 %v2635
    %v2661 = vpop.f32.mrf.mxu0
    %v2662 = vadd.f32 0.0, %v2661
    %2663 = vdwg.mxu0
    %2664 = vmatpush.msra.mxu0 %v1539
    %2665 = vmatpush.msra.mxu0 %v1535
    %2666 = vmatpush.msra.mxu0 %v1531
    %2667 = vmatpush.msra.mxu0 %v1527
    %2668 = vmatpush.msra.mxu0 %v1523
    %2669 = vmatpush.msra.mxu0 %v1519
    %2670 = vmatpush.msra.mxu0 %v1515
    %2671 = vmatpush.msra.mxu0 %v1511
    %2672 = vmatpush.msra.mxu0 %v1507
    %2673 = vmatpush.msra.mxu0 %v1503
    %2674 = vmatpush.msra.mxu0 %v1499
    %2675 = vmatpush.msra.mxu0 %v1495
    %2676 = vmatpush.msra.mxu0 %v1491
    %2677 = vmatpush.msra.mxu0 %v1487
    %2678 = vmatpush.msra.mxu0 %v1483
    %2679 = vmatpush.msra.mxu0 %v1479
    %2680 = vmatmul.f32.gmra.mxu0 %v2635
    %v2681 = vpop.f32.mrf.mxu0
    %v2682 = vadd.f32 0.0, %v2681
    %2683 = vdwg.mxu0
    %2684 = vmatpush.msra.mxu0 %v1540
    %2685 = vmatpush.msra.mxu0 %v1536
    %2686 = vmatpush.msra.mxu0 %v1532
    %2687 = vmatpush.msra.mxu0 %v1528
    %2688 = vmatpush.msra.mxu0 %v1524
    %2689 = vmatpush.msra.mxu0 %v1520
    %2690 = vmatpush.msra.mxu0 %v1516
    %2691 = vmatpush.msra.mxu0 %v1512
    %2692 = vmatpush.msra.mxu0 %v1508
    %2693 = vmatpush.msra.mxu0 %v1504
    %2694 = vmatpush.msra.mxu0 %v1500
    %2695 = vmatpush.msra.mxu0 %v1496
    %2696 = vmatpush.msra.mxu0 %v1492
    %2697 = vmatpush.msra.mxu0 %v1488
    %2698 = vmatpush.msra.mxu0 %v1484
    %2699 = vmatpush.msra.mxu0 %v1480
    %2700 = vmatmul.f32.gmra.mxu0 %v2635
    %v2701 = vpop.f32.mrf.mxu0
    %v2702 = vadd.f32 0.0, %v2701
    %2703 = vdwg.mxu0
    %2704 = vmatpush.msra.mxu0 %v1541
    %2705 = vmatpush.msra.mxu0 %v1537
    %2706 = vmatpush.msra.mxu0 %v1533
    %2707 = vmatpush.msra.mxu0 %v1529
    %2708 = vmatpush.msra.mxu0 %v1525
    %2709 = vmatpush.msra.mxu0 %v1521
    %2710 = vmatpush.msra.mxu0 %v1517
    %2711 = vmatpush.msra.mxu0 %v1513
    %2712 = vmatpush.msra.mxu0 %v1509
    %2713 = vmatpush.msra.mxu0 %v1505
    %2714 = vmatpush.msra.mxu0 %v1501
    %2715 = vmatpush.msra.mxu0 %v1497
    %2716 = vmatpush.msra.mxu0 %v1493
    %2717 = vmatpush.msra.mxu0 %v1489
    %2718 = vmatpush.msra.mxu0 %v1485
    %2719 = vmatpush.msra.mxu0 %v1481
    %2720 = vmatmul.f32.gmra.mxu0 %v2635
    %v2721 = vpop.f32.mrf.mxu0
    %v2722 = vadd.f32 0.0, %v2721
    %2723 = vdwg.mxu0
    %v2724 = vadd.f32 %v2640, %v2662
    %v2725 = vadd.f32 %v2641, %v2682
    %v2726 = vadd.f32 %v2642, %v2702
    %v2727 = vadd.f32 %v2643, %v2722
    %v2728 = vxor.u32 %v2724, 2147483648
    %v2729 = vmul.f32 %v2728, 1.442695
    %v2730 = vpow.pop %v2729
    %v2731 = vadd.f32 %v2730, 1.0
    %v2732 = vrcp.pop %v2731
    %v2733 = vmul.f32 %v2731, %v2732
    %v2734 = vsub.f32 1.0, %v2733
    %v2735 = vmul.f32 %v2732, %v2734
    %v2736 = vadd.f32 %v2732, %v2735
    %vm2737 = vweird.f32 %v2731
    %vm2738 = vweird.f32 %v2732
    %vm2739 = vmor %vm2737, %vm2738
    %v2740 = vsel %vm2739, %v2732, %v2736
    %v2741 = vand.u32 2147483647, %v2731
    %vm2742 = vcmp.eq.f32.partialorder %v2741, 8.507059e+37
    %v2743 = vand.u32 %v2731, 2147483648
    %v2744 = vor.u32 1.1754944e-38, %v2743
    %v2745 = vsel %vm2742, %v2744, %v2740
    %v2746 = vmul.f32 1.0, %v2745
    %v2747 = vxor.u32 %v2725, 2147483648
    %v2748 = vmul.f32 %v2747, 1.442695
    %v2749 = vpow.pop %v2748
    %v2750 = vadd.f32 %v2749, 1.0
    %v2751 = vrcp.pop %v2750
    %v2752 = vmul.f32 %v2750, %v2751
    %v2753 = vsub.f32 1.0, %v2752
    %v2754 = vmul.f32 %v2751, %v2753
    %v2755 = vadd.f32 %v2751, %v2754
    %vm2756 = vweird.f32 %v2750
    %vm2757 = vweird.f32 %v2751
    %vm2758 = vmor %vm2756, %vm2757
    %v2759 = vsel %vm2758, %v2751, %v2755
    %v2760 = vand.u32 2147483647, %v2750
    %vm2761 = vcmp.eq.f32.partialorder %v2760, 8.507059e+37
    %v2762 = vand.u32 %v2750, 2147483648
    %v2763 = vor.u32 1.1754944e-38, %v2762
    %v2764 = vsel %vm2761, %v2763, %v2759
    %v2765 = vmul.f32 1.0, %v2764
    %v2766 = vtanh.pop %v2726
    %v2767 = vxor.u32 %v2727, 2147483648
    %v2768 = vmul.f32 %v2767, 1.442695
    %v2769 = vpow.pop %v2768
    %v2770 = vadd.f32 %v2769, 1.0
    %v2771 = vrcp.pop %v2770
    %v2772 = vmul.f32 %v2770, %v2771
    %v2773 = vsub.f32 1.0, %v2772
    %v2774 = vmul.f32 %v2771, %v2773
    %v2775 = vadd.f32 %v2771, %v2774
    %vm2776 = vweird.f32 %v2770
    %vm2777 = vweird.f32 %v2771
    %vm2778 = vmor %vm2776, %vm2777
    %v2779 = vsel %vm2778, %v2771, %v2775
    %v2780 = vand.u32 2147483647, %v2770
    %vm2781 = vcmp.eq.f32.partialorder %v2780, 8.507059e+37
    %v2782 = vand.u32 %v2770, 2147483648
    %v2783 = vor.u32 1.1754944e-38, %v2782
    %v2784 = vsel %vm2781, %v2783, %v2779
    %v2785 = vmul.f32 1.0, %v2784
    %v2786 = vmul.f32 %v2765, %v2634
    %v2787 = vmul.f32 %v2746, %v2766
    %v2788 = vadd.f32 %v2786, %v2787
    %v2789 = vtanh.pop %v2788
    %v2790 = vmul.f32 %v2785, %v2789
    %v2791 = vsel %vm1149, %v2788, %v2634
    %v2792 = vsel %vm1149, %v2790, %v2635
    %v2793 = vsel %vm1149, %v2790, 0.0
    %s2794 = scalar_lea.vmem [#allocation14], 40
    %2795 = vst [vmem:[%s2794] sm:$0xff] %v2793
    %s2796 = scalar_lea.vmem [#allocation2], 192
    %v2797 = vld [vmem:[%s2796] sm:$0xff]
    %v2798 = vld [vmem:[%s2796 + $0x8] sm:$0xff]
    %v2799 = vld [vmem:[%s2796 + $0x10] sm:$0xff]
    %v2800 = vld [vmem:[%s2796 + $0x18] sm:$0xff]
    %2801 = vmatpush.msra.mxu0 %v1538
    %2802 = vmatpush.msra.mxu0 %v1534
    %2803 = vmatpush.msra.mxu0 %v1530
    %2804 = vmatpush.msra.mxu0 %v1526
    %2805 = vmatpush.msra.mxu0 %v1522
    %2806 = vmatpush.msra.mxu0 %v1518
    %2807 = vmatpush.msra.mxu0 %v1514
    %2808 = vmatpush.msra.mxu0 %v1510
    %2809 = vmatpush.msra.mxu0 %v1506
    %2810 = vmatpush.msra.mxu0 %v1502
    %2811 = vmatpush.msra.mxu0 %v1498
    %2812 = vmatpush.msra.mxu0 %v1494
    %2813 = vmatpush.msra.mxu0 %v1490
    %2814 = vmatpush.msra.mxu0 %v1486
    %2815 = vmatpush.msra.mxu0 %v1482
    %2816 = vmatpush.msra.mxu0 %v1478
    %2817 = vmatmul.f32.gmra.mxu0 %v2792
    %v2818 = vpop.f32.mrf.mxu0
    %v2819 = vadd.f32 0.0, %v2818
    %2820 = vdwg.mxu0
    %2821 = vmatpush.msra.mxu0 %v1539
    %2822 = vmatpush.msra.mxu0 %v1535
    %2823 = vmatpush.msra.mxu0 %v1531
    %2824 = vmatpush.msra.mxu0 %v1527
    %2825 = vmatpush.msra.mxu0 %v1523
    %2826 = vmatpush.msra.mxu0 %v1519
    %2827 = vmatpush.msra.mxu0 %v1515
    %2828 = vmatpush.msra.mxu0 %v1511
    %2829 = vmatpush.msra.mxu0 %v1507
    %2830 = vmatpush.msra.mxu0 %v1503
    %2831 = vmatpush.msra.mxu0 %v1499
    %2832 = vmatpush.msra.mxu0 %v1495
    %2833 = vmatpush.msra.mxu0 %v1491
    %2834 = vmatpush.msra.mxu0 %v1487
    %2835 = vmatpush.msra.mxu0 %v1483
    %2836 = vmatpush.msra.mxu0 %v1479
    %2837 = vmatmul.f32.gmra.mxu0 %v2792
    %v2838 = vpop.f32.mrf.mxu0
    %v2839 = vadd.f32 0.0, %v2838
    %2840 = vdwg.mxu0
    %2841 = vmatpush.msra.mxu0 %v1540
    %2842 = vmatpush.msra.mxu0 %v1536
    %2843 = vmatpush.msra.mxu0 %v1532
    %2844 = vmatpush.msra.mxu0 %v1528
    %2845 = vmatpush.msra.mxu0 %v1524
    %2846 = vmatpush.msra.mxu0 %v1520
    %2847 = vmatpush.msra.mxu0 %v1516
    %2848 = vmatpush.msra.mxu0 %v1512
    %2849 = vmatpush.msra.mxu0 %v1508
    %2850 = vmatpush.msra.mxu0 %v1504
    %2851 = vmatpush.msra.mxu0 %v1500
    %2852 = vmatpush.msra.mxu0 %v1496
    %2853 = vmatpush.msra.mxu0 %v1492
    %2854 = vmatpush.msra.mxu0 %v1488
    %2855 = vmatpush.msra.mxu0 %v1484
    %2856 = vmatpush.msra.mxu0 %v1480
    %2857 = vmatmul.f32.gmra.mxu0 %v2792
    %v2858 = vpop.f32.mrf.mxu0
    %v2859 = vadd.f32 0.0, %v2858
    %2860 = vdwg.mxu0
    %2861 = vmatpush.msra.mxu0 %v1541
    %2862 = vmatpush.msra.mxu0 %v1537
    %2863 = vmatpush.msra.mxu0 %v1533
    %2864 = vmatpush.msra.mxu0 %v1529
    %2865 = vmatpush.msra.mxu0 %v1525
    %2866 = vmatpush.msra.mxu0 %v1521
    %2867 = vmatpush.msra.mxu0 %v1517
    %2868 = vmatpush.msra.mxu0 %v1513
    %2869 = vmatpush.msra.mxu0 %v1509
    %2870 = vmatpush.msra.mxu0 %v1505
    %2871 = vmatpush.msra.mxu0 %v1501
    %2872 = vmatpush.msra.mxu0 %v1497
    %2873 = vmatpush.msra.mxu0 %v1493
    %2874 = vmatpush.msra.mxu0 %v1489
    %2875 = vmatpush.msra.mxu0 %v1485
    %2876 = vmatpush.msra.mxu0 %v1481
    %2877 = vmatmul.f32.gmra.mxu0 %v2792
    %v2878 = vpop.f32.mrf.mxu0
    %v2879 = vadd.f32 0.0, %v2878
    %2880 = vdwg.mxu0
    %v2881 = vadd.f32 %v2797, %v2819
    %v2882 = vadd.f32 %v2798, %v2839
    %v2883 = vadd.f32 %v2799, %v2859
    %v2884 = vadd.f32 %v2800, %v2879
    %v2885 = vxor.u32 %v2881, 2147483648
    %v2886 = vmul.f32 %v2885, 1.442695
    %v2887 = vpow.pop %v2886
    %v2888 = vadd.f32 %v2887, 1.0
    %v2889 = vrcp.pop %v2888
    %v2890 = vmul.f32 %v2888, %v2889
    %v2891 = vsub.f32 1.0, %v2890
    %v2892 = vmul.f32 %v2889, %v2891
    %v2893 = vadd.f32 %v2889, %v2892
    %vm2894 = vweird.f32 %v2888
    %vm2895 = vweird.f32 %v2889
    %vm2896 = vmor %vm2894, %vm2895
    %v2897 = vsel %vm2896, %v2889, %v2893
    %v2898 = vand.u32 2147483647, %v2888
    %vm2899 = vcmp.eq.f32.partialorder %v2898, 8.507059e+37
    %v2900 = vand.u32 %v2888, 2147483648
    %v2901 = vor.u32 1.1754944e-38, %v2900
    %v2902 = vsel %vm2899, %v2901, %v2897
    %v2903 = vmul.f32 1.0, %v2902
    %v2904 = vxor.u32 %v2882, 2147483648
    %v2905 = vmul.f32 %v2904, 1.442695
    %v2906 = vpow.pop %v2905
    %v2907 = vadd.f32 %v2906, 1.0
    %v2908 = vrcp.pop %v2907
    %v2909 = vmul.f32 %v2907, %v2908
    %v2910 = vsub.f32 1.0, %v2909
    %v2911 = vmul.f32 %v2908, %v2910
    %v2912 = vadd.f32 %v2908, %v2911
    %vm2913 = vweird.f32 %v2907
    %vm2914 = vweird.f32 %v2908
    %vm2915 = vmor %vm2913, %vm2914
    %v2916 = vsel %vm2915, %v2908, %v2912
    %v2917 = vand.u32 2147483647, %v2907
    %vm2918 = vcmp.eq.f32.partialorder %v2917, 8.507059e+37
    %v2919 = vand.u32 %v2907, 2147483648
    %v2920 = vor.u32 1.1754944e-38, %v2919
    %v2921 = vsel %vm2918, %v2920, %v2916
    %v2922 = vmul.f32 1.0, %v2921
    %v2923 = vtanh.pop %v2883
    %v2924 = vxor.u32 %v2884, 2147483648
    %v2925 = vmul.f32 %v2924, 1.442695
    %v2926 = vpow.pop %v2925
    %v2927 = vadd.f32 %v2926, 1.0
    %v2928 = vrcp.pop %v2927
    %v2929 = vmul.f32 %v2927, %v2928
    %v2930 = vsub.f32 1.0, %v2929
    %v2931 = vmul.f32 %v2928, %v2930
    %v2932 = vadd.f32 %v2928, %v2931
    %vm2933 = vweird.f32 %v2927
    %vm2934 = vweird.f32 %v2928
    %vm2935 = vmor %vm2933, %vm2934
    %v2936 = vsel %vm2935, %v2928, %v2932
    %v2937 = vand.u32 2147483647, %v2927
    %vm2938 = vcmp.eq.f32.partialorder %v2937, 8.507059e+37
    %v2939 = vand.u32 %v2927, 2147483648
    %v2940 = vor.u32 1.1754944e-38, %v2939
    %v2941 = vsel %vm2938, %v2940, %v2936
    %v2942 = vmul.f32 1.0, %v2941
    %v2943 = vmul.f32 %v2922, %v2791
    %v2944 = vmul.f32 %v2903, %v2923
    %v2945 = vadd.f32 %v2943, %v2944
    %v2946 = vtanh.pop %v2945
    %v2947 = vmul.f32 %v2942, %v2946
    %v2948 = vsel %vm1310, %v2945, %v2791
    %v2949 = vsel %vm1310, %v2947, %v2792
    %v2950 = vsel %vm1310, %v2947, 0.0
    %s2951 = scalar_lea.vmem [#allocation14], 48
    %2952 = vst [vmem:[%s2951] sm:$0xff] %v2950
    %s2953 = scalar_lea.vmem [#allocation2], 224
    %v2954 = vld [vmem:[%s2953] sm:$0xff]
    %v2955 = vld [vmem:[%s2953 + $0x8] sm:$0xff]
    %v2956 = vld [vmem:[%s2953 + $0x10] sm:$0xff]
    %v2957 = vld [vmem:[%s2953 + $0x18] sm:$0xff]
    %2958 = vmatpush.msra.mxu0 %v1538
    %2959 = vmatpush.msra.mxu0 %v1534
    %2960 = vmatpush.msra.mxu0 %v1530
    %2961 = vmatpush.msra.mxu0 %v1526
    %2962 = vmatpush.msra.mxu0 %v1522
    %2963 = vmatpush.msra.mxu0 %v1518
    %2964 = vmatpush.msra.mxu0 %v1514
    %2965 = vmatpush.msra.mxu0 %v1510
    %2966 = vmatpush.msra.mxu0 %v1506
    %2967 = vmatpush.msra.mxu0 %v1502
    %2968 = vmatpush.msra.mxu0 %v1498
    %2969 = vmatpush.msra.mxu0 %v1494
    %2970 = vmatpush.msra.mxu0 %v1490
    %2971 = vmatpush.msra.mxu0 %v1486
    %2972 = vmatpush.msra.mxu0 %v1482
    %2973 = vmatpush.msra.mxu0 %v1478
    %2974 = vmatmul.f32.gmra.mxu0 %v2949
    %v2975 = vpop.f32.mrf.mxu0
    %v2976 = vadd.f32 0.0, %v2975
    %2977 = vdwg.mxu0
    %2978 = vmatpush.msra.mxu0 %v1539
    %2979 = vmatpush.msra.mxu0 %v1535
    %2980 = vmatpush.msra.mxu0 %v1531
    %2981 = vmatpush.msra.mxu0 %v1527
    %2982 = vmatpush.msra.mxu0 %v1523
    %2983 = vmatpush.msra.mxu0 %v1519
    %2984 = vmatpush.msra.mxu0 %v1515
    %2985 = vmatpush.msra.mxu0 %v1511
    %2986 = vmatpush.msra.mxu0 %v1507
    %2987 = vmatpush.msra.mxu0 %v1503
    %2988 = vmatpush.msra.mxu0 %v1499
    %2989 = vmatpush.msra.mxu0 %v1495
    %2990 = vmatpush.msra.mxu0 %v1491
    %2991 = vmatpush.msra.mxu0 %v1487
    %2992 = vmatpush.msra.mxu0 %v1483
    %2993 = vmatpush.msra.mxu0 %v1479
    %2994 = vmatmul.f32.gmra.mxu0 %v2949
    %v2995 = vpop.f32.mrf.mxu0
    %v2996 = vadd.f32 0.0, %v2995
    %2997 = vdwg.mxu0
    %2998 = vmatpush.msra.mxu0 %v1540
    %2999 = vmatpush.msra.mxu0 %v1536
    %3000 = vmatpush.msra.mxu0 %v1532
    %3001 = vmatpush.msra.mxu0 %v1528
    %3002 = vmatpush.msra.mxu0 %v1524
    %3003 = vmatpush.msra.mxu0 %v1520
    %3004 = vmatpush.msra.mxu0 %v1516
    %3005 = vmatpush.msra.mxu0 %v1512
    %3006 = vmatpush.msra.mxu0 %v1508
    %3007 = vmatpush.msra.mxu0 %v1504
    %3008 = vmatpush.msra.mxu0 %v1500
    %3009 = vmatpush.msra.mxu0 %v1496
    %3010 = vmatpush.msra.mxu0 %v1492
    %3011 = vmatpush.msra.mxu0 %v1488
    %3012 = vmatpush.msra.mxu0 %v1484
    %3013 = vmatpush.msra.mxu0 %v1480
    %3014 = vmatmul.f32.gmra.mxu0 %v2949
    %v3015 = vpop.f32.mrf.mxu0
    %v3016 = vadd.f32 0.0, %v3015
    %3017 = vdwg.mxu0
    %3018 = vmatpush.msra.mxu0 %v1541
    %3019 = vmatpush.msra.mxu0 %v1537
    %3020 = vmatpush.msra.mxu0 %v1533
    %3021 = vmatpush.msra.mxu0 %v1529
    %3022 = vmatpush.msra.mxu0 %v1525
    %3023 = vmatpush.msra.mxu0 %v1521
    %3024 = vmatpush.msra.mxu0 %v1517
    %3025 = vmatpush.msra.mxu0 %v1513
    %3026 = vmatpush.msra.mxu0 %v1509
    %3027 = vmatpush.msra.mxu0 %v1505
    %3028 = vmatpush.msra.mxu0 %v1501
    %3029 = vmatpush.msra.mxu0 %v1497
    %3030 = vmatpush.msra.mxu0 %v1493
    %3031 = vmatpush.msra.mxu0 %v1489
    %3032 = vmatpush.msra.mxu0 %v1485
    %3033 = vmatpush.msra.mxu0 %v1481
    %3034 = vmatmul.f32.gmra.mxu0 %v2949
    %v3035 = vpop.f32.mrf.mxu0
    %v3036 = vadd.f32 0.0, %v3035
    %3037 = vdwg.mxu0
    %v3038 = vadd.f32 %v2954, %v2976
    %v3039 = vadd.f32 %v2955, %v2996
    %v3040 = vadd.f32 %v2956, %v3016
    %v3041 = vadd.f32 %v2957, %v3036
    %v3042 = vxor.u32 %v3038, 2147483648
    %v3043 = vmul.f32 %v3042, 1.442695
    %v3044 = vpow.pop %v3043
    %v3045 = vadd.f32 %v3044, 1.0
    %v3046 = vrcp.pop %v3045
    %v3047 = vmul.f32 %v3045, %v3046
    %v3048 = vsub.f32 1.0, %v3047
    %v3049 = vmul.f32 %v3046, %v3048
    %v3050 = vadd.f32 %v3046, %v3049
    %vm3051 = vweird.f32 %v3045
    %vm3052 = vweird.f32 %v3046
    %vm3053 = vmor %vm3051, %vm3052
    %v3054 = vsel %vm3053, %v3046, %v3050
    %v3055 = vand.u32 2147483647, %v3045
    %vm3056 = vcmp.eq.f32.partialorder %v3055, 8.507059e+37
    %v3057 = vand.u32 %v3045, 2147483648
    %v3058 = vor.u32 1.1754944e-38, %v3057
    %v3059 = vsel %vm3056, %v3058, %v3054
    %v3060 = vmul.f32 1.0, %v3059
    %v3061 = vxor.u32 %v3039, 2147483648
    %v3062 = vmul.f32 %v3061, 1.442695
    %v3063 = vpow.pop %v3062
    %v3064 = vadd.f32 %v3063, 1.0
    %v3065 = vrcp.pop %v3064
    %v3066 = vmul.f32 %v3064, %v3065
    %v3067 = vsub.f32 1.0, %v3066
    %v3068 = vmul.f32 %v3065, %v3067
    %v3069 = vadd.f32 %v3065, %v3068
    %vm3070 = vweird.f32 %v3064
    %vm3071 = vweird.f32 %v3065
    %vm3072 = vmor %vm3070, %vm3071
    %v3073 = vsel %vm3072, %v3065, %v3069
    %v3074 = vand.u32 2147483647, %v3064
    %vm3075 = vcmp.eq.f32.partialorder %v3074, 8.507059e+37
    %v3076 = vand.u32 %v3064, 2147483648
    %v3077 = vor.u32 1.1754944e-38, %v3076
    %v3078 = vsel %vm3075, %v3077, %v3073
    %v3079 = vmul.f32 1.0, %v3078
    %v3080 = vtanh.pop %v3040
    %v3081 = vxor.u32 %v3041, 2147483648
    %v3082 = vmul.f32 %v3081, 1.442695
    %v3083 = vpow.pop %v3082
    %v3084 = vadd.f32 %v3083, 1.0
    %v3085 = vrcp.pop %v3084
    %v3086 = vmul.f32 %v3084, %v3085
    %v3087 = vsub.f32 1.0, %v3086
    %v3088 = vmul.f32 %v3085, %v3087
    %v3089 = vadd.f32 %v3085, %v3088
    %vm3090 = vweird.f32 %v3084
    %vm3091 = vweird.f32 %v3085
    %vm3092 = vmor %vm3090, %vm3091
    %v3093 = vsel %vm3092, %v3085, %v3089
    %v3094 = vand.u32 2147483647, %v3084
    %vm3095 = vcmp.eq.f32.partialorder %v3094, 8.507059e+37
    %v3096 = vand.u32 %v3084, 2147483648
    %v3097 = vor.u32 1.1754944e-38, %v3096
    %v3098 = vsel %vm3095, %v3097, %v3093
    %v3099 = vmul.f32 1.0, %v3098
    %v3100 = vmul.f32 %v3079, %v2948
    %v3101 = vmul.f32 %v3060, %v3080
    %v3102 = vadd.f32 %v3100, %v3101
    %v3103 = vtanh.pop %v3102
    %v3104 = vmul.f32 %v3099, %v3103
    %v3105 = vsel %vm1471, %v3102, %v2948
    %v3106 = vsel %vm1471, %v3104, %v2949
    %v3107 = vsel %vm1471, %v3104, 0.0
    %s3108 = scalar_lea.vmem [#allocation14], 56
    %3109 = vst [vmem:[%s3108] sm:$0xff] %v3107
    %3110 = vst [vmem:[%s1852] sm:$0xff] %v3106
    %3111 = vst [vmem:[%s1854] sm:$0xff] %v3105
    // Predicated region
    $region46: #{tpu_custom_call.1} parent=1 // pred_check
      %p3112 = pneg %p92
    $region47: #{tpu_custom_call.1} parent=1 // pred_check_branch
      %3114 = sbr.rel (%p3112) target = $region49
    $region48: #{tpu_custom_call.1} parent=1 // pred_region
      %v3115 = vld [vmem:[#allocation4] sm:$0xff]
      %v3116 = vld [vmem:[#allocation4 + $0x8] sm:$0xff]
      %3117 = vst [vmem:[#allocation15] sm:$0xff] %v3115
      %3118 = vst [vmem:[#allocation15 + $0x8] sm:$0xff] %v3116
      %v3119 = vld [vmem:[#allocation5] sm:$0xff]
      %v3120 = vld [vmem:[#allocation5 + $0x8] sm:$0xff]
      %3121 = vst [vmem:[#allocation17] sm:$0xff] %v3119
      %3122 = vst [vmem:[#allocation17 + $0x8] sm:$0xff] %v3120
    $region49: #{tpu_custom_call.1} parent=1 // pred_fallthru
      _
    // Predicated region
    $region50: #{tpu_custom_call.1} parent=1 // pred_check
      _
    $region51: #{tpu_custom_call.1} parent=1 // pred_check_branch
      %3124 = sbr.rel (0) target = $region53
    $region52: #{tpu_custom_call.1} parent=1 // pred_region
      %3126 = vsyncadd [#allocation8], 0
      %s3127 = sshll.u32 [#allocation14], 4
      %s3128 = int_to_ptr.vmem [resolvable:$true] %s3127
      %s3129 = sshll.u32 %s6, 4
      %s3130 = int_to_ptr.hbm [resolvable:$true] %s3129
      %3135 = dma.vmem_to_hbm [thread:$0]  %s3128, 1024, %s3130, [#allocation8], 128, 128, 8
    $region53: #{tpu_custom_call.1} parent=1 // pred_fallthru
      _
    // Predicated region
    $region54: #{tpu_custom_call.1} parent=1 // pred_check
      _
    $region55: #{tpu_custom_call.1} parent=1 // pred_check_branch
      %3137 = sbr.rel (0) target = $region57
    $region56: #{tpu_custom_call.1} parent=1 // pred_region
      %3139 = vsyncadd [#allocation16], 0
      %s3140 = sshll.u32 [#allocation15], 4
      %s3141 = int_to_ptr.vmem [resolvable:$true] %s3140
      %s3142 = sshll.u32 %s7, 4
      %s3143 = int_to_ptr.hbm [resolvable:$true] %s3142
      %3148 = dma.vmem_to_hbm [thread:$0]  %s3141, 256, %s3143, [#allocation16], 128, 128, 8
    $region57: #{tpu_custom_call.1} parent=1 // pred_fallthru
      _
    // Predicated region
    $region58: #{tpu_custom_call.1} parent=1 // pred_check
      _
    $region59: #{tpu_custom_call.1} parent=1 // pred_check_branch
      %3150 = sbr.rel (0) target = $region61
    $region60: #{tpu_custom_call.1} parent=1 // pred_region
      %3152 = vsyncadd [#allocation16], 0
      %s3153 = sshll.u32 [#allocation17], 4
      %s3154 = int_to_ptr.vmem [resolvable:$true] %s3153
      %s3155 = sshll.u32 %s8, 4
      %s3156 = int_to_ptr.hbm [resolvable:$true] %s3155
      %3161 = dma.vmem_to_hbm [thread:$0]  %s3154, 256, %s3156, [#allocation16], 128, 128, 8
    $region61: #{tpu_custom_call.1} parent=1 // pred_fallthru
      _
    // Predicated region
    $region62: #{tpu_custom_call.1} parent=1 // pred_check
      _
    $region63: #{tpu_custom_call.1} parent=1 // pred_check_branch
      %3163 = sbr.rel (0) target = $region65
    $region64: #{tpu_custom_call.1} parent=1 // pred_region
      %3165 = dma.done [#allocation8], 1024
    $region65: #{tpu_custom_call.1} parent=1 // pred_fallthru
      _
    // Predicated region
    $region66: #{tpu_custom_call.1} parent=1 // pred_check
      _
    $region67: #{tpu_custom_call.1} parent=1 // pred_check_branch
      %3167 = sbr.rel (0) target = $region69
    $region68: #{tpu_custom_call.1} parent=1 // pred_region
      %3169 = dma.done [#allocation16], 256
    $region69: #{tpu_custom_call.1} parent=1 // pred_fallthru
      _
    // Predicated region
    $region70: #{tpu_custom_call.1} parent=1 // pred_check
      _
    $region71: #{tpu_custom_call.1} parent=1 // pred_check_branch
      %3171 = sbr.rel (0) target = $region73
    $region72: #{tpu_custom_call.1} parent=1 // pred_region
      %3173 = dma.done [#allocation16], 256
    $region73: #{tpu_custom_call.1} parent=1 // pred_fallthru
      _
    %3174 = vsyncpa [#allocation7], 1
    %3175 = vsyncpa [#allocation10], 1
    %3176 = vsyncpa [#allocation13], 1
    %3177 = vsyncpa [#allocation8], 1
    %3178 = vsyncpa [#allocation16], 1

</llo_original>
